<compile_context>
chip_gen: v7x
topology: tpu7x:2x2x1
jax: 0.10.0
libtpu: 0.0.40
codegen_flags: <defaults>
</compile_context>

<pallas_src>
import jax
import jax.numpy as jnp
from jax.experimental import pallas as pl
from jax.experimental.pallas import tpu as pltpu

LANE = 128  # TPU lane width; every layer's K and N dimensions are padded to this


def _layer_dims(in_feats):
    """Replicates AutoEncoder.__init__'s layer-size logic.

    Returns ([(in, out)] per Linear layer in forward order,
             index of encoder_output — whose post-ReLU activation is `encoded`).
    """
    enc_hidden = []
    layer_in = in_feats
    layer_out = layer_in // 2
    while layer_out > 2:
        enc_hidden.append((layer_in, layer_out))
        layer_in = layer_out
        layer_out = layer_in // 2
    layers = list(enc_hidden)
    layers.append((layer_in, 2))               # encoder_output
    enc_idx = len(layers) - 1
    if enc_hidden:
        layers.append((2, layer_in))           # first decoder hidden: Linear(2, layer_in)
        rev = list(reversed(enc_hidden))
        for (o, i) in rev[:-1]:
            layers.append((i, o))              # Linear(in_features=i, out_features=o)
        layers.append((rev[-1][1], in_feats))  # decoder_output
    else:
        layers.append((2, in_feats))           # decoder_output only
    return layers, enc_idx


def make_autoencoder(in_feats, block_rows=256):
    """Builds (forward, forward_padded, pack_params, dims, enc_idx) for a given input width."""
    dims, enc_idx = _layer_dims(in_feats)
    n_layers = len(dims)
    max_in = max(i for i, _ in dims)
    max_out = max(o for _, o in dims)
    if max_in > LANE or max_out > LANE:
        # Single-tile design; wider models would need a lane grid / streamed weights.
        raise ValueError(
            f"layer width exceeds single-tile design (max in={max_in}, out={max_out}, "
            f"limit={LANE})")
    kpad = LANE  # full-lane K padding: no per-layer activation slicing on the critical path

    # ---------- one-time parameter packing (model init, NOT per forward call) ----------
    def pack_params(weights, biases):
        w_stacked = jnp.zeros((n_layers, kpad, LANE), jnp.float32)
        b_stacked = jnp.zeros((n_layers, 1, LANE), jnp.float32)
        for l, (w, b) in enumerate(zip(weights, biases)):
            o, i = w.shape
            assert (i, o) == dims[l]
            w_stacked = w_stacked.at[l, :i, :o].set(w.T)   # pre-transposed, zero-padded
            b_stacked = b_stacked.at[l, 0, :o].set(b)
        return w_stacked, b_stacked

    # ---------- fused forward kernel: all layers (matmul + bias + ReLU) in one body ----------
    def kernel(x_ref, w_ref, b_ref, out_ref):
        act = x_ref[...]                                    # (B, F) un-padded input
        for l in range(n_layers):                           # static Python loop (unrolled)
            w = w_ref[l]                                    # (kpad, LANE), static index
            if l == 0 and in_feats != kpad:
                w = w[:in_feats, :]                         # first layer only: K = F
            act = jnp.dot(act, w,
                          precision=jax.lax.Precision.HIGHEST,
                          preferred_element_type=jnp.float32) + b_ref[l]
            act = jnp.maximum(act, 0.0)                     # every layer ends in ReLU
            if l == enc_idx:
                out_ref[:, pl.ds(0, LANE)] = act            # encoded -> lanes [0, 128)
        out_ref[:, pl.ds(LANE, LANE)] = act                 # reconstructed -> [128, 256)

    vmem = pl.BlockSpec(memory_space=pltpu.MemorySpace.VMEM)

    def _call_gridless(x, w_stacked, b_stacked):
        batch = x.shape[0]
        return pl.pallas_call(
            kernel,
            out_shape=jax.ShapeDtypeStruct((batch, 2 * LANE), jnp.float32),
            in_specs=[vmem, vmem, vmem],
            out_specs=vmem,
        )(x, w_stacked, b_stacked)

    def _call_batch_grid(x, w_stacked, b_stacked):
        batch = x.shape[0]
        return pl.pallas_call(
            kernel,
            out_shape=jax.ShapeDtypeStruct((batch, 2 * LANE), jnp.float32),
            grid_spec=pltpu.PrefetchScalarGridSpec(
                num_scalar_prefetch=0,
                grid=(batch // block_rows,),
                in_specs=[
                    pl.BlockSpec((block_rows, in_feats), lambda i: (i, 0)),
                    # Constant index_maps: weight/bias slabs stay VMEM-resident, no re-DMA.
                    pl.BlockSpec((n_layers, kpad, LANE), lambda i: (0, 0, 0)),
                    pl.BlockSpec((n_layers, 1, LANE), lambda i: (0, 0, 0)),
                ],
                out_specs=pl.BlockSpec((block_rows, 2 * LANE), lambda i: (i, 0)),
            ),
            compiler_params=pltpu.CompilerParams(
                dimension_semantics=("parallel",)),   # shards across v7x's 2 TensorCores
        )(x, w_stacked, b_stacked)

    def forward_padded(x, w_stacked, b_stacked):
        """Returns the lane-dense (B, 256) slab: encoded in [:128), reconstruction in [128:)."""
        batch = x.shape[0]
        if batch > block_rows and batch % block_rows == 0:
            return _call_batch_grid(x, w_stacked, b_stacked)
        return _call_gridless(x, w_stacked, b_stacked)

    def forward(x, w_stacked, b_stacked):
        # Slicing here costs two extra tiny device ops per call; prefer forward_padded()
        # and slice at the final consumer when latency matters.
        out = forward_padded(x, w_stacked, b_stacked)
        return out[:, :2], out[:, LANE:LANE + in_feats]

    return jax.jit(forward), jax.jit(forward_padded), pack_params, dims, enc_idx


def _init_params(key, dims):
    """Deterministic PyTorch-style uniform(-1/sqrt(in), 1/sqrt(in)) init."""
    weights, biases = [], []
    for (fan_in, fan_out) in dims:
        key, kw, kb = jax.random.split(key, 3)
        bound = 1.0 / (fan_in ** 0.5)
        weights.append(jax.random.uniform(kw, (fan_out, fan_in), jnp.float32,
                                          -bound, bound))
        biases.append(jax.random.uniform(kb, (fan_out,), jnp.float32,
                                         -bound, bound))
    return weights, biases


def _reference(x, weights, biases, enc_idx):
    """Pure-JAX reference of the PyTorch forward (ReLU after every layer incl. outputs)."""
    act = x
    enc = None
    for layer, (w, b) in enumerate(zip(weights, biases)):
        act = jnp.maximum(act @ w.T + b, 0.0)
        if layer == enc_idx:
            enc = act
    return enc, act


if __name__ == "__main__":
    INPUT_SHAPE = 32   # kwargs['input_shape'] -> layers 32->16->8->4->2->4->8->16->32
    BATCH = 8

    forward, forward_padded, pack_params, dims, enc_idx = make_autoencoder(INPUT_SHAPE)

    key = jax.random.PRNGKey(0)
    key, kx, kp, kxl = jax.random.split(key, 4)
    x = jax.random.normal(kx, (BATCH, INPUT_SHAPE), dtype=jnp.float32)
    weights, biases = _init_params(kp, dims)

    # One-time packing at init (hoisted out of the per-call forward path).
    w_stacked, b_stacked = jax.block_until_ready(pack_params(weights, biases))

    # --- small-batch gridless path (the required demo) ---
    encoded, reconstructed = forward(x, w_stacked, b_stacked)
    encoded = jax.block_until_ready(encoded)
    reconstructed = jax.block_until_ready(reconstructed)

    ref_enc, ref_rec = _reference(x, weights, biases, enc_idx)
    assert encoded.shape == (BATCH, 2)
    assert reconstructed.shape == (BATCH, INPUT_SHAPE)
    assert jnp.allclose(encoded, ref_enc, atol=1e-5, rtol=1e-5)
    assert jnp.allclose(reconstructed, ref_rec, atol=1e-5, rtol=1e-5)

    # --- large-batch grid path (batch sharded across TensorCores, weights VMEM-resident) ---
    BIG = 512
    x_big = jax.random.normal(kxl, (BIG, INPUT_SHAPE), dtype=jnp.float32)
    slab = jax.block_until_ready(forward_padded(x_big, w_stacked, b_stacked))
    ref_enc_b, ref_rec_b = _reference(x_big, weights, biases, enc_idx)
    assert slab.shape == (BIG, 2 * LANE)
    assert jnp.allclose(slab[:, :2], ref_enc_b, atol=1e-5, rtol=1e-5)
    assert jnp.allclose(slab[:, LANE:LANE + INPUT_SHAPE], ref_rec_b, atol=1e-5, rtol=1e-5)

    print("KERNEL_OK")
</pallas_src>

<mosaic_0001>
module attributes {stable_mosaic.version = 11 : i64} {
  func.func @kernel(%arg0: memref<8x32xf32, #tpu.memory_space<vmem>>, %arg1: memref<8x128x128xf32, #tpu.memory_space<vmem>>, %arg2: memref<8x1x128xf32, #tpu.memory_space<vmem>>, %arg3: memref<8x256xf32, #tpu.memory_space<vmem>>) attributes {dimension_semantics = [], scalar_prefetch = 0 : i64, scratch_operands = 0 : i64, tpu.core_type = #tpu.core_type<tc>} {
    %c0 = arith.constant 0 : index
    %c0_0 = arith.constant 0 : index
    %0 = vector.load %arg0[%c0, %c0_0] : memref<8x32xf32, #tpu.memory_space<vmem>>, vector<8x32xf32>
    %c0_1 = arith.constant 0 : index
    %c0_2 = arith.constant 0 : index
    %c0_3 = arith.constant 0 : index
    %1 = vector.load %arg1[%c0_1, %c0_2, %c0_3] : memref<8x128x128xf32, #tpu.memory_space<vmem>>, vector<1x128x128xf32>
    %2 = vector.shape_cast %1 : vector<1x128x128xf32> to vector<128x128xf32>
    %3 = vector.extract_strided_slice %2 {offsets = [0, 0], sizes = [32, 128], strides = [1, 1]} : vector<128x128xf32> to vector<32x128xf32>
    %cst = arith.constant dense<0.000000e+00> : vector<8x128xf32>
    %4 = tpu.matmul %0, %3, %cst {dimension_numbers = #tpu.dot_dimension_numbers<[1], [0], [0], [1], [0, 0, 1, 1], [], []>, precision = #tpu.contract_precision<fp32>} : vector<8x32xf32>, vector<32x128xf32>, vector<8x128xf32> -> vector<8x128xf32>
    %c0_4 = arith.constant 0 : index
    %c0_5 = arith.constant 0 : index
    %c0_6 = arith.constant 0 : index
    %5 = vector.load %arg2[%c0_4, %c0_5, %c0_6] : memref<8x1x128xf32, #tpu.memory_space<vmem>>, vector<1x1x128xf32>
    %6 = vector.shape_cast %5 : vector<1x1x128xf32> to vector<1x128xf32>
    %7 = vector.broadcast %6 : vector<1x128xf32> to vector<8x128xf32>
    %8 = arith.addf %4, %7 : vector<8x128xf32>
    %cst_7 = arith.constant 0.000000e+00 : f32
    %9 = vector.broadcast %cst_7 : f32 to vector<8x128xf32>
    %10 = arith.maximumf %8, %9 : vector<8x128xf32>
    %c1 = arith.constant 1 : index
    %c0_8 = arith.constant 0 : index
    %c0_9 = arith.constant 0 : index
    %11 = vector.load %arg1[%c1, %c0_8, %c0_9] : memref<8x128x128xf32, #tpu.memory_space<vmem>>, vector<1x128x128xf32>
    %12 = vector.shape_cast %11 : vector<1x128x128xf32> to vector<128x128xf32>
    %cst_10 = arith.constant dense<0.000000e+00> : vector<8x128xf32>
    %13 = tpu.matmul %10, %12, %cst_10 {dimension_numbers = #tpu.dot_dimension_numbers<[1], [0], [0], [1], [0, 0, 1, 1], [], []>, precision = #tpu.contract_precision<fp32>} : vector<8x128xf32>, vector<128x128xf32>, vector<8x128xf32> -> vector<8x128xf32>
    %c1_11 = arith.constant 1 : index
    %c0_12 = arith.constant 0 : index
    %c0_13 = arith.constant 0 : index
    %14 = vector.load %arg2[%c1_11, %c0_12, %c0_13] : memref<8x1x128xf32, #tpu.memory_space<vmem>>, vector<1x1x128xf32>
    %15 = vector.shape_cast %14 : vector<1x1x128xf32> to vector<1x128xf32>
    %16 = vector.broadcast %15 : vector<1x128xf32> to vector<8x128xf32>
    %17 = arith.addf %13, %16 : vector<8x128xf32>
    %cst_14 = arith.constant 0.000000e+00 : f32
    %18 = vector.broadcast %cst_14 : f32 to vector<8x128xf32>
    %19 = arith.maximumf %17, %18 : vector<8x128xf32>
    %c2 = arith.constant 2 : index
    %c0_15 = arith.constant 0 : index
    %c0_16 = arith.constant 0 : index
    %20 = vector.load %arg1[%c2, %c0_15, %c0_16] : memref<8x128x128xf32, #tpu.memory_space<vmem>>, vector<1x128x128xf32>
    %21 = vector.shape_cast %20 : vector<1x128x128xf32> to vector<128x128xf32>
    %cst_17 = arith.constant dense<0.000000e+00> : vector<8x128xf32>
    %22 = tpu.matmul %19, %21, %cst_17 {dimension_numbers = #tpu.dot_dimension_numbers<[1], [0], [0], [1], [0, 0, 1, 1], [], []>, precision = #tpu.contract_precision<fp32>} : vector<8x128xf32>, vector<128x128xf32>, vector<8x128xf32> -> vector<8x128xf32>
    %c2_18 = arith.constant 2 : index
    %c0_19 = arith.constant 0 : index
    %c0_20 = arith.constant 0 : index
    %23 = vector.load %arg2[%c2_18, %c0_19, %c0_20] : memref<8x1x128xf32, #tpu.memory_space<vmem>>, vector<1x1x128xf32>
    %24 = vector.shape_cast %23 : vector<1x1x128xf32> to vector<1x128xf32>
    %25 = vector.broadcast %24 : vector<1x128xf32> to vector<8x128xf32>
    %26 = arith.addf %22, %25 : vector<8x128xf32>
    %cst_21 = arith.constant 0.000000e+00 : f32
    %27 = vector.broadcast %cst_21 : f32 to vector<8x128xf32>
    %28 = arith.maximumf %26, %27 : vector<8x128xf32>
    %c3 = arith.constant 3 : index
    %c0_22 = arith.constant 0 : index
    %c0_23 = arith.constant 0 : index
    %29 = vector.load %arg1[%c3, %c0_22, %c0_23] : memref<8x128x128xf32, #tpu.memory_space<vmem>>, vector<1x128x128xf32>
    %30 = vector.shape_cast %29 : vector<1x128x128xf32> to vector<128x128xf32>
    %cst_24 = arith.constant dense<0.000000e+00> : vector<8x128xf32>
    %31 = tpu.matmul %28, %30, %cst_24 {dimension_numbers = #tpu.dot_dimension_numbers<[1], [0], [0], [1], [0, 0, 1, 1], [], []>, precision = #tpu.contract_precision<fp32>} : vector<8x128xf32>, vector<128x128xf32>, vector<8x128xf32> -> vector<8x128xf32>
    %c3_25 = arith.constant 3 : index
    %c0_26 = arith.constant 0 : index
    %c0_27 = arith.constant 0 : index
    %32 = vector.load %arg2[%c3_25, %c0_26, %c0_27] : memref<8x1x128xf32, #tpu.memory_space<vmem>>, vector<1x1x128xf32>
    %33 = vector.shape_cast %32 : vector<1x1x128xf32> to vector<1x128xf32>
    %34 = vector.broadcast %33 : vector<1x128xf32> to vector<8x128xf32>
    %35 = arith.addf %31, %34 : vector<8x128xf32>
    %cst_28 = arith.constant 0.000000e+00 : f32
    %36 = vector.broadcast %cst_28 : f32 to vector<8x128xf32>
    %37 = arith.maximumf %35, %36 : vector<8x128xf32>
    %c0_29 = arith.constant 0 : index
    %c0_30 = arith.constant 0 : index
    %38 = vector.load %arg3[%c0_29, %c0_30] : memref<8x256xf32, #tpu.memory_space<vmem>>, vector<8x128xf32>
    tpu.vector_store %arg3[%c0_29, %c0_30], %37 {strides = array<i32>} : memref<8x256xf32, #tpu.memory_space<vmem>>, vector<8x128xf32>,
    %c4 = arith.constant 4 : index
    %c0_31 = arith.constant 0 : index
    %c0_32 = arith.constant 0 : index
    %39 = vector.load %arg1[%c4, %c0_31, %c0_32] : memref<8x128x128xf32, #tpu.memory_space<vmem>>, vector<1x128x128xf32>
    %40 = vector.shape_cast %39 : vector<1x128x128xf32> to vector<128x128xf32>
    %cst_33 = arith.constant dense<0.000000e+00> : vector<8x128xf32>
    %41 = tpu.matmul %37, %40, %cst_33 {dimension_numbers = #tpu.dot_dimension_numbers<[1], [0], [0], [1], [0, 0, 1, 1], [], []>, precision = #tpu.contract_precision<fp32>} : vector<8x128xf32>, vector<128x128xf32>, vector<8x128xf32> -> vector<8x128xf32>
    %c4_34 = arith.constant 4 : index
    %c0_35 = arith.constant 0 : index
    %c0_36 = arith.constant 0 : index
    %42 = vector.load %arg2[%c4_34, %c0_35, %c0_36] : memref<8x1x128xf32, #tpu.memory_space<vmem>>, vector<1x1x128xf32>
    %43 = vector.shape_cast %42 : vector<1x1x128xf32> to vector<1x128xf32>
    %44 = vector.broadcast %43 : vector<1x128xf32> to vector<8x128xf32>
    %45 = arith.addf %41, %44 : vector<8x128xf32>
    %cst_37 = arith.constant 0.000000e+00 : f32
    %46 = vector.broadcast %cst_37 : f32 to vector<8x128xf32>
    %47 = arith.maximumf %45, %46 : vector<8x128xf32>
    %c5 = arith.constant 5 : index
    %c0_38 = arith.constant 0 : index
    %c0_39 = arith.constant 0 : index
    %48 = vector.load %arg1[%c5, %c0_38, %c0_39] : memref<8x128x128xf32, #tpu.memory_space<vmem>>, vector<1x128x128xf32>
    %49 = vector.shape_cast %48 : vector<1x128x128xf32> to vector<128x128xf32>
    %cst_40 = arith.constant dense<0.000000e+00> : vector<8x128xf32>
    %50 = tpu.matmul %47, %49, %cst_40 {dimension_numbers = #tpu.dot_dimension_numbers<[1], [0], [0], [1], [0, 0, 1, 1], [], []>, precision = #tpu.contract_precision<fp32>} : vector<8x128xf32>, vector<128x128xf32>, vector<8x128xf32> -> vector<8x128xf32>
    %c5_41 = arith.constant 5 : index
    %c0_42 = arith.constant 0 : index
    %c0_43 = arith.constant 0 : index
    %51 = vector.load %arg2[%c5_41, %c0_42, %c0_43] : memref<8x1x128xf32, #tpu.memory_space<vmem>>, vector<1x1x128xf32>
    %52 = vector.shape_cast %51 : vector<1x1x128xf32> to vector<1x128xf32>
    %53 = vector.broadcast %52 : vector<1x128xf32> to vector<8x128xf32>
    %54 = arith.addf %50, %53 : vector<8x128xf32>
    %cst_44 = arith.constant 0.000000e+00 : f32
    %55 = vector.broadcast %cst_44 : f32 to vector<8x128xf32>
    %56 = arith.maximumf %54, %55 : vector<8x128xf32>
    %c6 = arith.constant 6 : index
    %c0_45 = arith.constant 0 : index
    %c0_46 = arith.constant 0 : index
    %57 = vector.load %arg1[%c6, %c0_45, %c0_46] : memref<8x128x128xf32, #tpu.memory_space<vmem>>, vector<1x128x128xf32>
    %58 = vector.shape_cast %57 : vector<1x128x128xf32> to vector<128x128xf32>
    %cst_47 = arith.constant dense<0.000000e+00> : vector<8x128xf32>
    %59 = tpu.matmul %56, %58, %cst_47 {dimension_numbers = #tpu.dot_dimension_numbers<[1], [0], [0], [1], [0, 0, 1, 1], [], []>, precision = #tpu.contract_precision<fp32>} : vector<8x128xf32>, vector<128x128xf32>, vector<8x128xf32> -> vector<8x128xf32>
    %c6_48 = arith.constant 6 : index
    %c0_49 = arith.constant 0 : index
    %c0_50 = arith.constant 0 : index
    %60 = vector.load %arg2[%c6_48, %c0_49, %c0_50] : memref<8x1x128xf32, #tpu.memory_space<vmem>>, vector<1x1x128xf32>
    %61 = vector.shape_cast %60 : vector<1x1x128xf32> to vector<1x128xf32>
    %62 = vector.broadcast %61 : vector<1x128xf32> to vector<8x128xf32>
    %63 = arith.addf %59, %62 : vector<8x128xf32>
    %cst_51 = arith.constant 0.000000e+00 : f32
    %64 = vector.broadcast %cst_51 : f32 to vector<8x128xf32>
    %65 = arith.maximumf %63, %64 : vector<8x128xf32>
    %c7 = arith.constant 7 : index
    %c0_52 = arith.constant 0 : index
    %c0_53 = arith.constant 0 : index
    %66 = vector.load %arg1[%c7, %c0_52, %c0_53] : memref<8x128x128xf32, #tpu.memory_space<vmem>>, vector<1x128x128xf32>
    %67 = vector.shape_cast %66 : vector<1x128x128xf32> to vector<128x128xf32>
    %cst_54 = arith.constant dense<0.000000e+00> : vector<8x128xf32>
    %68 = tpu.matmul %65, %67, %cst_54 {dimension_numbers = #tpu.dot_dimension_numbers<[1], [0], [0], [1], [0, 0, 1, 1], [], []>, precision = #tpu.contract_precision<fp32>} : vector<8x128xf32>, vector<128x128xf32>, vector<8x128xf32> -> vector<8x128xf32>
    %c7_55 = arith.constant 7 : index
    %c0_56 = arith.constant 0 : index
    %c0_57 = arith.constant 0 : index
    %69 = vector.load %arg2[%c7_55, %c0_56, %c0_57] : memref<8x1x128xf32, #tpu.memory_space<vmem>>, vector<1x1x128xf32>
    %70 = vector.shape_cast %69 : vector<1x1x128xf32> to vector<1x128xf32>
    %71 = vector.broadcast %70 : vector<1x128xf32> to vector<8x128xf32>
    %72 = arith.addf %68, %71 : vector<8x128xf32>
    %cst_58 = arith.constant 0.000000e+00 : f32
    %73 = vector.broadcast %cst_58 : f32 to vector<8x128xf32>
    %74 = arith.maximumf %72, %73 : vector<8x128xf32>
    %c0_59 = arith.constant 0 : index
    %c128 = arith.constant 128 : index
    %75 = vector.load %arg3[%c0_59, %c128] : memref<8x256xf32, #tpu.memory_space<vmem>>, vector<8x128xf32>
    tpu.vector_store %arg3[%c0_59, %c128], %74 {strides = array<i32>} : memref<8x256xf32, #tpu.memory_space<vmem>>, vector<8x128xf32>,
    return
  }
}

</mosaic_0001>

<llo_original>
// kernel: forward.1
$region0: #{forward.1}
  #allocation0 [shape = 'u32[]', space=smem, size = 0x4, offset = 0x4, fixed_abs, tag = 'smem constant byte address 0x4 - core index']
  #allocation1 [shape = 'u32[144,128]{1,0:T(1,128)}', space=vmem, size = 0x12000, scoped, tag = 'internal scratch']
  %s0 = inlined_call_operand.hbm [shape: f32[8,32], index: 0, kind: input, shape index: {}]
  %s1 = inlined_call_operand.hbm [shape: f32[8,128,128], index: 1, kind: input, shape index: {}]
  %s2 = inlined_call_operand.hbm [shape: f32[8,1,128], index: 2, kind: input, shape index: {}]
  %s3 = inlined_call_operand.vmem [shape: f32[8,256], index: 3, kind: output, shape index: {}]
  %s4 = sld [smem:[#allocation0]]
  $region34: #{forward.1} parent=0
    _
  %s6 = ssub.s32 1, %s4
  %s7 = scalar_select 0, %s6, %s4
  $region1: #{forward.1} parent=0
    #allocation2 [shape = 'u8[4096]{0}', space=vmem, size = 0x1000, scoped, tag = 'input window, operand 0, single buffered']
    #allocation3 [shape = 's32[1]{0}', space=sflag, size = 0x4, scoped, tag = 'scoped memory for forward.1']
    #allocation4 [shape = 'u8[524288]{0}', space=vmem, size = 0x80000, scoped, tag = 'input window, operand 1, single buffered']
    #allocation5 [shape = 's32[1]{0}', space=sflag, size = 0x4, scoped, tag = 'scoped memory for forward.1']
    #allocation6 [shape = 'u8[4096]{0}', space=vmem, size = 0x1000, scoped, tag = 'input window, operand 2, single buffered']
    %8 = vsyncpa [#allocation3], 0
    %9 = vsyncpa [#allocation5], 0
    // Predicated region
    $region2: #{forward.1} parent=1 // pred_check
      _
    $region3: #{forward.1} parent=1 // pred_check_branch
      %11 = sbr.rel (0) target = $region5
    $region4: #{forward.1} parent=1 // pred_region
      %s13 = ssub.s32 128, 128
      %14 = vsyncadd [#allocation3], %s13
      %s16 = sshll.u32 [#allocation2], 4
      %s17 = int_to_ptr.vmem [resolvable:$true] %s16
      %19 = dma.hbm_to_vmem [thread:$0]  %s0, 128, %s17, [#allocation3]
    $region5: #{forward.1} parent=1 // pred_fallthru
      _
    // Predicated region
    $region6: #{forward.1} parent=1 // pred_check
      _
    $region7: #{forward.1} parent=1 // pred_check_branch
      %21 = sbr.rel (0) target = $region9
    $region8: #{forward.1} parent=1 // pred_region
      %s23 = ssub.s32 16384, 16384
      %24 = vsyncadd [#allocation5], %s23
      %s25 = sshll.u32 [#allocation4], 4
      %s26 = int_to_ptr.vmem [resolvable:$true] %s25
      %31 = dma.hbm_to_vmem [thread:$0]  %s1, 16384, %s26, [#allocation5], 128, 128, 8
    $region9: #{forward.1} parent=1 // pred_fallthru
      _
    // Predicated region
    $region10: #{forward.1} parent=1 // pred_check
      _
    $region11: #{forward.1} parent=1 // pred_check_branch
      %33 = sbr.rel (0) target = $region13
    $region12: #{forward.1} parent=1 // pred_region
      %s35 = ssub.s32 128, 128
      %36 = vsyncadd [#allocation5], %s35
      %s37 = sshll.u32 [#allocation6], 4
      %s38 = int_to_ptr.vmem [resolvable:$true] %s37
      %43 = dma.hbm_to_vmem [thread:$0]  %s2, 128, %s38, [#allocation5], 16, 16, 1
    $region13: #{forward.1} parent=1 // pred_fallthru
      _
    // Predicated region
    $region14: #{forward.1} parent=1 // pred_check
      _
    $region15: #{forward.1} parent=1 // pred_check_branch
      %45 = sbr.rel (0) target = $region17
    $region16: #{forward.1} parent=1 // pred_region
      %46 = dma.done [#allocation3], 128
    $region17: #{forward.1} parent=1 // pred_fallthru
      _
    // Predicated region
    $region18: #{forward.1} parent=1 // pred_check
      _
    $region19: #{forward.1} parent=1 // pred_check_branch
      %48 = sbr.rel (0) target = $region21
    $region20: #{forward.1} parent=1 // pred_region
      %49 = dma.done [#allocation5], 16384
    $region21: #{forward.1} parent=1 // pred_fallthru
      _
    // Predicated region
    $region22: #{forward.1} parent=1 // pred_check
      _
    $region23: #{forward.1} parent=1 // pred_check_branch
      %51 = sbr.rel (0) target = $region25
    $region24: #{forward.1} parent=1 // pred_region
      %52 = dma.done [#allocation5], 128
    $region25: #{forward.1} parent=1 // pred_fallthru
      _
    %v53 = vld [vmem:[#allocation2] sm:$0xff]
    %v54 = vld [vmem:[#allocation4] sm:$0xff]
    %v55 = vld [vmem:[#allocation4 + $0x8] sm:$0xff]
    %v56 = vld [vmem:[#allocation4 + $0x10] sm:$0xff]
    %v57 = vld [vmem:[#allocation4 + $0x18] sm:$0xff]
    %v58 = vld [vmem:[#allocation6] sm:$0x1]
    %v60 = vlaneseq
    %v61 = vshrl.u32 %v60, 7
    %v62 = vsub.s32 0, %v61
    %v63 = vrot.slane %v58, %v62
    %vm65 = vcmask 261120
    %v67 = vsel %vm65, %v53, 0
    %69 = vmatprep.subr.mxu0 0.0
    %v70 = vand.u32 %v54, 4294901760
    %71 = vmatpush1.msra.mxu0 %v70
    %72 = vmatprep.subr.mxu0 0.0
    %v73 = vand.u32 %v55, 4294901760
    %74 = vmatpush1.msra.mxu0 %v73
    %75 = vmatprep.subr.mxu0 0.0
    %v76 = vand.u32 %v56, 4294901760
    %77 = vmatpush1.msra.mxu0 %v76
    %78 = vmatprep.subr.mxu0 0.0
    %v79 = vand.u32 %v57, 4294901760
    %80 = vmatpush1.msra.mxu0 %v79
    %81 = vmatprep.subr.mxu0 0.0
    %82 = vmatpush1.msra.mxu0 0.0
    %83 = vmatprep.subr.mxu0 0.0
    %84 = vmatpush1.msra.mxu0 0.0
    %85 = vmatprep.subr.mxu0 0.0
    %86 = vmatpush1.msra.mxu0 0.0
    %87 = vmatprep.subr.mxu0 0.0
    %88 = vmatpush1.msra.mxu0 0.0
    %89 = vmatprep.subr.mxu0 0.0
    %90 = vmatpush1.msra.mxu0 0.0
    %91 = vmatprep.subr.mxu0 0.0
    %92 = vmatpush1.msra.mxu0 0.0
    %93 = vmatprep.subr.mxu0 0.0
    %94 = vmatpush1.msra.mxu0 0.0
    %95 = vmatprep.subr.mxu0 0.0
    %96 = vmatpush1.msra.mxu0 0.0
    %97 = vmatprep.subr.mxu0 0.0
    %98 = vmatpush1.msra.mxu0 0.0
    %99 = vmatprep.subr.mxu0 0.0
    %100 = vmatpush1.msra.mxu0 0.0
    %101 = vmatprep.subr.mxu0 0.0
    %102 = vmatpush1.msra.mxu0 0.0
    %103 = vmatprep.subr.mxu0 0.0
    %104 = vmatpush1.msra.mxu0 0.0
    %105 = vmatprep.subr.mxu0 0.0
    %106 = vmatpush1.msra.mxu0 0.0
    %107 = vmatprep.subr.mxu0 0.0
    %108 = vmatpush1.msra.mxu0 0.0
    %109 = vmatprep.subr.mxu0 0.0
    %110 = vmatpush1.msra.mxu0 0.0
    %111 = vmatprep.subr.mxu0 0.0
    %112 = vmatpush1.msra.mxu0 0.0
    %113 = vmatprep.subr.mxu0 0.0
    %114 = vmatpush1.msra.mxu0 0.0
    %115 = vmatprep.subr.mxu0 0.0
    %116 = vmatpush1.msra.mxu0 0.0
    %117 = vmatprep.subr.mxu0 0.0
    %118 = vmatpush1.msra.mxu0 0.0
    %119 = vmatprep.subr.mxu0 0.0
    %120 = vmatpush1.msra.mxu0 0.0
    %121 = vmatprep.subr.mxu0 0.0
    %122 = vmatpush1.msra.mxu0 0.0
    %123 = vmatprep.subr.mxu0 0.0
    %124 = vmatpush1.msra.mxu0 0.0
    %125 = vmatprep.subr.mxu0 0.0
    %126 = vmatpush1.msra.mxu0 0.0
    %127 = vmatprep.subr.mxu0 0.0
    %128 = vmatpush1.msra.mxu0 0.0
    %129 = vmatprep.subr.mxu0 0.0
    %130 = vmatpush1.msra.mxu0 0.0
    %131 = vmatprep.subr.mxu0 0.0
    %132 = vmatpush1.msra.mxu0 0.0
    %133 = vmatprep.subr.mxu0 0.0
    %134 = vmatpush1.msra.mxu0 0.0
    %135 = vmatprep.subr.mxu0 0.0
    %136 = vmatpush1.msra.mxu0 0.0
    %137 = vmatprep.mubr.f32.mxu0 0.0
    %v138 = vand.u32 %v67, 4294901760
    %v139 = vsub.f32 %v67, %v138
    %v140 = vand.u32 %v139, 4294901760
    %v141 = vsub.f32 %v139, %v140
    %v142 = vand.u32 %v141, 4294901760
    %143 = vmatmul.mubr.f32.gmra.mrb[0].mxu0 %v142
    %v144 = vpop.f32.mrb[0].mxu0
    %v145 = vadd.f32 %v63, %v144
    %v146 = vpop.f32.mrb[0].mxu0
    %147 = vdwg.mxu0
    %148 = vmatprep.subr.mxu0 0.0
    %v149 = vand.u32 %v54, 4294901760
    %v150 = vsub.f32 %v54, %v149
    %v151 = vand.u32 %v150, 4294901760
    %v152 = vsub.f32 %v150, %v151
    %v153 = vand.u32 %v152, 4294901760
    %154 = vmatpush1.msra.mxu0 %v153
    %155 = vmatprep.subr.mxu0 0.0
    %v156 = vand.u32 %v55, 4294901760
    %v157 = vsub.f32 %v55, %v156
    %v158 = vand.u32 %v157, 4294901760
    %v159 = vsub.f32 %v157, %v158
    %v160 = vand.u32 %v159, 4294901760
    %161 = vmatpush1.msra.mxu0 %v160
    %162 = vmatprep.subr.mxu0 0.0
    %v163 = vand.u32 %v56, 4294901760
    %v164 = vsub.f32 %v56, %v163
    %v165 = vand.u32 %v164, 4294901760
    %v166 = vsub.f32 %v164, %v165
    %v167 = vand.u32 %v166, 4294901760
    %168 = vmatpush1.msra.mxu0 %v167
    %169 = vmatprep.subr.mxu0 0.0
    %v170 = vand.u32 %v57, 4294901760
    %v171 = vsub.f32 %v57, %v170
    %v172 = vand.u32 %v171, 4294901760
    %v173 = vsub.f32 %v171, %v172
    %v174 = vand.u32 %v173, 4294901760
    %175 = vmatpush1.msra.mxu0 %v174
    %176 = vmatprep.subr.mxu0 0.0
    %177 = vmatpush1.msra.mxu0 0.0
    %178 = vmatprep.subr.mxu0 0.0
    %179 = vmatpush1.msra.mxu0 0.0
    %180 = vmatprep.subr.mxu0 0.0
    %181 = vmatpush1.msra.mxu0 0.0
    %182 = vmatprep.subr.mxu0 0.0
    %183 = vmatpush1.msra.mxu0 0.0
    %184 = vmatprep.subr.mxu0 0.0
    %185 = vmatpush1.msra.mxu0 0.0
    %186 = vmatprep.subr.mxu0 0.0
    %187 = vmatpush1.msra.mxu0 0.0
    %188 = vmatprep.subr.mxu0 0.0
    %189 = vmatpush1.msra.mxu0 0.0
    %190 = vmatprep.subr.mxu0 0.0
    %191 = vmatpush1.msra.mxu0 0.0
    %192 = vmatprep.subr.mxu0 0.0
    %193 = vmatpush1.msra.mxu0 0.0
    %194 = vmatprep.subr.mxu0 0.0
    %195 = vmatpush1.msra.mxu0 0.0
    %196 = vmatprep.subr.mxu0 0.0
    %197 = vmatpush1.msra.mxu0 0.0
    %198 = vmatprep.subr.mxu0 0.0
    %199 = vmatpush1.msra.mxu0 0.0
    %200 = vmatprep.subr.mxu0 0.0
    %201 = vmatpush1.msra.mxu0 0.0
    %202 = vmatprep.subr.mxu0 0.0
    %203 = vmatpush1.msra.mxu0 0.0
    %204 = vmatprep.subr.mxu0 0.0
    %205 = vmatpush1.msra.mxu0 0.0
    %206 = vmatprep.subr.mxu0 0.0
    %207 = vmatpush1.msra.mxu0 0.0
    %208 = vmatprep.subr.mxu0 0.0
    %209 = vmatpush1.msra.mxu0 0.0
    %210 = vmatprep.subr.mxu0 0.0
    %211 = vmatpush1.msra.mxu0 0.0
    %212 = vmatprep.subr.mxu0 0.0
    %213 = vmatpush1.msra.mxu0 0.0
    %214 = vmatprep.subr.mxu0 0.0
    %215 = vmatpush1.msra.mxu0 0.0
    %216 = vmatprep.subr.mxu0 0.0
    %217 = vmatpush1.msra.mxu0 0.0
    %218 = vmatprep.subr.mxu0 0.0
    %219 = vmatpush1.msra.mxu0 0.0
    %220 = vmatprep.subr.mxu0 0.0
    %221 = vmatpush1.msra.mxu0 0.0
    %222 = vmatprep.subr.mxu0 0.0
    %223 = vmatpush1.msra.mxu0 0.0
    %224 = vmatprep.subr.mxu0 0.0
    %225 = vmatpush1.msra.mxu0 0.0
    %226 = vmatprep.subr.mxu0 0.0
    %227 = vmatpush1.msra.mxu0 0.0
    %228 = vmatprep.subr.mxu0 0.0
    %229 = vmatpush1.msra.mxu0 0.0
    %230 = vmatprep.subr.mxu0 0.0
    %231 = vmatpush1.msra.mxu0 0.0
    %232 = vmatprep.mubr.f32.mxu0 0.0
    %v233 = vand.u32 %v67, 4294901760
    %234 = vmatmul.mubr.f32.gmra.mrb[0].mxu0 %v233
    %v235 = vpop.f32.mrb[0].mxu0
    %v236 = vadd.f32 %v145, %v235
    %v237 = vpop.f32.mrb[0].mxu0
    %238 = vdwg.mxu0
    %239 = vmatprep.subr.mxu0 0.0
    %v240 = vand.u32 %v54, 4294901760
    %v241 = vsub.f32 %v54, %v240
    %242 = vmatpush1.msra.mxu0 %v241
    %243 = vmatprep.subr.mxu0 0.0
    %v244 = vand.u32 %v55, 4294901760
    %v245 = vsub.f32 %v55, %v244
    %246 = vmatpush1.msra.mxu0 %v245
    %247 = vmatprep.subr.mxu0 0.0
    %v248 = vand.u32 %v56, 4294901760
    %v249 = vsub.f32 %v56, %v248
    %250 = vmatpush1.msra.mxu0 %v249
    %251 = vmatprep.subr.mxu0 0.0
    %v252 = vand.u32 %v57, 4294901760
    %v253 = vsub.f32 %v57, %v252
    %254 = vmatpush1.msra.mxu0 %v253
    %255 = vmatprep.subr.mxu0 0.0
    %256 = vmatpush1.msra.mxu0 0.0
    %257 = vmatprep.subr.mxu0 0.0
    %258 = vmatpush1.msra.mxu0 0.0
    %259 = vmatprep.subr.mxu0 0.0
    %260 = vmatpush1.msra.mxu0 0.0
    %261 = vmatprep.subr.mxu0 0.0
    %262 = vmatpush1.msra.mxu0 0.0
    %263 = vmatprep.subr.mxu0 0.0
    %264 = vmatpush1.msra.mxu0 0.0
    %265 = vmatprep.subr.mxu0 0.0
    %266 = vmatpush1.msra.mxu0 0.0
    %267 = vmatprep.subr.mxu0 0.0
    %268 = vmatpush1.msra.mxu0 0.0
    %269 = vmatprep.subr.mxu0 0.0
    %270 = vmatpush1.msra.mxu0 0.0
    %271 = vmatprep.subr.mxu0 0.0
    %272 = vmatpush1.msra.mxu0 0.0
    %273 = vmatprep.subr.mxu0 0.0
    %274 = vmatpush1.msra.mxu0 0.0
    %275 = vmatprep.subr.mxu0 0.0
    %276 = vmatpush1.msra.mxu0 0.0
    %277 = vmatprep.subr.mxu0 0.0
    %278 = vmatpush1.msra.mxu0 0.0
    %279 = vmatprep.subr.mxu0 0.0
    %280 = vmatpush1.msra.mxu0 0.0
    %281 = vmatprep.subr.mxu0 0.0
    %282 = vmatpush1.msra.mxu0 0.0
    %283 = vmatprep.subr.mxu0 0.0
    %284 = vmatpush1.msra.mxu0 0.0
    %285 = vmatprep.subr.mxu0 0.0
    %286 = vmatpush1.msra.mxu0 0.0
    %287 = vmatprep.subr.mxu0 0.0
    %288 = vmatpush1.msra.mxu0 0.0
    %289 = vmatprep.subr.mxu0 0.0
    %290 = vmatpush1.msra.mxu0 0.0
    %291 = vmatprep.subr.mxu0 0.0
    %292 = vmatpush1.msra.mxu0 0.0
    %293 = vmatprep.subr.mxu0 0.0
    %294 = vmatpush1.msra.mxu0 0.0
    %295 = vmatprep.subr.mxu0 0.0
    %296 = vmatpush1.msra.mxu0 0.0
    %297 = vmatprep.subr.mxu0 0.0
    %298 = vmatpush1.msra.mxu0 0.0
    %299 = vmatprep.subr.mxu0 0.0
    %300 = vmatpush1.msra.mxu0 0.0
    %301 = vmatprep.subr.mxu0 0.0
    %302 = vmatpush1.msra.mxu0 0.0
    %303 = vmatprep.subr.mxu0 0.0
    %304 = vmatpush1.msra.mxu0 0.0
    %305 = vmatprep.subr.mxu0 0.0
    %306 = vmatpush1.msra.mxu0 0.0
    %307 = vmatprep.subr.mxu0 0.0
    %308 = vmatpush1.msra.mxu0 0.0
    %309 = vmatprep.subr.mxu0 0.0
    %310 = vmatpush1.msra.mxu0 0.0
    %311 = vmatprep.mubr.f32.mxu0 0.0
    %v312 = vand.u32 %v67, 4294901760
    %v313 = vsub.f32 %v67, %v312
    %314 = vmatmul.mubr.f32.gmra.mrb[0].mxu0 %v313
    %v315 = vpop.f32.mrb[0].mxu0
    %v316 = vadd.f32 %v236, %v315
    %v317 = vpop.f32.mrb[0].mxu0
    %318 = vdwg.mxu0
    %319 = vmatprep.subr.mxu0 0.0
    %v320 = vand.u32 %v54, 4294901760
    %321 = vmatpush1.msra.mxu0 %v320
    %322 = vmatprep.subr.mxu0 0.0
    %v323 = vand.u32 %v55, 4294901760
    %324 = vmatpush1.msra.mxu0 %v323
    %325 = vmatprep.subr.mxu0 0.0
    %v326 = vand.u32 %v56, 4294901760
    %327 = vmatpush1.msra.mxu0 %v326
    %328 = vmatprep.subr.mxu0 0.0
    %v329 = vand.u32 %v57, 4294901760
    %330 = vmatpush1.msra.mxu0 %v329
    %331 = vmatprep.subr.mxu0 0.0
    %332 = vmatpush1.msra.mxu0 0.0
    %333 = vmatprep.subr.mxu0 0.0
    %334 = vmatpush1.msra.mxu0 0.0
    %335 = vmatprep.subr.mxu0 0.0
    %336 = vmatpush1.msra.mxu0 0.0
    %337 = vmatprep.subr.mxu0 0.0
    %338 = vmatpush1.msra.mxu0 0.0
    %339 = vmatprep.subr.mxu0 0.0
    %340 = vmatpush1.msra.mxu0 0.0
    %341 = vmatprep.subr.mxu0 0.0
    %342 = vmatpush1.msra.mxu0 0.0
    %343 = vmatprep.subr.mxu0 0.0
    %344 = vmatpush1.msra.mxu0 0.0
    %345 = vmatprep.subr.mxu0 0.0
    %346 = vmatpush1.msra.mxu0 0.0
    %347 = vmatprep.subr.mxu0 0.0
    %348 = vmatpush1.msra.mxu0 0.0
    %349 = vmatprep.subr.mxu0 0.0
    %350 = vmatpush1.msra.mxu0 0.0
    %351 = vmatprep.subr.mxu0 0.0
    %352 = vmatpush1.msra.mxu0 0.0
    %353 = vmatprep.subr.mxu0 0.0
    %354 = vmatpush1.msra.mxu0 0.0
    %355 = vmatprep.subr.mxu0 0.0
    %356 = vmatpush1.msra.mxu0 0.0
    %357 = vmatprep.subr.mxu0 0.0
    %358 = vmatpush1.msra.mxu0 0.0
    %359 = vmatprep.subr.mxu0 0.0
    %360 = vmatpush1.msra.mxu0 0.0
    %361 = vmatprep.subr.mxu0 0.0
    %362 = vmatpush1.msra.mxu0 0.0
    %363 = vmatprep.subr.mxu0 0.0
    %364 = vmatpush1.msra.mxu0 0.0
    %365 = vmatprep.subr.mxu0 0.0
    %366 = vmatpush1.msra.mxu0 0.0
    %367 = vmatprep.subr.mxu0 0.0
    %368 = vmatpush1.msra.mxu0 0.0
    %369 = vmatprep.subr.mxu0 0.0
    %370 = vmatpush1.msra.mxu0 0.0
    %371 = vmatprep.subr.mxu0 0.0
    %372 = vmatpush1.msra.mxu0 0.0
    %373 = vmatprep.subr.mxu0 0.0
    %374 = vmatpush1.msra.mxu0 0.0
    %375 = vmatprep.subr.mxu0 0.0
    %376 = vmatpush1.msra.mxu0 0.0
    %377 = vmatprep.subr.mxu0 0.0
    %378 = vmatpush1.msra.mxu0 0.0
    %379 = vmatprep.subr.mxu0 0.0
    %380 = vmatpush1.msra.mxu0 0.0
    %381 = vmatprep.subr.mxu0 0.0
    %382 = vmatpush1.msra.mxu0 0.0
    %383 = vmatprep.subr.mxu0 0.0
    %384 = vmatpush1.msra.mxu0 0.0
    %385 = vmatprep.subr.mxu0 0.0
    %386 = vmatpush1.msra.mxu0 0.0
    %387 = vmatprep.mubr.f32.mxu0 0.0
    %v388 = vand.u32 %v67, 4294901760
    %v389 = vsub.f32 %v67, %v388
    %v390 = vand.u32 %v389, 4294901760
    %391 = vmatmul.mubr.f32.gmra.mrb[0].mxu0 %v390
    %v392 = vpop.f32.mrb[0].mxu0
    %v393 = vadd.f32 %v316, %v392
    %v394 = vpop.f32.mrb[0].mxu0
    %395 = vdwg.mxu0
    %396 = vmatprep.subr.mxu0 0.0
    %v397 = vand.u32 %v54, 4294901760
    %v398 = vsub.f32 %v54, %v397
    %v399 = vand.u32 %v398, 4294901760
    %400 = vmatpush1.msra.mxu0 %v399
    %401 = vmatprep.subr.mxu0 0.0
    %v402 = vand.u32 %v55, 4294901760
    %v403 = vsub.f32 %v55, %v402
    %v404 = vand.u32 %v403, 4294901760
    %405 = vmatpush1.msra.mxu0 %v404
    %406 = vmatprep.subr.mxu0 0.0
    %v407 = vand.u32 %v56, 4294901760
    %v408 = vsub.f32 %v56, %v407
    %v409 = vand.u32 %v408, 4294901760
    %410 = vmatpush1.msra.mxu0 %v409
    %411 = vmatprep.subr.mxu0 0.0
    %v412 = vand.u32 %v57, 4294901760
    %v413 = vsub.f32 %v57, %v412
    %v414 = vand.u32 %v413, 4294901760
    %415 = vmatpush1.msra.mxu0 %v414
    %416 = vmatprep.subr.mxu0 0.0
    %417 = vmatpush1.msra.mxu0 0.0
    %418 = vmatprep.subr.mxu0 0.0
    %419 = vmatpush1.msra.mxu0 0.0
    %420 = vmatprep.subr.mxu0 0.0
    %421 = vmatpush1.msra.mxu0 0.0
    %422 = vmatprep.subr.mxu0 0.0
    %423 = vmatpush1.msra.mxu0 0.0
    %424 = vmatprep.subr.mxu0 0.0
    %425 = vmatpush1.msra.mxu0 0.0
    %426 = vmatprep.subr.mxu0 0.0
    %427 = vmatpush1.msra.mxu0 0.0
    %428 = vmatprep.subr.mxu0 0.0
    %429 = vmatpush1.msra.mxu0 0.0
    %430 = vmatprep.subr.mxu0 0.0
    %431 = vmatpush1.msra.mxu0 0.0
    %432 = vmatprep.subr.mxu0 0.0
    %433 = vmatpush1.msra.mxu0 0.0
    %434 = vmatprep.subr.mxu0 0.0
    %435 = vmatpush1.msra.mxu0 0.0
    %436 = vmatprep.subr.mxu0 0.0
    %437 = vmatpush1.msra.mxu0 0.0
    %438 = vmatprep.subr.mxu0 0.0
    %439 = vmatpush1.msra.mxu0 0.0
    %440 = vmatprep.subr.mxu0 0.0
    %441 = vmatpush1.msra.mxu0 0.0
    %442 = vmatprep.subr.mxu0 0.0
    %443 = vmatpush1.msra.mxu0 0.0
    %444 = vmatprep.subr.mxu0 0.0
    %445 = vmatpush1.msra.mxu0 0.0
    %446 = vmatprep.subr.mxu0 0.0
    %447 = vmatpush1.msra.mxu0 0.0
    %448 = vmatprep.subr.mxu0 0.0
    %449 = vmatpush1.msra.mxu0 0.0
    %450 = vmatprep.subr.mxu0 0.0
    %451 = vmatpush1.msra.mxu0 0.0
    %452 = vmatprep.subr.mxu0 0.0
    %453 = vmatpush1.msra.mxu0 0.0
    %454 = vmatprep.subr.mxu0 0.0
    %455 = vmatpush1.msra.mxu0 0.0
    %456 = vmatprep.subr.mxu0 0.0
    %457 = vmatpush1.msra.mxu0 0.0
    %458 = vmatprep.subr.mxu0 0.0
    %459 = vmatpush1.msra.mxu0 0.0
    %460 = vmatprep.subr.mxu0 0.0
    %461 = vmatpush1.msra.mxu0 0.0
    %462 = vmatprep.subr.mxu0 0.0
    %463 = vmatpush1.msra.mxu0 0.0
    %464 = vmatprep.subr.mxu0 0.0
    %465 = vmatpush1.msra.mxu0 0.0
    %466 = vmatprep.subr.mxu0 0.0
    %467 = vmatpush1.msra.mxu0 0.0
    %468 = vmatprep.subr.mxu0 0.0
    %469 = vmatpush1.msra.mxu0 0.0
    %470 = vmatprep.subr.mxu0 0.0
    %471 = vmatpush1.msra.mxu0 0.0
    %472 = vmatprep.mubr.f32.mxu0 0.0
    %v473 = vand.u32 %v67, 4294901760
    %474 = vmatmul.mubr.f32.gmra.mrb[0].mxu0 %v473
    %v475 = vpop.f32.mrb[0].mxu0
    %v476 = vadd.f32 %v393, %v475
    %v477 = vpop.f32.mrb[0].mxu0
    %478 = vdwg.mxu0
    %479 = vmatprep.subr.mxu0 0.0
    %v480 = vand.u32 %v54, 4294901760
    %481 = vmatpush1.msra.mxu0 %v480
    %482 = vmatprep.subr.mxu0 0.0
    %v483 = vand.u32 %v55, 4294901760
    %484 = vmatpush1.msra.mxu0 %v483
    %485 = vmatprep.subr.mxu0 0.0
    %v486 = vand.u32 %v56, 4294901760
    %487 = vmatpush1.msra.mxu0 %v486
    %488 = vmatprep.subr.mxu0 0.0
    %v489 = vand.u32 %v57, 4294901760
    %490 = vmatpush1.msra.mxu0 %v489
    %491 = vmatprep.subr.mxu0 0.0
    %492 = vmatpush1.msra.mxu0 0.0
    %493 = vmatprep.subr.mxu0 0.0
    %494 = vmatpush1.msra.mxu0 0.0
    %495 = vmatprep.subr.mxu0 0.0
    %496 = vmatpush1.msra.mxu0 0.0
    %497 = vmatprep.subr.mxu0 0.0
    %498 = vmatpush1.msra.mxu0 0.0
    %499 = vmatprep.subr.mxu0 0.0
    %500 = vmatpush1.msra.mxu0 0.0
    %501 = vmatprep.subr.mxu0 0.0
    %502 = vmatpush1.msra.mxu0 0.0
    %503 = vmatprep.subr.mxu0 0.0
    %504 = vmatpush1.msra.mxu0 0.0
    %505 = vmatprep.subr.mxu0 0.0
    %506 = vmatpush1.msra.mxu0 0.0
    %507 = vmatprep.subr.mxu0 0.0
    %508 = vmatpush1.msra.mxu0 0.0
    %509 = vmatprep.subr.mxu0 0.0
    %510 = vmatpush1.msra.mxu0 0.0
    %511 = vmatprep.subr.mxu0 0.0
    %512 = vmatpush1.msra.mxu0 0.0
    %513 = vmatprep.subr.mxu0 0.0
    %514 = vmatpush1.msra.mxu0 0.0
    %515 = vmatprep.subr.mxu0 0.0
    %516 = vmatpush1.msra.mxu0 0.0
    %517 = vmatprep.subr.mxu0 0.0
    %518 = vmatpush1.msra.mxu0 0.0
    %519 = vmatprep.subr.mxu0 0.0
    %520 = vmatpush1.msra.mxu0 0.0
    %521 = vmatprep.subr.mxu0 0.0
    %522 = vmatpush1.msra.mxu0 0.0
    %523 = vmatprep.subr.mxu0 0.0
    %524 = vmatpush1.msra.mxu0 0.0
    %525 = vmatprep.subr.mxu0 0.0
    %526 = vmatpush1.msra.mxu0 0.0
    %527 = vmatprep.subr.mxu0 0.0
    %528 = vmatpush1.msra.mxu0 0.0
    %529 = vmatprep.subr.mxu0 0.0
    %530 = vmatpush1.msra.mxu0 0.0
    %531 = vmatprep.subr.mxu0 0.0
    %532 = vmatpush1.msra.mxu0 0.0
    %533 = vmatprep.subr.mxu0 0.0
    %534 = vmatpush1.msra.mxu0 0.0
    %535 = vmatprep.subr.mxu0 0.0
    %536 = vmatpush1.msra.mxu0 0.0
    %537 = vmatprep.subr.mxu0 0.0
    %538 = vmatpush1.msra.mxu0 0.0
    %539 = vmatprep.subr.mxu0 0.0
    %540 = vmatpush1.msra.mxu0 0.0
    %541 = vmatprep.subr.mxu0 0.0
    %542 = vmatpush1.msra.mxu0 0.0
    %543 = vmatprep.subr.mxu0 0.0
    %544 = vmatpush1.msra.mxu0 0.0
    %545 = vmatprep.subr.mxu0 0.0
    %546 = vmatpush1.msra.mxu0 0.0
    %547 = vmatprep.mubr.f32.mxu0 0.0
    %v548 = vand.u32 %v67, 4294901760
    %549 = vmatmul.mubr.f32.gmra.mrb[0].mxu0 %v548
    %v550 = vpop.f32.mrb[0].mxu0
    %v551 = vadd.f32 %v476, %v550
    %v552 = vpop.f32.mrb[0].mxu0
    %553 = vdwg.mxu0
    %v554 = vmax.f32 %v551, 0.0
    %s555 = scalar_lea.vmem [#allocation4], 128
    %v556 = vld [vmem:[%s555] sm:$0xff]
    %v557 = vld [vmem:[%s555 + $0x8] sm:$0xff]
    %v558 = vld [vmem:[%s555 + $0x10] sm:$0xff]
    %v559 = vld [vmem:[%s555 + $0x18] sm:$0xff]
    %v560 = vld [vmem:[%s555 + $0x20] sm:$0xff]
    %v561 = vld [vmem:[%s555 + $0x28] sm:$0xff]
    %v562 = vld [vmem:[%s555 + $0x30] sm:$0xff]
    %v563 = vld [vmem:[%s555 + $0x38] sm:$0xff]
    %v564 = vld [vmem:[%s555 + $0x40] sm:$0xff]
    %v565 = vld [vmem:[%s555 + $0x48] sm:$0xff]
    %v566 = vld [vmem:[%s555 + $0x50] sm:$0xff]
    %v567 = vld [vmem:[%s555 + $0x58] sm:$0xff]
    %v568 = vld [vmem:[%s555 + $0x60] sm:$0xff]
    %v569 = vld [vmem:[%s555 + $0x68] sm:$0xff]
    %v570 = vld [vmem:[%s555 + $0x70] sm:$0xff]
    %v571 = vld [vmem:[%s555 + $0x78] sm:$0xff]
    %s572 = scalar_lea.vmem [#allocation6], 1
    %v573 = vld [vmem:[%s572] sm:$0x1]
    %v575 = vlaneseq
    %v576 = vshrl.u32 %v575, 7
    %v577 = vsub.s32 0, %v576
    %v578 = vrot.slane %v573, %v577
    %580 = vmatprep.subr.mxu0 0.0
    %v581 = vand.u32 %v556, 4294901760
    %582 = vmatpush1.msra.mxu0 %v581
    %583 = vmatprep.subr.mxu0 0.0
    %v584 = vand.u32 %v557, 4294901760
    %585 = vmatpush1.msra.mxu0 %v584
    %586 = vmatprep.subr.mxu0 0.0
    %v587 = vand.u32 %v558, 4294901760
    %588 = vmatpush1.msra.mxu0 %v587
    %589 = vmatprep.subr.mxu0 0.0
    %v590 = vand.u32 %v559, 4294901760
    %591 = vmatpush1.msra.mxu0 %v590
    %592 = vmatprep.subr.mxu0 0.0
    %v593 = vand.u32 %v560, 4294901760
    %594 = vmatpush1.msra.mxu0 %v593
    %595 = vmatprep.subr.mxu0 0.0
    %v596 = vand.u32 %v561, 4294901760
    %597 = vmatpush1.msra.mxu0 %v596
    %598 = vmatprep.subr.mxu0 0.0
    %v599 = vand.u32 %v562, 4294901760
    %600 = vmatpush1.msra.mxu0 %v599
    %601 = vmatprep.subr.mxu0 0.0
    %v602 = vand.u32 %v563, 4294901760
    %603 = vmatpush1.msra.mxu0 %v602
    %604 = vmatprep.subr.mxu0 0.0
    %v605 = vand.u32 %v564, 4294901760
    %606 = vmatpush1.msra.mxu0 %v605
    %607 = vmatprep.subr.mxu0 0.0
    %v608 = vand.u32 %v565, 4294901760
    %609 = vmatpush1.msra.mxu0 %v608
    %610 = vmatprep.subr.mxu0 0.0
    %v611 = vand.u32 %v566, 4294901760
    %612 = vmatpush1.msra.mxu0 %v611
    %613 = vmatprep.subr.mxu0 0.0
    %v614 = vand.u32 %v567, 4294901760
    %615 = vmatpush1.msra.mxu0 %v614
    %616 = vmatprep.subr.mxu0 0.0
    %v617 = vand.u32 %v568, 4294901760
    %618 = vmatpush1.msra.mxu0 %v617
    %619 = vmatprep.subr.mxu0 0.0
    %v620 = vand.u32 %v569, 4294901760
    %621 = vmatpush1.msra.mxu0 %v620
    %622 = vmatprep.subr.mxu0 0.0
    %v623 = vand.u32 %v570, 4294901760
    %624 = vmatpush1.msra.mxu0 %v623
    %625 = vmatprep.subr.mxu0 0.0
    %v626 = vand.u32 %v571, 4294901760
    %627 = vmatpush1.msra.mxu0 %v626
    %628 = vmatprep.subr.mxu0 0.0
    %629 = vmatpush1.msra.mxu0 0.0
    %630 = vmatprep.subr.mxu0 0.0
    %631 = vmatpush1.msra.mxu0 0.0
    %632 = vmatprep.subr.mxu0 0.0
    %633 = vmatpush1.msra.mxu0 0.0
    %634 = vmatprep.subr.mxu0 0.0
    %635 = vmatpush1.msra.mxu0 0.0
    %636 = vmatprep.subr.mxu0 0.0
    %637 = vmatpush1.msra.mxu0 0.0
    %638 = vmatprep.subr.mxu0 0.0
    %639 = vmatpush1.msra.mxu0 0.0
    %640 = vmatprep.subr.mxu0 0.0
    %641 = vmatpush1.msra.mxu0 0.0
    %642 = vmatprep.subr.mxu0 0.0
    %643 = vmatpush1.msra.mxu0 0.0
    %644 = vmatprep.subr.mxu0 0.0
    %645 = vmatpush1.msra.mxu0 0.0
    %646 = vmatprep.subr.mxu0 0.0
    %647 = vmatpush1.msra.mxu0 0.0
    %648 = vmatprep.subr.mxu0 0.0
    %649 = vmatpush1.msra.mxu0 0.0
    %650 = vmatprep.subr.mxu0 0.0
    %651 = vmatpush1.msra.mxu0 0.0
    %652 = vmatprep.subr.mxu0 0.0
    %653 = vmatpush1.msra.mxu0 0.0
    %654 = vmatprep.subr.mxu0 0.0
    %655 = vmatpush1.msra.mxu0 0.0
    %656 = vmatprep.subr.mxu0 0.0
    %657 = vmatpush1.msra.mxu0 0.0
    %658 = vmatprep.subr.mxu0 0.0
    %659 = vmatpush1.msra.mxu0 0.0
    %660 = vmatprep.mubr.f32.mxu0 0.0
    %v661 = vand.u32 %v554, 4294901760
    %v662 = vsub.f32 %v554, %v661
    %v663 = vand.u32 %v662, 4294901760
    %v664 = vsub.f32 %v662, %v663
    %v665 = vand.u32 %v664, 4294901760
    %666 = vmatmul.mubr.f32.gmra.mrb[0].mxu0 %v665
    %v667 = vpop.f32.mrb[0].mxu0
    %v668 = vadd.f32 %v578, %v667
    %v669 = vpop.f32.mrb[0].mxu0
    %670 = vdwg.mxu0
    %671 = vmatprep.subr.mxu0 0.0
    %v672 = vand.u32 %v556, 4294901760
    %v673 = vsub.f32 %v556, %v672
    %v674 = vand.u32 %v673, 4294901760
    %v675 = vsub.f32 %v673, %v674
    %v676 = vand.u32 %v675, 4294901760
    %677 = vmatpush1.msra.mxu0 %v676
    %678 = vmatprep.subr.mxu0 0.0
    %v679 = vand.u32 %v557, 4294901760
    %v680 = vsub.f32 %v557, %v679
    %v681 = vand.u32 %v680, 4294901760
    %v682 = vsub.f32 %v680, %v681
    %v683 = vand.u32 %v682, 4294901760
    %684 = vmatpush1.msra.mxu0 %v683
    %685 = vmatprep.subr.mxu0 0.0
    %v686 = vand.u32 %v558, 4294901760
    %v687 = vsub.f32 %v558, %v686
    %v688 = vand.u32 %v687, 4294901760
    %v689 = vsub.f32 %v687, %v688
    %v690 = vand.u32 %v689, 4294901760
    %691 = vmatpush1.msra.mxu0 %v690
    %692 = vmatprep.subr.mxu0 0.0
    %v693 = vand.u32 %v559, 4294901760
    %v694 = vsub.f32 %v559, %v693
    %v695 = vand.u32 %v694, 4294901760
    %v696 = vsub.f32 %v694, %v695
    %v697 = vand.u32 %v696, 4294901760
    %698 = vmatpush1.msra.mxu0 %v697
    %699 = vmatprep.subr.mxu0 0.0
    %v700 = vand.u32 %v560, 4294901760
    %v701 = vsub.f32 %v560, %v700
    %v702 = vand.u32 %v701, 4294901760
    %v703 = vsub.f32 %v701, %v702
    %v704 = vand.u32 %v703, 4294901760
    %705 = vmatpush1.msra.mxu0 %v704
    %706 = vmatprep.subr.mxu0 0.0
    %v707 = vand.u32 %v561, 4294901760
    %v708 = vsub.f32 %v561, %v707
    %v709 = vand.u32 %v708, 4294901760
    %v710 = vsub.f32 %v708, %v709
    %v711 = vand.u32 %v710, 4294901760
    %712 = vmatpush1.msra.mxu0 %v711
    %713 = vmatprep.subr.mxu0 0.0
    %v714 = vand.u32 %v562, 4294901760
    %v715 = vsub.f32 %v562, %v714
    %v716 = vand.u32 %v715, 4294901760
    %v717 = vsub.f32 %v715, %v716
    %v718 = vand.u32 %v717, 4294901760
    %719 = vmatpush1.msra.mxu0 %v718
    %720 = vmatprep.subr.mxu0 0.0
    %v721 = vand.u32 %v563, 4294901760
    %v722 = vsub.f32 %v563, %v721
    %v723 = vand.u32 %v722, 4294901760
    %v724 = vsub.f32 %v722, %v723
    %v725 = vand.u32 %v724, 4294901760
    %726 = vmatpush1.msra.mxu0 %v725
    %727 = vmatprep.subr.mxu0 0.0
    %v728 = vand.u32 %v564, 4294901760
    %v729 = vsub.f32 %v564, %v728
    %v730 = vand.u32 %v729, 4294901760
    %v731 = vsub.f32 %v729, %v730
    %v732 = vand.u32 %v731, 4294901760
    %733 = vmatpush1.msra.mxu0 %v732
    %734 = vmatprep.subr.mxu0 0.0
    %v735 = vand.u32 %v565, 4294901760
    %v736 = vsub.f32 %v565, %v735
    %v737 = vand.u32 %v736, 4294901760
    %v738 = vsub.f32 %v736, %v737
    %v739 = vand.u32 %v738, 4294901760
    %740 = vmatpush1.msra.mxu0 %v739
    %741 = vmatprep.subr.mxu0 0.0
    %v742 = vand.u32 %v566, 4294901760
    %v743 = vsub.f32 %v566, %v742
    %v744 = vand.u32 %v743, 4294901760
    %v745 = vsub.f32 %v743, %v744
    %v746 = vand.u32 %v745, 4294901760
    %747 = vmatpush1.msra.mxu0 %v746
    %748 = vmatprep.subr.mxu0 0.0
    %v749 = vand.u32 %v567, 4294901760
    %v750 = vsub.f32 %v567, %v749
    %v751 = vand.u32 %v750, 4294901760
    %v752 = vsub.f32 %v750, %v751
    %v753 = vand.u32 %v752, 4294901760
    %754 = vmatpush1.msra.mxu0 %v753
    %755 = vmatprep.subr.mxu0 0.0
    %v756 = vand.u32 %v568, 4294901760
    %v757 = vsub.f32 %v568, %v756
    %v758 = vand.u32 %v757, 4294901760
    %v759 = vsub.f32 %v757, %v758
    %v760 = vand.u32 %v759, 4294901760
    %761 = vmatpush1.msra.mxu0 %v760
    %762 = vmatprep.subr.mxu0 0.0
    %v763 = vand.u32 %v569, 4294901760
    %v764 = vsub.f32 %v569, %v763
    %v765 = vand.u32 %v764, 4294901760
    %v766 = vsub.f32 %v764, %v765
    %v767 = vand.u32 %v766, 4294901760
    %768 = vmatpush1.msra.mxu0 %v767
    %769 = vmatprep.subr.mxu0 0.0
    %v770 = vand.u32 %v570, 4294901760
    %v771 = vsub.f32 %v570, %v770
    %v772 = vand.u32 %v771, 4294901760
    %v773 = vsub.f32 %v771, %v772
    %v774 = vand.u32 %v773, 4294901760
    %775 = vmatpush1.msra.mxu0 %v774
    %776 = vmatprep.subr.mxu0 0.0
    %v777 = vand.u32 %v571, 4294901760
    %v778 = vsub.f32 %v571, %v777
    %v779 = vand.u32 %v778, 4294901760
    %v780 = vsub.f32 %v778, %v779
    %v781 = vand.u32 %v780, 4294901760
    %782 = vmatpush1.msra.mxu0 %v781
    %783 = vmatprep.subr.mxu0 0.0
    %784 = vmatpush1.msra.mxu0 0.0
    %785 = vmatprep.subr.mxu0 0.0
    %786 = vmatpush1.msra.mxu0 0.0
    %787 = vmatprep.subr.mxu0 0.0
    %788 = vmatpush1.msra.mxu0 0.0
    %789 = vmatprep.subr.mxu0 0.0
    %790 = vmatpush1.msra.mxu0 0.0
    %791 = vmatprep.subr.mxu0 0.0
    %792 = vmatpush1.msra.mxu0 0.0
    %793 = vmatprep.subr.mxu0 0.0
    %794 = vmatpush1.msra.mxu0 0.0
    %795 = vmatprep.subr.mxu0 0.0
    %796 = vmatpush1.msra.mxu0 0.0
    %797 = vmatprep.subr.mxu0 0.0
    %798 = vmatpush1.msra.mxu0 0.0
    %799 = vmatprep.subr.mxu0 0.0
    %800 = vmatpush1.msra.mxu0 0.0
    %801 = vmatprep.subr.mxu0 0.0
    %802 = vmatpush1.msra.mxu0 0.0
    %803 = vmatprep.subr.mxu0 0.0
    %804 = vmatpush1.msra.mxu0 0.0
    %805 = vmatprep.subr.mxu0 0.0
    %806 = vmatpush1.msra.mxu0 0.0
    %807 = vmatprep.subr.mxu0 0.0
    %808 = vmatpush1.msra.mxu0 0.0
    %809 = vmatprep.subr.mxu0 0.0
    %810 = vmatpush1.msra.mxu0 0.0
    %811 = vmatprep.subr.mxu0 0.0
    %812 = vmatpush1.msra.mxu0 0.0
    %813 = vmatprep.subr.mxu0 0.0
    %814 = vmatpush1.msra.mxu0 0.0
    %815 = vmatprep.mubr.f32.mxu0 0.0
    %v816 = vand.u32 %v554, 4294901760
    %817 = vmatmul.mubr.f32.gmra.mrb[0].mxu0 %v816
    %v818 = vpop.f32.mrb[0].mxu0
    %v819 = vadd.f32 %v668, %v818
    %v820 = vpop.f32.mrb[0].mxu0
    %821 = vdwg.mxu0
    %822 = vmatprep.subr.mxu0 0.0
    %v823 = vand.u32 %v556, 4294901760
    %v824 = vsub.f32 %v556, %v823
    %825 = vmatpush1.msra.mxu0 %v824
    %826 = vmatprep.subr.mxu0 0.0
    %v827 = vand.u32 %v557, 4294901760
    %v828 = vsub.f32 %v557, %v827
    %829 = vmatpush1.msra.mxu0 %v828
    %830 = vmatprep.subr.mxu0 0.0
    %v831 = vand.u32 %v558, 4294901760
    %v832 = vsub.f32 %v558, %v831
    %833 = vmatpush1.msra.mxu0 %v832
    %834 = vmatprep.subr.mxu0 0.0
    %v835 = vand.u32 %v559, 4294901760
    %v836 = vsub.f32 %v559, %v835
    %837 = vmatpush1.msra.mxu0 %v836
    %838 = vmatprep.subr.mxu0 0.0
    %v839 = vand.u32 %v560, 4294901760
    %v840 = vsub.f32 %v560, %v839
    %841 = vmatpush1.msra.mxu0 %v840
    %842 = vmatprep.subr.mxu0 0.0
    %v843 = vand.u32 %v561, 4294901760
    %v844 = vsub.f32 %v561, %v843
    %845 = vmatpush1.msra.mxu0 %v844
    %846 = vmatprep.subr.mxu0 0.0
    %v847 = vand.u32 %v562, 4294901760
    %v848 = vsub.f32 %v562, %v847
    %849 = vmatpush1.msra.mxu0 %v848
    %850 = vmatprep.subr.mxu0 0.0
    %v851 = vand.u32 %v563, 4294901760
    %v852 = vsub.f32 %v563, %v851
    %853 = vmatpush1.msra.mxu0 %v852
    %854 = vmatprep.subr.mxu0 0.0
    %v855 = vand.u32 %v564, 4294901760
    %v856 = vsub.f32 %v564, %v855
    %857 = vmatpush1.msra.mxu0 %v856
    %858 = vmatprep.subr.mxu0 0.0
    %v859 = vand.u32 %v565, 4294901760
    %v860 = vsub.f32 %v565, %v859
    %861 = vmatpush1.msra.mxu0 %v860
    %862 = vmatprep.subr.mxu0 0.0
    %v863 = vand.u32 %v566, 4294901760
    %v864 = vsub.f32 %v566, %v863
    %865 = vmatpush1.msra.mxu0 %v864
    %866 = vmatprep.subr.mxu0 0.0
    %v867 = vand.u32 %v567, 4294901760
    %v868 = vsub.f32 %v567, %v867
    %869 = vmatpush1.msra.mxu0 %v868
    %870 = vmatprep.subr.mxu0 0.0
    %v871 = vand.u32 %v568, 4294901760
    %v872 = vsub.f32 %v568, %v871
    %873 = vmatpush1.msra.mxu0 %v872
    %874 = vmatprep.subr.mxu0 0.0
    %v875 = vand.u32 %v569, 4294901760
    %v876 = vsub.f32 %v569, %v875
    %877 = vmatpush1.msra.mxu0 %v876
    %878 = vmatprep.subr.mxu0 0.0
    %v879 = vand.u32 %v570, 4294901760
    %v880 = vsub.f32 %v570, %v879
    %881 = vmatpush1.msra.mxu0 %v880
    %882 = vmatprep.subr.mxu0 0.0
    %v883 = vand.u32 %v571, 4294901760
    %v884 = vsub.f32 %v571, %v883
    %885 = vmatpush1.msra.mxu0 %v884
    %886 = vmatprep.subr.mxu0 0.0
    %887 = vmatpush1.msra.mxu0 0.0
    %888 = vmatprep.subr.mxu0 0.0
    %889 = vmatpush1.msra.mxu0 0.0
    %890 = vmatprep.subr.mxu0 0.0
    %891 = vmatpush1.msra.mxu0 0.0
    %892 = vmatprep.subr.mxu0 0.0
    %893 = vmatpush1.msra.mxu0 0.0
    %894 = vmatprep.subr.mxu0 0.0
    %895 = vmatpush1.msra.mxu0 0.0
    %896 = vmatprep.subr.mxu0 0.0
    %897 = vmatpush1.msra.mxu0 0.0
    %898 = vmatprep.subr.mxu0 0.0
    %899 = vmatpush1.msra.mxu0 0.0
    %900 = vmatprep.subr.mxu0 0.0
    %901 = vmatpush1.msra.mxu0 0.0
    %902 = vmatprep.subr.mxu0 0.0
    %903 = vmatpush1.msra.mxu0 0.0
    %904 = vmatprep.subr.mxu0 0.0
    %905 = vmatpush1.msra.mxu0 0.0
    %906 = vmatprep.subr.mxu0 0.0
    %907 = vmatpush1.msra.mxu0 0.0
    %908 = vmatprep.subr.mxu0 0.0
    %909 = vmatpush1.msra.mxu0 0.0
    %910 = vmatprep.subr.mxu0 0.0
    %911 = vmatpush1.msra.mxu0 0.0
    %912 = vmatprep.subr.mxu0 0.0
    %913 = vmatpush1.msra.mxu0 0.0
    %914 = vmatprep.subr.mxu0 0.0
    %915 = vmatpush1.msra.mxu0 0.0
    %916 = vmatprep.subr.mxu0 0.0
    %917 = vmatpush1.msra.mxu0 0.0
    %918 = vmatprep.mubr.f32.mxu0 0.0
    %v919 = vand.u32 %v554, 4294901760
    %v920 = vsub.f32 %v554, %v919
    %921 = vmatmul.mubr.f32.gmra.mrb[0].mxu0 %v920
    %v922 = vpop.f32.mrb[0].mxu0
    %v923 = vadd.f32 %v819, %v922
    %v924 = vpop.f32.mrb[0].mxu0
    %925 = vdwg.mxu0
    %926 = vmatprep.subr.mxu0 0.0
    %v927 = vand.u32 %v556, 4294901760
    %928 = vmatpush1.msra.mxu0 %v927
    %929 = vmatprep.subr.mxu0 0.0
    %v930 = vand.u32 %v557, 4294901760
    %931 = vmatpush1.msra.mxu0 %v930
    %932 = vmatprep.subr.mxu0 0.0
    %v933 = vand.u32 %v558, 4294901760
    %934 = vmatpush1.msra.mxu0 %v933
    %935 = vmatprep.subr.mxu0 0.0
    %v936 = vand.u32 %v559, 4294901760
    %937 = vmatpush1.msra.mxu0 %v936
    %938 = vmatprep.subr.mxu0 0.0
    %v939 = vand.u32 %v560, 4294901760
    %940 = vmatpush1.msra.mxu0 %v939
    %941 = vmatprep.subr.mxu0 0.0
    %v942 = vand.u32 %v561, 4294901760
    %943 = vmatpush1.msra.mxu0 %v942
    %944 = vmatprep.subr.mxu0 0.0
    %v945 = vand.u32 %v562, 4294901760
    %946 = vmatpush1.msra.mxu0 %v945
    %947 = vmatprep.subr.mxu0 0.0
    %v948 = vand.u32 %v563, 4294901760
    %949 = vmatpush1.msra.mxu0 %v948
    %950 = vmatprep.subr.mxu0 0.0
    %v951 = vand.u32 %v564, 4294901760
    %952 = vmatpush1.msra.mxu0 %v951
    %953 = vmatprep.subr.mxu0 0.0
    %v954 = vand.u32 %v565, 4294901760
    %955 = vmatpush1.msra.mxu0 %v954
    %956 = vmatprep.subr.mxu0 0.0
    %v957 = vand.u32 %v566, 4294901760
    %958 = vmatpush1.msra.mxu0 %v957
    %959 = vmatprep.subr.mxu0 0.0
    %v960 = vand.u32 %v567, 4294901760
    %961 = vmatpush1.msra.mxu0 %v960
    %962 = vmatprep.subr.mxu0 0.0
    %v963 = vand.u32 %v568, 4294901760
    %964 = vmatpush1.msra.mxu0 %v963
    %965 = vmatprep.subr.mxu0 0.0
    %v966 = vand.u32 %v569, 4294901760
    %967 = vmatpush1.msra.mxu0 %v966
    %968 = vmatprep.subr.mxu0 0.0
    %v969 = vand.u32 %v570, 4294901760
    %970 = vmatpush1.msra.mxu0 %v969
    %971 = vmatprep.subr.mxu0 0.0
    %v972 = vand.u32 %v571, 4294901760
    %973 = vmatpush1.msra.mxu0 %v972
    %974 = vmatprep.subr.mxu0 0.0
    %975 = vmatpush1.msra.mxu0 0.0
    %976 = vmatprep.subr.mxu0 0.0
    %977 = vmatpush1.msra.mxu0 0.0
    %978 = vmatprep.subr.mxu0 0.0
    %979 = vmatpush1.msra.mxu0 0.0
    %980 = vmatprep.subr.mxu0 0.0
    %981 = vmatpush1.msra.mxu0 0.0
    %982 = vmatprep.subr.mxu0 0.0
    %983 = vmatpush1.msra.mxu0 0.0
    %984 = vmatprep.subr.mxu0 0.0
    %985 = vmatpush1.msra.mxu0 0.0
    %986 = vmatprep.subr.mxu0 0.0
    %987 = vmatpush1.msra.mxu0 0.0
    %988 = vmatprep.subr.mxu0 0.0
    %989 = vmatpush1.msra.mxu0 0.0
    %990 = vmatprep.subr.mxu0 0.0
    %991 = vmatpush1.msra.mxu0 0.0
    %992 = vmatprep.subr.mxu0 0.0
    %993 = vmatpush1.msra.mxu0 0.0
    %994 = vmatprep.subr.mxu0 0.0
    %995 = vmatpush1.msra.mxu0 0.0
    %996 = vmatprep.subr.mxu0 0.0
    %997 = vmatpush1.msra.mxu0 0.0
    %998 = vmatprep.subr.mxu0 0.0
    %999 = vmatpush1.msra.mxu0 0.0
    %1000 = vmatprep.subr.mxu0 0.0
    %1001 = vmatpush1.msra.mxu0 0.0
    %1002 = vmatprep.subr.mxu0 0.0
    %1003 = vmatpush1.msra.mxu0 0.0
    %1004 = vmatprep.subr.mxu0 0.0
    %1005 = vmatpush1.msra.mxu0 0.0
    %1006 = vmatprep.mubr.f32.mxu0 0.0
    %v1007 = vand.u32 %v554, 4294901760
    %v1008 = vsub.f32 %v554, %v1007
    %v1009 = vand.u32 %v1008, 4294901760
    %1010 = vmatmul.mubr.f32.gmra.mrb[0].mxu0 %v1009
    %v1011 = vpop.f32.mrb[0].mxu0
    %v1012 = vadd.f32 %v923, %v1011
    %v1013 = vpop.f32.mrb[0].mxu0
    %1014 = vdwg.mxu0
    %1015 = vmatprep.subr.mxu0 0.0
    %v1016 = vand.u32 %v556, 4294901760
    %v1017 = vsub.f32 %v556, %v1016
    %v1018 = vand.u32 %v1017, 4294901760
    %1019 = vmatpush1.msra.mxu0 %v1018
    %1020 = vmatprep.subr.mxu0 0.0
    %v1021 = vand.u32 %v557, 4294901760
    %v1022 = vsub.f32 %v557, %v1021
    %v1023 = vand.u32 %v1022, 4294901760
    %1024 = vmatpush1.msra.mxu0 %v1023
    %1025 = vmatprep.subr.mxu0 0.0
    %v1026 = vand.u32 %v558, 4294901760
    %v1027 = vsub.f32 %v558, %v1026
    %v1028 = vand.u32 %v1027, 4294901760
    %1029 = vmatpush1.msra.mxu0 %v1028
    %1030 = vmatprep.subr.mxu0 0.0
    %v1031 = vand.u32 %v559, 4294901760
    %v1032 = vsub.f32 %v559, %v1031
    %v1033 = vand.u32 %v1032, 4294901760
    %1034 = vmatpush1.msra.mxu0 %v1033
    %1035 = vmatprep.subr.mxu0 0.0
    %v1036 = vand.u32 %v560, 4294901760
    %v1037 = vsub.f32 %v560, %v1036
    %v1038 = vand.u32 %v1037, 4294901760
    %1039 = vmatpush1.msra.mxu0 %v1038
    %1040 = vmatprep.subr.mxu0 0.0
    %v1041 = vand.u32 %v561, 4294901760
    %v1042 = vsub.f32 %v561, %v1041
    %v1043 = vand.u32 %v1042, 4294901760
    %1044 = vmatpush1.msra.mxu0 %v1043
    %1045 = vmatprep.subr.mxu0 0.0
    %v1046 = vand.u32 %v562, 4294901760
    %v1047 = vsub.f32 %v562, %v1046
    %v1048 = vand.u32 %v1047, 4294901760
    %1049 = vmatpush1.msra.mxu0 %v1048
    %1050 = vmatprep.subr.mxu0 0.0
    %v1051 = vand.u32 %v563, 4294901760
    %v1052 = vsub.f32 %v563, %v1051
    %v1053 = vand.u32 %v1052, 4294901760
    %1054 = vmatpush1.msra.mxu0 %v1053
    %1055 = vmatprep.subr.mxu0 0.0
    %v1056 = vand.u32 %v564, 4294901760
    %v1057 = vsub.f32 %v564, %v1056
    %v1058 = vand.u32 %v1057, 4294901760
    %1059 = vmatpush1.msra.mxu0 %v1058
    %1060 = vmatprep.subr.mxu0 0.0
    %v1061 = vand.u32 %v565, 4294901760
    %v1062 = vsub.f32 %v565, %v1061
    %v1063 = vand.u32 %v1062, 4294901760
    %1064 = vmatpush1.msra.mxu0 %v1063
    %1065 = vmatprep.subr.mxu0 0.0
    %v1066 = vand.u32 %v566, 4294901760
    %v1067 = vsub.f32 %v566, %v1066
    %v1068 = vand.u32 %v1067, 4294901760
    %1069 = vmatpush1.msra.mxu0 %v1068
    %1070 = vmatprep.subr.mxu0 0.0
    %v1071 = vand.u32 %v567, 4294901760
    %v1072 = vsub.f32 %v567, %v1071
    %v1073 = vand.u32 %v1072, 4294901760
    %1074 = vmatpush1.msra.mxu0 %v1073
    %1075 = vmatprep.subr.mxu0 0.0
    %v1076 = vand.u32 %v568, 4294901760
    %v1077 = vsub.f32 %v568, %v1076
    %v1078 = vand.u32 %v1077, 4294901760
    %1079 = vmatpush1.msra.mxu0 %v1078
    %1080 = vmatprep.subr.mxu0 0.0
    %v1081 = vand.u32 %v569, 4294901760
    %v1082 = vsub.f32 %v569, %v1081
    %v1083 = vand.u32 %v1082, 4294901760
    %1084 = vmatpush1.msra.mxu0 %v1083
    %1085 = vmatprep.subr.mxu0 0.0
    %v1086 = vand.u32 %v570, 4294901760
    %v1087 = vsub.f32 %v570, %v1086
    %v1088 = vand.u32 %v1087, 4294901760
    %1089 = vmatpush1.msra.mxu0 %v1088
    %1090 = vmatprep.subr.mxu0 0.0
    %v1091 = vand.u32 %v571, 4294901760
    %v1092 = vsub.f32 %v571, %v1091
    %v1093 = vand.u32 %v1092, 4294901760
    %1094 = vmatpush1.msra.mxu0 %v1093
    %1095 = vmatprep.subr.mxu0 0.0
    %1096 = vmatpush1.msra.mxu0 0.0
    %1097 = vmatprep.subr.mxu0 0.0
    %1098 = vmatpush1.msra.mxu0 0.0
    %1099 = vmatprep.subr.mxu0 0.0
    %1100 = vmatpush1.msra.mxu0 0.0
    %1101 = vmatprep.subr.mxu0 0.0
    %1102 = vmatpush1.msra.mxu0 0.0
    %1103 = vmatprep.subr.mxu0 0.0
    %1104 = vmatpush1.msra.mxu0 0.0
    %1105 = vmatprep.subr.mxu0 0.0
    %1106 = vmatpush1.msra.mxu0 0.0
    %1107 = vmatprep.subr.mxu0 0.0
    %1108 = vmatpush1.msra.mxu0 0.0
    %1109 = vmatprep.subr.mxu0 0.0
    %1110 = vmatpush1.msra.mxu0 0.0
    %1111 = vmatprep.subr.mxu0 0.0
    %1112 = vmatpush1.msra.mxu0 0.0
    %1113 = vmatprep.subr.mxu0 0.0
    %1114 = vmatpush1.msra.mxu0 0.0
    %1115 = vmatprep.subr.mxu0 0.0
    %1116 = vmatpush1.msra.mxu0 0.0
    %1117 = vmatprep.subr.mxu0 0.0
    %1118 = vmatpush1.msra.mxu0 0.0
    %1119 = vmatprep.subr.mxu0 0.0
    %1120 = vmatpush1.msra.mxu0 0.0
    %1121 = vmatprep.subr.mxu0 0.0
    %1122 = vmatpush1.msra.mxu0 0.0
    %1123 = vmatprep.subr.mxu0 0.0
    %1124 = vmatpush1.msra.mxu0 0.0
    %1125 = vmatprep.subr.mxu0 0.0
    %1126 = vmatpush1.msra.mxu0 0.0
    %1127 = vmatprep.mubr.f32.mxu0 0.0
    %v1128 = vand.u32 %v554, 4294901760
    %1129 = vmatmul.mubr.f32.gmra.mrb[0].mxu0 %v1128
    %v1130 = vpop.f32.mrb[0].mxu0
    %v1131 = vadd.f32 %v1012, %v1130
    %v1132 = vpop.f32.mrb[0].mxu0
    %1133 = vdwg.mxu0
    %1134 = vmatprep.subr.mxu0 0.0
    %v1135 = vand.u32 %v556, 4294901760
    %1136 = vmatpush1.msra.mxu0 %v1135
    %1137 = vmatprep.subr.mxu0 0.0
    %v1138 = vand.u32 %v557, 4294901760
    %1139 = vmatpush1.msra.mxu0 %v1138
    %1140 = vmatprep.subr.mxu0 0.0
    %v1141 = vand.u32 %v558, 4294901760
    %1142 = vmatpush1.msra.mxu0 %v1141
    %1143 = vmatprep.subr.mxu0 0.0
    %v1144 = vand.u32 %v559, 4294901760
    %1145 = vmatpush1.msra.mxu0 %v1144
    %1146 = vmatprep.subr.mxu0 0.0
    %v1147 = vand.u32 %v560, 4294901760
    %1148 = vmatpush1.msra.mxu0 %v1147
    %1149 = vmatprep.subr.mxu0 0.0
    %v1150 = vand.u32 %v561, 4294901760
    %1151 = vmatpush1.msra.mxu0 %v1150
    %1152 = vmatprep.subr.mxu0 0.0
    %v1153 = vand.u32 %v562, 4294901760
    %1154 = vmatpush1.msra.mxu0 %v1153
    %1155 = vmatprep.subr.mxu0 0.0
    %v1156 = vand.u32 %v563, 4294901760
    %1157 = vmatpush1.msra.mxu0 %v1156
    %1158 = vmatprep.subr.mxu0 0.0
    %v1159 = vand.u32 %v564, 4294901760
    %1160 = vmatpush1.msra.mxu0 %v1159
    %1161 = vmatprep.subr.mxu0 0.0
    %v1162 = vand.u32 %v565, 4294901760
    %1163 = vmatpush1.msra.mxu0 %v1162
    %1164 = vmatprep.subr.mxu0 0.0
    %v1165 = vand.u32 %v566, 4294901760
    %1166 = vmatpush1.msra.mxu0 %v1165
    %1167 = vmatprep.subr.mxu0 0.0
    %v1168 = vand.u32 %v567, 4294901760
    %1169 = vmatpush1.msra.mxu0 %v1168
    %1170 = vmatprep.subr.mxu0 0.0
    %v1171 = vand.u32 %v568, 4294901760
    %1172 = vmatpush1.msra.mxu0 %v1171
    %1173 = vmatprep.subr.mxu0 0.0
    %v1174 = vand.u32 %v569, 4294901760
    %1175 = vmatpush1.msra.mxu0 %v1174
    %1176 = vmatprep.subr.mxu0 0.0
    %v1177 = vand.u32 %v570, 4294901760
    %1178 = vmatpush1.msra.mxu0 %v1177
    %1179 = vmatprep.subr.mxu0 0.0
    %v1180 = vand.u32 %v571, 4294901760
    %1181 = vmatpush1.msra.mxu0 %v1180
    %1182 = vmatprep.subr.mxu0 0.0
    %1183 = vmatpush1.msra.mxu0 0.0
    %1184 = vmatprep.subr.mxu0 0.0
    %1185 = vmatpush1.msra.mxu0 0.0
    %1186 = vmatprep.subr.mxu0 0.0
    %1187 = vmatpush1.msra.mxu0 0.0
    %1188 = vmatprep.subr.mxu0 0.0
    %1189 = vmatpush1.msra.mxu0 0.0
    %1190 = vmatprep.subr.mxu0 0.0
    %1191 = vmatpush1.msra.mxu0 0.0
    %1192 = vmatprep.subr.mxu0 0.0
    %1193 = vmatpush1.msra.mxu0 0.0
    %1194 = vmatprep.subr.mxu0 0.0
    %1195 = vmatpush1.msra.mxu0 0.0
    %1196 = vmatprep.subr.mxu0 0.0
    %1197 = vmatpush1.msra.mxu0 0.0
    %1198 = vmatprep.subr.mxu0 0.0
    %1199 = vmatpush1.msra.mxu0 0.0
    %1200 = vmatprep.subr.mxu0 0.0
    %1201 = vmatpush1.msra.mxu0 0.0
    %1202 = vmatprep.subr.mxu0 0.0
    %1203 = vmatpush1.msra.mxu0 0.0
    %1204 = vmatprep.subr.mxu0 0.0
    %1205 = vmatpush1.msra.mxu0 0.0
    %1206 = vmatprep.subr.mxu0 0.0
    %1207 = vmatpush1.msra.mxu0 0.0
    %1208 = vmatprep.subr.mxu0 0.0
    %1209 = vmatpush1.msra.mxu0 0.0
    %1210 = vmatprep.subr.mxu0 0.0
    %1211 = vmatpush1.msra.mxu0 0.0
    %1212 = vmatprep.subr.mxu0 0.0
    %1213 = vmatpush1.msra.mxu0 0.0
    %1214 = vmatprep.mubr.f32.mxu0 0.0
    %v1215 = vand.u32 %v554, 4294901760
    %1216 = vmatmul.mubr.f32.gmra.mrb[0].mxu0 %v1215
    %v1217 = vpop.f32.mrb[0].mxu0
    %v1218 = vadd.f32 %v1131, %v1217
    %v1219 = vpop.f32.mrb[0].mxu0
    %1220 = vdwg.mxu0
    %v1221 = vmax.f32 %v1218, 0.0
    %s1222 = scalar_lea.vmem [#allocation4], 256
    %v1223 = vld [vmem:[%s1222] sm:$0xff]
    %v1224 = vld [vmem:[%s1222 + $0x8] sm:$0xff]
    %v1225 = vld [vmem:[%s1222 + $0x10] sm:$0xff]
    %v1226 = vld [vmem:[%s1222 + $0x18] sm:$0xff]
    %v1227 = vld [vmem:[%s1222 + $0x20] sm:$0xff]
    %v1228 = vld [vmem:[%s1222 + $0x28] sm:$0xff]
    %v1229 = vld [vmem:[%s1222 + $0x30] sm:$0xff]
    %v1230 = vld [vmem:[%s1222 + $0x38] sm:$0xff]
    %v1231 = vld [vmem:[%s1222 + $0x40] sm:$0xff]
    %v1232 = vld [vmem:[%s1222 + $0x48] sm:$0xff]
    %v1233 = vld [vmem:[%s1222 + $0x50] sm:$0xff]
    %v1234 = vld [vmem:[%s1222 + $0x58] sm:$0xff]
    %v1235 = vld [vmem:[%s1222 + $0x60] sm:$0xff]
    %v1236 = vld [vmem:[%s1222 + $0x68] sm:$0xff]
    %v1237 = vld [vmem:[%s1222 + $0x70] sm:$0xff]
    %v1238 = vld [vmem:[%s1222 + $0x78] sm:$0xff]
    %s1239 = scalar_lea.vmem [#allocation6], 2
    %v1240 = vld [vmem:[%s1239] sm:$0x1]
    %v1242 = vlaneseq
    %v1243 = vshrl.u32 %v1242, 7
    %v1244 = vsub.s32 0, %v1243
    %v1245 = vrot.slane %v1240, %v1244
    %1247 = vmatprep.subr.mxu0 0.0
    %v1248 = vand.u32 %v1223, 4294901760
    %1249 = vmatpush1.msra.mxu0 %v1248
    %1250 = vmatprep.subr.mxu0 0.0
    %v1251 = vand.u32 %v1224, 4294901760
    %1252 = vmatpush1.msra.mxu0 %v1251
    %1253 = vmatprep.subr.mxu0 0.0
    %v1254 = vand.u32 %v1225, 4294901760
    %1255 = vmatpush1.msra.mxu0 %v1254
    %1256 = vmatprep.subr.mxu0 0.0
    %v1257 = vand.u32 %v1226, 4294901760
    %1258 = vmatpush1.msra.mxu0 %v1257
    %1259 = vmatprep.subr.mxu0 0.0
    %v1260 = vand.u32 %v1227, 4294901760
    %1261 = vmatpush1.msra.mxu0 %v1260
    %1262 = vmatprep.subr.mxu0 0.0
    %v1263 = vand.u32 %v1228, 4294901760
    %1264 = vmatpush1.msra.mxu0 %v1263
    %1265 = vmatprep.subr.mxu0 0.0
    %v1266 = vand.u32 %v1229, 4294901760
    %1267 = vmatpush1.msra.mxu0 %v1266
    %1268 = vmatprep.subr.mxu0 0.0
    %v1269 = vand.u32 %v1230, 4294901760
    %1270 = vmatpush1.msra.mxu0 %v1269
    %1271 = vmatprep.subr.mxu0 0.0
    %v1272 = vand.u32 %v1231, 4294901760
    %1273 = vmatpush1.msra.mxu0 %v1272
    %1274 = vmatprep.subr.mxu0 0.0
    %v1275 = vand.u32 %v1232, 4294901760
    %1276 = vmatpush1.msra.mxu0 %v1275
    %1277 = vmatprep.subr.mxu0 0.0
    %v1278 = vand.u32 %v1233, 4294901760
    %1279 = vmatpush1.msra.mxu0 %v1278
    %1280 = vmatprep.subr.mxu0 0.0
    %v1281 = vand.u32 %v1234, 4294901760
    %1282 = vmatpush1.msra.mxu0 %v1281
    %1283 = vmatprep.subr.mxu0 0.0
    %v1284 = vand.u32 %v1235, 4294901760
    %1285 = vmatpush1.msra.mxu0 %v1284
    %1286 = vmatprep.subr.mxu0 0.0
    %v1287 = vand.u32 %v1236, 4294901760
    %1288 = vmatpush1.msra.mxu0 %v1287
    %1289 = vmatprep.subr.mxu0 0.0
    %v1290 = vand.u32 %v1237, 4294901760
    %1291 = vmatpush1.msra.mxu0 %v1290
    %1292 = vmatprep.subr.mxu0 0.0
    %v1293 = vand.u32 %v1238, 4294901760
    %1294 = vmatpush1.msra.mxu0 %v1293
    %1295 = vmatprep.subr.mxu0 0.0
    %1296 = vmatpush1.msra.mxu0 0.0
    %1297 = vmatprep.subr.mxu0 0.0
    %1298 = vmatpush1.msra.mxu0 0.0
    %1299 = vmatprep.subr.mxu0 0.0
    %1300 = vmatpush1.msra.mxu0 0.0
    %1301 = vmatprep.subr.mxu0 0.0
    %1302 = vmatpush1.msra.mxu0 0.0
    %1303 = vmatprep.subr.mxu0 0.0
    %1304 = vmatpush1.msra.mxu0 0.0
    %1305 = vmatprep.subr.mxu0 0.0
    %1306 = vmatpush1.msra.mxu0 0.0
    %1307 = vmatprep.subr.mxu0 0.0
    %1308 = vmatpush1.msra.mxu0 0.0
    %1309 = vmatprep.subr.mxu0 0.0
    %1310 = vmatpush1.msra.mxu0 0.0
    %1311 = vmatprep.subr.mxu0 0.0
    %1312 = vmatpush1.msra.mxu0 0.0
    %1313 = vmatprep.subr.mxu0 0.0
    %1314 = vmatpush1.msra.mxu0 0.0
    %1315 = vmatprep.subr.mxu0 0.0
    %1316 = vmatpush1.msra.mxu0 0.0
    %1317 = vmatprep.subr.mxu0 0.0
    %1318 = vmatpush1.msra.mxu0 0.0
    %1319 = vmatprep.subr.mxu0 0.0
    %1320 = vmatpush1.msra.mxu0 0.0
    %1321 = vmatprep.subr.mxu0 0.0
    %1322 = vmatpush1.msra.mxu0 0.0
    %1323 = vmatprep.subr.mxu0 0.0
    %1324 = vmatpush1.msra.mxu0 0.0
    %1325 = vmatprep.subr.mxu0 0.0
    %1326 = vmatpush1.msra.mxu0 0.0
    %1327 = vmatprep.mubr.f32.mxu0 0.0
    %v1328 = vand.u32 %v1221, 4294901760
    %v1329 = vsub.f32 %v1221, %v1328
    %v1330 = vand.u32 %v1329, 4294901760
    %v1331 = vsub.f32 %v1329, %v1330
    %v1332 = vand.u32 %v1331, 4294901760
    %1333 = vmatmul.mubr.f32.gmra.mrb[0].mxu0 %v1332
    %v1334 = vpop.f32.mrb[0].mxu0
    %v1335 = vadd.f32 %v1245, %v1334
    %v1336 = vpop.f32.mrb[0].mxu0
    %1337 = vdwg.mxu0
    %1338 = vmatprep.subr.mxu0 0.0
    %v1339 = vand.u32 %v1223, 4294901760
    %v1340 = vsub.f32 %v1223, %v1339
    %v1341 = vand.u32 %v1340, 4294901760
    %v1342 = vsub.f32 %v1340, %v1341
    %v1343 = vand.u32 %v1342, 4294901760
    %1344 = vmatpush1.msra.mxu0 %v1343
    %1345 = vmatprep.subr.mxu0 0.0
    %v1346 = vand.u32 %v1224, 4294901760
    %v1347 = vsub.f32 %v1224, %v1346
    %v1348 = vand.u32 %v1347, 4294901760
    %v1349 = vsub.f32 %v1347, %v1348
    %v1350 = vand.u32 %v1349, 4294901760
    %1351 = vmatpush1.msra.mxu0 %v1350
    %1352 = vmatprep.subr.mxu0 0.0
    %v1353 = vand.u32 %v1225, 4294901760
    %v1354 = vsub.f32 %v1225, %v1353
    %v1355 = vand.u32 %v1354, 4294901760
    %v1356 = vsub.f32 %v1354, %v1355
    %v1357 = vand.u32 %v1356, 4294901760
    %1358 = vmatpush1.msra.mxu0 %v1357
    %1359 = vmatprep.subr.mxu0 0.0
    %v1360 = vand.u32 %v1226, 4294901760
    %v1361 = vsub.f32 %v1226, %v1360
    %v1362 = vand.u32 %v1361, 4294901760
    %v1363 = vsub.f32 %v1361, %v1362
    %v1364 = vand.u32 %v1363, 4294901760
    %1365 = vmatpush1.msra.mxu0 %v1364
    %1366 = vmatprep.subr.mxu0 0.0
    %v1367 = vand.u32 %v1227, 4294901760
    %v1368 = vsub.f32 %v1227, %v1367
    %v1369 = vand.u32 %v1368, 4294901760
    %v1370 = vsub.f32 %v1368, %v1369
    %v1371 = vand.u32 %v1370, 4294901760
    %1372 = vmatpush1.msra.mxu0 %v1371
    %1373 = vmatprep.subr.mxu0 0.0
    %v1374 = vand.u32 %v1228, 4294901760
    %v1375 = vsub.f32 %v1228, %v1374
    %v1376 = vand.u32 %v1375, 4294901760
    %v1377 = vsub.f32 %v1375, %v1376
    %v1378 = vand.u32 %v1377, 4294901760
    %1379 = vmatpush1.msra.mxu0 %v1378
    %1380 = vmatprep.subr.mxu0 0.0
    %v1381 = vand.u32 %v1229, 4294901760
    %v1382 = vsub.f32 %v1229, %v1381
    %v1383 = vand.u32 %v1382, 4294901760
    %v1384 = vsub.f32 %v1382, %v1383
    %v1385 = vand.u32 %v1384, 4294901760
    %1386 = vmatpush1.msra.mxu0 %v1385
    %1387 = vmatprep.subr.mxu0 0.0
    %v1388 = vand.u32 %v1230, 4294901760
    %v1389 = vsub.f32 %v1230, %v1388
    %v1390 = vand.u32 %v1389, 4294901760
    %v1391 = vsub.f32 %v1389, %v1390
    %v1392 = vand.u32 %v1391, 4294901760
    %1393 = vmatpush1.msra.mxu0 %v1392
    %1394 = vmatprep.subr.mxu0 0.0
    %v1395 = vand.u32 %v1231, 4294901760
    %v1396 = vsub.f32 %v1231, %v1395
    %v1397 = vand.u32 %v1396, 4294901760
    %v1398 = vsub.f32 %v1396, %v1397
    %v1399 = vand.u32 %v1398, 4294901760
    %1400 = vmatpush1.msra.mxu0 %v1399
    %1401 = vmatprep.subr.mxu0 0.0
    %v1402 = vand.u32 %v1232, 4294901760
    %v1403 = vsub.f32 %v1232, %v1402
    %v1404 = vand.u32 %v1403, 4294901760
    %v1405 = vsub.f32 %v1403, %v1404
    %v1406 = vand.u32 %v1405, 4294901760
    %1407 = vmatpush1.msra.mxu0 %v1406
    %1408 = vmatprep.subr.mxu0 0.0
    %v1409 = vand.u32 %v1233, 4294901760
    %v1410 = vsub.f32 %v1233, %v1409
    %v1411 = vand.u32 %v1410, 4294901760
    %v1412 = vsub.f32 %v1410, %v1411
    %v1413 = vand.u32 %v1412, 4294901760
    %1414 = vmatpush1.msra.mxu0 %v1413
    %1415 = vmatprep.subr.mxu0 0.0
    %v1416 = vand.u32 %v1234, 4294901760
    %v1417 = vsub.f32 %v1234, %v1416
    %v1418 = vand.u32 %v1417, 4294901760
    %v1419 = vsub.f32 %v1417, %v1418
    %v1420 = vand.u32 %v1419, 4294901760
    %1421 = vmatpush1.msra.mxu0 %v1420
    %1422 = vmatprep.subr.mxu0 0.0
    %v1423 = vand.u32 %v1235, 4294901760
    %v1424 = vsub.f32 %v1235, %v1423
    %v1425 = vand.u32 %v1424, 4294901760
    %v1426 = vsub.f32 %v1424, %v1425
    %v1427 = vand.u32 %v1426, 4294901760
    %1428 = vmatpush1.msra.mxu0 %v1427
    %1429 = vmatprep.subr.mxu0 0.0
    %v1430 = vand.u32 %v1236, 4294901760
    %v1431 = vsub.f32 %v1236, %v1430
    %v1432 = vand.u32 %v1431, 4294901760
    %v1433 = vsub.f32 %v1431, %v1432
    %v1434 = vand.u32 %v1433, 4294901760
    %1435 = vmatpush1.msra.mxu0 %v1434
    %1436 = vmatprep.subr.mxu0 0.0
    %v1437 = vand.u32 %v1237, 4294901760
    %v1438 = vsub.f32 %v1237, %v1437
    %v1439 = vand.u32 %v1438, 4294901760
    %v1440 = vsub.f32 %v1438, %v1439
    %v1441 = vand.u32 %v1440, 4294901760
    %1442 = vmatpush1.msra.mxu0 %v1441
    %1443 = vmatprep.subr.mxu0 0.0
    %v1444 = vand.u32 %v1238, 4294901760
    %v1445 = vsub.f32 %v1238, %v1444
    %v1446 = vand.u32 %v1445, 4294901760
    %v1447 = vsub.f32 %v1445, %v1446
    %v1448 = vand.u32 %v1447, 4294901760
    %1449 = vmatpush1.msra.mxu0 %v1448
    %1450 = vmatprep.subr.mxu0 0.0
    %1451 = vmatpush1.msra.mxu0 0.0
    %1452 = vmatprep.subr.mxu0 0.0
    %1453 = vmatpush1.msra.mxu0 0.0
    %1454 = vmatprep.subr.mxu0 0.0
    %1455 = vmatpush1.msra.mxu0 0.0
    %1456 = vmatprep.subr.mxu0 0.0
    %1457 = vmatpush1.msra.mxu0 0.0
    %1458 = vmatprep.subr.mxu0 0.0
    %1459 = vmatpush1.msra.mxu0 0.0
    %1460 = vmatprep.subr.mxu0 0.0
    %1461 = vmatpush1.msra.mxu0 0.0
    %1462 = vmatprep.subr.mxu0 0.0
    %1463 = vmatpush1.msra.mxu0 0.0
    %1464 = vmatprep.subr.mxu0 0.0
    %1465 = vmatpush1.msra.mxu0 0.0
    %1466 = vmatprep.subr.mxu0 0.0
    %1467 = vmatpush1.msra.mxu0 0.0
    %1468 = vmatprep.subr.mxu0 0.0
    %1469 = vmatpush1.msra.mxu0 0.0
    %1470 = vmatprep.subr.mxu0 0.0
    %1471 = vmatpush1.msra.mxu0 0.0
    %1472 = vmatprep.subr.mxu0 0.0
    %1473 = vmatpush1.msra.mxu0 0.0
    %1474 = vmatprep.subr.mxu0 0.0
    %1475 = vmatpush1.msra.mxu0 0.0
    %1476 = vmatprep.subr.mxu0 0.0
    %1477 = vmatpush1.msra.mxu0 0.0
    %1478 = vmatprep.subr.mxu0 0.0
    %1479 = vmatpush1.msra.mxu0 0.0
    %1480 = vmatprep.subr.mxu0 0.0
    %1481 = vmatpush1.msra.mxu0 0.0
    %1482 = vmatprep.mubr.f32.mxu0 0.0
    %v1483 = vand.u32 %v1221, 4294901760
    %1484 = vmatmul.mubr.f32.gmra.mrb[0].mxu0 %v1483
    %v1485 = vpop.f32.mrb[0].mxu0
    %v1486 = vadd.f32 %v1335, %v1485
    %v1487 = vpop.f32.mrb[0].mxu0
    %1488 = vdwg.mxu0
    %1489 = vmatprep.subr.mxu0 0.0
    %v1490 = vand.u32 %v1223, 4294901760
    %v1491 = vsub.f32 %v1223, %v1490
    %1492 = vmatpush1.msra.mxu0 %v1491
    %1493 = vmatprep.subr.mxu0 0.0
    %v1494 = vand.u32 %v1224, 4294901760
    %v1495 = vsub.f32 %v1224, %v1494
    %1496 = vmatpush1.msra.mxu0 %v1495
    %1497 = vmatprep.subr.mxu0 0.0
    %v1498 = vand.u32 %v1225, 4294901760
    %v1499 = vsub.f32 %v1225, %v1498
    %1500 = vmatpush1.msra.mxu0 %v1499
    %1501 = vmatprep.subr.mxu0 0.0
    %v1502 = vand.u32 %v1226, 4294901760
    %v1503 = vsub.f32 %v1226, %v1502
    %1504 = vmatpush1.msra.mxu0 %v1503
    %1505 = vmatprep.subr.mxu0 0.0
    %v1506 = vand.u32 %v1227, 4294901760
    %v1507 = vsub.f32 %v1227, %v1506
    %1508 = vmatpush1.msra.mxu0 %v1507
    %1509 = vmatprep.subr.mxu0 0.0
    %v1510 = vand.u32 %v1228, 4294901760
    %v1511 = vsub.f32 %v1228, %v1510
    %1512 = vmatpush1.msra.mxu0 %v1511
    %1513 = vmatprep.subr.mxu0 0.0
    %v1514 = vand.u32 %v1229, 4294901760
    %v1515 = vsub.f32 %v1229, %v1514
    %1516 = vmatpush1.msra.mxu0 %v1515
    %1517 = vmatprep.subr.mxu0 0.0
    %v1518 = vand.u32 %v1230, 4294901760
    %v1519 = vsub.f32 %v1230, %v1518
    %1520 = vmatpush1.msra.mxu0 %v1519
    %1521 = vmatprep.subr.mxu0 0.0
    %v1522 = vand.u32 %v1231, 4294901760
    %v1523 = vsub.f32 %v1231, %v1522
    %1524 = vmatpush1.msra.mxu0 %v1523
    %1525 = vmatprep.subr.mxu0 0.0
    %v1526 = vand.u32 %v1232, 4294901760
    %v1527 = vsub.f32 %v1232, %v1526
    %1528 = vmatpush1.msra.mxu0 %v1527
    %1529 = vmatprep.subr.mxu0 0.0
    %v1530 = vand.u32 %v1233, 4294901760
    %v1531 = vsub.f32 %v1233, %v1530
    %1532 = vmatpush1.msra.mxu0 %v1531
    %1533 = vmatprep.subr.mxu0 0.0
    %v1534 = vand.u32 %v1234, 4294901760
    %v1535 = vsub.f32 %v1234, %v1534
    %1536 = vmatpush1.msra.mxu0 %v1535
    %1537 = vmatprep.subr.mxu0 0.0
    %v1538 = vand.u32 %v1235, 4294901760
    %v1539 = vsub.f32 %v1235, %v1538
    %1540 = vmatpush1.msra.mxu0 %v1539
    %1541 = vmatprep.subr.mxu0 0.0
    %v1542 = vand.u32 %v1236, 4294901760
    %v1543 = vsub.f32 %v1236, %v1542
    %1544 = vmatpush1.msra.mxu0 %v1543
    %1545 = vmatprep.subr.mxu0 0.0
    %v1546 = vand.u32 %v1237, 4294901760
    %v1547 = vsub.f32 %v1237, %v1546
    %1548 = vmatpush1.msra.mxu0 %v1547
    %1549 = vmatprep.subr.mxu0 0.0
    %v1550 = vand.u32 %v1238, 4294901760
    %v1551 = vsub.f32 %v1238, %v1550
    %1552 = vmatpush1.msra.mxu0 %v1551
    %1553 = vmatprep.subr.mxu0 0.0
    %1554 = vmatpush1.msra.mxu0 0.0
    %1555 = vmatprep.subr.mxu0 0.0
    %1556 = vmatpush1.msra.mxu0 0.0
    %1557 = vmatprep.subr.mxu0 0.0
    %1558 = vmatpush1.msra.mxu0 0.0
    %1559 = vmatprep.subr.mxu0 0.0
    %1560 = vmatpush1.msra.mxu0 0.0
    %1561 = vmatprep.subr.mxu0 0.0
    %1562 = vmatpush1.msra.mxu0 0.0
    %1563 = vmatprep.subr.mxu0 0.0
    %1564 = vmatpush1.msra.mxu0 0.0
    %1565 = vmatprep.subr.mxu0 0.0
    %1566 = vmatpush1.msra.mxu0 0.0
    %1567 = vmatprep.subr.mxu0 0.0
    %1568 = vmatpush1.msra.mxu0 0.0
    %1569 = vmatprep.subr.mxu0 0.0
    %1570 = vmatpush1.msra.mxu0 0.0
    %1571 = vmatprep.subr.mxu0 0.0
    %1572 = vmatpush1.msra.mxu0 0.0
    %1573 = vmatprep.subr.mxu0 0.0
    %1574 = vmatpush1.msra.mxu0 0.0
    %1575 = vmatprep.subr.mxu0 0.0
    %1576 = vmatpush1.msra.mxu0 0.0
    %1577 = vmatprep.subr.mxu0 0.0
    %1578 = vmatpush1.msra.mxu0 0.0
    %1579 = vmatprep.subr.mxu0 0.0
    %1580 = vmatpush1.msra.mxu0 0.0
    %1581 = vmatprep.subr.mxu0 0.0
    %1582 = vmatpush1.msra.mxu0 0.0
    %1583 = vmatprep.subr.mxu0 0.0
    %1584 = vmatpush1.msra.mxu0 0.0
    %1585 = vmatprep.mubr.f32.mxu0 0.0
    %v1586 = vand.u32 %v1221, 4294901760
    %v1587 = vsub.f32 %v1221, %v1586
    %1588 = vmatmul.mubr.f32.gmra.mrb[0].mxu0 %v1587
    %v1589 = vpop.f32.mrb[0].mxu0
    %v1590 = vadd.f32 %v1486, %v1589
    %v1591 = vpop.f32.mrb[0].mxu0
    %1592 = vdwg.mxu0
    %1593 = vmatprep.subr.mxu0 0.0
    %v1594 = vand.u32 %v1223, 4294901760
    %1595 = vmatpush1.msra.mxu0 %v1594
    %1596 = vmatprep.subr.mxu0 0.0
    %v1597 = vand.u32 %v1224, 4294901760
    %1598 = vmatpush1.msra.mxu0 %v1597
    %1599 = vmatprep.subr.mxu0 0.0
    %v1600 = vand.u32 %v1225, 4294901760
    %1601 = vmatpush1.msra.mxu0 %v1600
    %1602 = vmatprep.subr.mxu0 0.0
    %v1603 = vand.u32 %v1226, 4294901760
    %1604 = vmatpush1.msra.mxu0 %v1603
    %1605 = vmatprep.subr.mxu0 0.0
    %v1606 = vand.u32 %v1227, 4294901760
    %1607 = vmatpush1.msra.mxu0 %v1606
    %1608 = vmatprep.subr.mxu0 0.0
    %v1609 = vand.u32 %v1228, 4294901760
    %1610 = vmatpush1.msra.mxu0 %v1609
    %1611 = vmatprep.subr.mxu0 0.0
    %v1612 = vand.u32 %v1229, 4294901760
    %1613 = vmatpush1.msra.mxu0 %v1612
    %1614 = vmatprep.subr.mxu0 0.0
    %v1615 = vand.u32 %v1230, 4294901760
    %1616 = vmatpush1.msra.mxu0 %v1615
    %1617 = vmatprep.subr.mxu0 0.0
    %v1618 = vand.u32 %v1231, 4294901760
    %1619 = vmatpush1.msra.mxu0 %v1618
    %1620 = vmatprep.subr.mxu0 0.0
    %v1621 = vand.u32 %v1232, 4294901760
    %1622 = vmatpush1.msra.mxu0 %v1621
    %1623 = vmatprep.subr.mxu0 0.0
    %v1624 = vand.u32 %v1233, 4294901760
    %1625 = vmatpush1.msra.mxu0 %v1624
    %1626 = vmatprep.subr.mxu0 0.0
    %v1627 = vand.u32 %v1234, 4294901760
    %1628 = vmatpush1.msra.mxu0 %v1627
    %1629 = vmatprep.subr.mxu0 0.0
    %v1630 = vand.u32 %v1235, 4294901760
    %1631 = vmatpush1.msra.mxu0 %v1630
    %1632 = vmatprep.subr.mxu0 0.0
    %v1633 = vand.u32 %v1236, 4294901760
    %1634 = vmatpush1.msra.mxu0 %v1633
    %1635 = vmatprep.subr.mxu0 0.0
    %v1636 = vand.u32 %v1237, 4294901760
    %1637 = vmatpush1.msra.mxu0 %v1636
    %1638 = vmatprep.subr.mxu0 0.0
    %v1639 = vand.u32 %v1238, 4294901760
    %1640 = vmatpush1.msra.mxu0 %v1639
    %1641 = vmatprep.subr.mxu0 0.0
    %1642 = vmatpush1.msra.mxu0 0.0
    %1643 = vmatprep.subr.mxu0 0.0
    %1644 = vmatpush1.msra.mxu0 0.0
    %1645 = vmatprep.subr.mxu0 0.0
    %1646 = vmatpush1.msra.mxu0 0.0
    %1647 = vmatprep.subr.mxu0 0.0
    %1648 = vmatpush1.msra.mxu0 0.0
    %1649 = vmatprep.subr.mxu0 0.0
    %1650 = vmatpush1.msra.mxu0 0.0
    %1651 = vmatprep.subr.mxu0 0.0
    %1652 = vmatpush1.msra.mxu0 0.0
    %1653 = vmatprep.subr.mxu0 0.0
    %1654 = vmatpush1.msra.mxu0 0.0
    %1655 = vmatprep.subr.mxu0 0.0
    %1656 = vmatpush1.msra.mxu0 0.0
    %1657 = vmatprep.subr.mxu0 0.0
    %1658 = vmatpush1.msra.mxu0 0.0
    %1659 = vmatprep.subr.mxu0 0.0
    %1660 = vmatpush1.msra.mxu0 0.0
    %1661 = vmatprep.subr.mxu0 0.0
    %1662 = vmatpush1.msra.mxu0 0.0
    %1663 = vmatprep.subr.mxu0 0.0
    %1664 = vmatpush1.msra.mxu0 0.0
    %1665 = vmatprep.subr.mxu0 0.0
    %1666 = vmatpush1.msra.mxu0 0.0
    %1667 = vmatprep.subr.mxu0 0.0
    %1668 = vmatpush1.msra.mxu0 0.0
    %1669 = vmatprep.subr.mxu0 0.0
    %1670 = vmatpush1.msra.mxu0 0.0
    %1671 = vmatprep.subr.mxu0 0.0
    %1672 = vmatpush1.msra.mxu0 0.0
    %1673 = vmatprep.mubr.f32.mxu0 0.0
    %v1674 = vand.u32 %v1221, 4294901760
    %v1675 = vsub.f32 %v1221, %v1674
    %v1676 = vand.u32 %v1675, 4294901760
    %1677 = vmatmul.mubr.f32.gmra.mrb[0].mxu0 %v1676
    %v1678 = vpop.f32.mrb[0].mxu0
    %v1679 = vadd.f32 %v1590, %v1678
    %v1680 = vpop.f32.mrb[0].mxu0
    %1681 = vdwg.mxu0
    %1682 = vmatprep.subr.mxu0 0.0
    %v1683 = vand.u32 %v1223, 4294901760
    %v1684 = vsub.f32 %v1223, %v1683
    %v1685 = vand.u32 %v1684, 4294901760
    %1686 = vmatpush1.msra.mxu0 %v1685
    %1687 = vmatprep.subr.mxu0 0.0
    %v1688 = vand.u32 %v1224, 4294901760
    %v1689 = vsub.f32 %v1224, %v1688
    %v1690 = vand.u32 %v1689, 4294901760
    %1691 = vmatpush1.msra.mxu0 %v1690
    %1692 = vmatprep.subr.mxu0 0.0
    %v1693 = vand.u32 %v1225, 4294901760
    %v1694 = vsub.f32 %v1225, %v1693
    %v1695 = vand.u32 %v1694, 4294901760
    %1696 = vmatpush1.msra.mxu0 %v1695
    %1697 = vmatprep.subr.mxu0 0.0
    %v1698 = vand.u32 %v1226, 4294901760
    %v1699 = vsub.f32 %v1226, %v1698
    %v1700 = vand.u32 %v1699, 4294901760
    %1701 = vmatpush1.msra.mxu0 %v1700
    %1702 = vmatprep.subr.mxu0 0.0
    %v1703 = vand.u32 %v1227, 4294901760
    %v1704 = vsub.f32 %v1227, %v1703
    %v1705 = vand.u32 %v1704, 4294901760
    %1706 = vmatpush1.msra.mxu0 %v1705
    %1707 = vmatprep.subr.mxu0 0.0
    %v1708 = vand.u32 %v1228, 4294901760
    %v1709 = vsub.f32 %v1228, %v1708
    %v1710 = vand.u32 %v1709, 4294901760
    %1711 = vmatpush1.msra.mxu0 %v1710
    %1712 = vmatprep.subr.mxu0 0.0
    %v1713 = vand.u32 %v1229, 4294901760
    %v1714 = vsub.f32 %v1229, %v1713
    %v1715 = vand.u32 %v1714, 4294901760
    %1716 = vmatpush1.msra.mxu0 %v1715
    %1717 = vmatprep.subr.mxu0 0.0
    %v1718 = vand.u32 %v1230, 4294901760
    %v1719 = vsub.f32 %v1230, %v1718
    %v1720 = vand.u32 %v1719, 4294901760
    %1721 = vmatpush1.msra.mxu0 %v1720
    %1722 = vmatprep.subr.mxu0 0.0
    %v1723 = vand.u32 %v1231, 4294901760
    %v1724 = vsub.f32 %v1231, %v1723
    %v1725 = vand.u32 %v1724, 4294901760
    %1726 = vmatpush1.msra.mxu0 %v1725
    %1727 = vmatprep.subr.mxu0 0.0
    %v1728 = vand.u32 %v1232, 4294901760
    %v1729 = vsub.f32 %v1232, %v1728
    %v1730 = vand.u32 %v1729, 4294901760
    %1731 = vmatpush1.msra.mxu0 %v1730
    %1732 = vmatprep.subr.mxu0 0.0
    %v1733 = vand.u32 %v1233, 4294901760
    %v1734 = vsub.f32 %v1233, %v1733
    %v1735 = vand.u32 %v1734, 4294901760
    %1736 = vmatpush1.msra.mxu0 %v1735
    %1737 = vmatprep.subr.mxu0 0.0
    %v1738 = vand.u32 %v1234, 4294901760
    %v1739 = vsub.f32 %v1234, %v1738
    %v1740 = vand.u32 %v1739, 4294901760
    %1741 = vmatpush1.msra.mxu0 %v1740
    %1742 = vmatprep.subr.mxu0 0.0
    %v1743 = vand.u32 %v1235, 4294901760
    %v1744 = vsub.f32 %v1235, %v1743
    %v1745 = vand.u32 %v1744, 4294901760
    %1746 = vmatpush1.msra.mxu0 %v1745
    %1747 = vmatprep.subr.mxu0 0.0
    %v1748 = vand.u32 %v1236, 4294901760
    %v1749 = vsub.f32 %v1236, %v1748
    %v1750 = vand.u32 %v1749, 4294901760
    %1751 = vmatpush1.msra.mxu0 %v1750
    %1752 = vmatprep.subr.mxu0 0.0
    %v1753 = vand.u32 %v1237, 4294901760
    %v1754 = vsub.f32 %v1237, %v1753
    %v1755 = vand.u32 %v1754, 4294901760
    %1756 = vmatpush1.msra.mxu0 %v1755
    %1757 = vmatprep.subr.mxu0 0.0
    %v1758 = vand.u32 %v1238, 4294901760
    %v1759 = vsub.f32 %v1238, %v1758
    %v1760 = vand.u32 %v1759, 4294901760
    %1761 = vmatpush1.msra.mxu0 %v1760
    %1762 = vmatprep.subr.mxu0 0.0
    %1763 = vmatpush1.msra.mxu0 0.0
    %1764 = vmatprep.subr.mxu0 0.0
    %1765 = vmatpush1.msra.mxu0 0.0
    %1766 = vmatprep.subr.mxu0 0.0
    %1767 = vmatpush1.msra.mxu0 0.0
    %1768 = vmatprep.subr.mxu0 0.0
    %1769 = vmatpush1.msra.mxu0 0.0
    %1770 = vmatprep.subr.mxu0 0.0
    %1771 = vmatpush1.msra.mxu0 0.0
    %1772 = vmatprep.subr.mxu0 0.0
    %1773 = vmatpush1.msra.mxu0 0.0
    %1774 = vmatprep.subr.mxu0 0.0
    %1775 = vmatpush1.msra.mxu0 0.0
    %1776 = vmatprep.subr.mxu0 0.0
    %1777 = vmatpush1.msra.mxu0 0.0
    %1778 = vmatprep.subr.mxu0 0.0
    %1779 = vmatpush1.msra.mxu0 0.0
    %1780 = vmatprep.subr.mxu0 0.0
    %1781 = vmatpush1.msra.mxu0 0.0
    %1782 = vmatprep.subr.mxu0 0.0
    %1783 = vmatpush1.msra.mxu0 0.0
    %1784 = vmatprep.subr.mxu0 0.0
    %1785 = vmatpush1.msra.mxu0 0.0
    %1786 = vmatprep.subr.mxu0 0.0
    %1787 = vmatpush1.msra.mxu0 0.0
    %1788 = vmatprep.subr.mxu0 0.0
    %1789 = vmatpush1.msra.mxu0 0.0
    %1790 = vmatprep.subr.mxu0 0.0
    %1791 = vmatpush1.msra.mxu0 0.0
    %1792 = vmatprep.subr.mxu0 0.0
    %1793 = vmatpush1.msra.mxu0 0.0
    %1794 = vmatprep.mubr.f32.mxu0 0.0
    %v1795 = vand.u32 %v1221, 4294901760
    %1796 = vmatmul.mubr.f32.gmra.mrb[0].mxu0 %v1795
    %v1797 = vpop.f32.mrb[0].mxu0
    %v1798 = vadd.f32 %v1679, %v1797
    %v1799 = vpop.f32.mrb[0].mxu0
    %1800 = vdwg.mxu0
    %1801 = vmatprep.subr.mxu0 0.0
    %v1802 = vand.u32 %v1223, 4294901760
    %1803 = vmatpush1.msra.mxu0 %v1802
    %1804 = vmatprep.subr.mxu0 0.0
    %v1805 = vand.u32 %v1224, 4294901760
    %1806 = vmatpush1.msra.mxu0 %v1805
    %1807 = vmatprep.subr.mxu0 0.0
    %v1808 = vand.u32 %v1225, 4294901760
    %1809 = vmatpush1.msra.mxu0 %v1808
    %1810 = vmatprep.subr.mxu0 0.0
    %v1811 = vand.u32 %v1226, 4294901760
    %1812 = vmatpush1.msra.mxu0 %v1811
    %1813 = vmatprep.subr.mxu0 0.0
    %v1814 = vand.u32 %v1227, 4294901760
    %1815 = vmatpush1.msra.mxu0 %v1814
    %1816 = vmatprep.subr.mxu0 0.0
    %v1817 = vand.u32 %v1228, 4294901760
    %1818 = vmatpush1.msra.mxu0 %v1817
    %1819 = vmatprep.subr.mxu0 0.0
    %v1820 = vand.u32 %v1229, 4294901760
    %1821 = vmatpush1.msra.mxu0 %v1820
    %1822 = vmatprep.subr.mxu0 0.0
    %v1823 = vand.u32 %v1230, 4294901760
    %1824 = vmatpush1.msra.mxu0 %v1823
    %1825 = vmatprep.subr.mxu0 0.0
    %v1826 = vand.u32 %v1231, 4294901760
    %1827 = vmatpush1.msra.mxu0 %v1826
    %1828 = vmatprep.subr.mxu0 0.0
    %v1829 = vand.u32 %v1232, 4294901760
    %1830 = vmatpush1.msra.mxu0 %v1829
    %1831 = vmatprep.subr.mxu0 0.0
    %v1832 = vand.u32 %v1233, 4294901760
    %1833 = vmatpush1.msra.mxu0 %v1832
    %1834 = vmatprep.subr.mxu0 0.0
    %v1835 = vand.u32 %v1234, 4294901760
    %1836 = vmatpush1.msra.mxu0 %v1835
    %1837 = vmatprep.subr.mxu0 0.0
    %v1838 = vand.u32 %v1235, 4294901760
    %1839 = vmatpush1.msra.mxu0 %v1838
    %1840 = vmatprep.subr.mxu0 0.0
    %v1841 = vand.u32 %v1236, 4294901760
    %1842 = vmatpush1.msra.mxu0 %v1841
    %1843 = vmatprep.subr.mxu0 0.0
    %v1844 = vand.u32 %v1237, 4294901760
    %1845 = vmatpush1.msra.mxu0 %v1844
    %1846 = vmatprep.subr.mxu0 0.0
    %v1847 = vand.u32 %v1238, 4294901760
    %1848 = vmatpush1.msra.mxu0 %v1847
    %1849 = vmatprep.subr.mxu0 0.0
    %1850 = vmatpush1.msra.mxu0 0.0
    %1851 = vmatprep.subr.mxu0 0.0
    %1852 = vmatpush1.msra.mxu0 0.0
    %1853 = vmatprep.subr.mxu0 0.0
    %1854 = vmatpush1.msra.mxu0 0.0
    %1855 = vmatprep.subr.mxu0 0.0
    %1856 = vmatpush1.msra.mxu0 0.0
    %1857 = vmatprep.subr.mxu0 0.0
    %1858 = vmatpush1.msra.mxu0 0.0
    %1859 = vmatprep.subr.mxu0 0.0
    %1860 = vmatpush1.msra.mxu0 0.0
    %1861 = vmatprep.subr.mxu0 0.0
    %1862 = vmatpush1.msra.mxu0 0.0
    %1863 = vmatprep.subr.mxu0 0.0
    %1864 = vmatpush1.msra.mxu0 0.0
    %1865 = vmatprep.subr.mxu0 0.0
    %1866 = vmatpush1.msra.mxu0 0.0
    %1867 = vmatprep.subr.mxu0 0.0
    %1868 = vmatpush1.msra.mxu0 0.0
    %1869 = vmatprep.subr.mxu0 0.0
    %1870 = vmatpush1.msra.mxu0 0.0
    %1871 = vmatprep.subr.mxu0 0.0
    %1872 = vmatpush1.msra.mxu0 0.0
    %1873 = vmatprep.subr.mxu0 0.0
    %1874 = vmatpush1.msra.mxu0 0.0
    %1875 = vmatprep.subr.mxu0 0.0
    %1876 = vmatpush1.msra.mxu0 0.0
    %1877 = vmatprep.subr.mxu0 0.0
    %1878 = vmatpush1.msra.mxu0 0.0
    %1879 = vmatprep.subr.mxu0 0.0
    %1880 = vmatpush1.msra.mxu0 0.0
    %1881 = vmatprep.mubr.f32.mxu0 0.0
    %v1882 = vand.u32 %v1221, 4294901760
    %1883 = vmatmul.mubr.f32.gmra.mrb[0].mxu0 %v1882
    %v1884 = vpop.f32.mrb[0].mxu0
    %v1885 = vadd.f32 %v1798, %v1884
    %v1886 = vpop.f32.mrb[0].mxu0
    %1887 = vdwg.mxu0
    %v1888 = vmax.f32 %v1885, 0.0
    %s1889 = scalar_lea.vmem [#allocation4], 384
    %v1890 = vld [vmem:[%s1889] sm:$0xff]
    %v1891 = vld [vmem:[%s1889 + $0x8] sm:$0xff]
    %v1892 = vld [vmem:[%s1889 + $0x10] sm:$0xff]
    %v1893 = vld [vmem:[%s1889 + $0x18] sm:$0xff]
    %v1894 = vld [vmem:[%s1889 + $0x20] sm:$0xff]
    %v1895 = vld [vmem:[%s1889 + $0x28] sm:$0xff]
    %v1896 = vld [vmem:[%s1889 + $0x30] sm:$0xff]
    %v1897 = vld [vmem:[%s1889 + $0x38] sm:$0xff]
    %v1898 = vld [vmem:[%s1889 + $0x40] sm:$0xff]
    %v1899 = vld [vmem:[%s1889 + $0x48] sm:$0xff]
    %v1900 = vld [vmem:[%s1889 + $0x50] sm:$0xff]
    %v1901 = vld [vmem:[%s1889 + $0x58] sm:$0xff]
    %v1902 = vld [vmem:[%s1889 + $0x60] sm:$0xff]
    %v1903 = vld [vmem:[%s1889 + $0x68] sm:$0xff]
    %v1904 = vld [vmem:[%s1889 + $0x70] sm:$0xff]
    %v1905 = vld [vmem:[%s1889 + $0x78] sm:$0xff]
    %s1906 = scalar_lea.vmem [#allocation6], 3
    %v1907 = vld [vmem:[%s1906] sm:$0x1]
    %v1909 = vlaneseq
    %v1910 = vshrl.u32 %v1909, 7
    %v1911 = vsub.s32 0, %v1910
    %v1912 = vrot.slane %v1907, %v1911
    %1914 = vmatprep.subr.mxu0 0.0
    %v1915 = vand.u32 %v1890, 4294901760
    %1916 = vmatpush1.msra.mxu0 %v1915
    %1917 = vmatprep.subr.mxu0 0.0
    %v1918 = vand.u32 %v1891, 4294901760
    %1919 = vmatpush1.msra.mxu0 %v1918
    %1920 = vmatprep.subr.mxu0 0.0
    %v1921 = vand.u32 %v1892, 4294901760
    %1922 = vmatpush1.msra.mxu0 %v1921
    %1923 = vmatprep.subr.mxu0 0.0
    %v1924 = vand.u32 %v1893, 4294901760
    %1925 = vmatpush1.msra.mxu0 %v1924
    %1926 = vmatprep.subr.mxu0 0.0
    %v1927 = vand.u32 %v1894, 4294901760
    %1928 = vmatpush1.msra.mxu0 %v1927
    %1929 = vmatprep.subr.mxu0 0.0
    %v1930 = vand.u32 %v1895, 4294901760
    %1931 = vmatpush1.msra.mxu0 %v1930
    %1932 = vmatprep.subr.mxu0 0.0
    %v1933 = vand.u32 %v1896, 4294901760
    %1934 = vmatpush1.msra.mxu0 %v1933
    %1935 = vmatprep.subr.mxu0 0.0
    %v1936 = vand.u32 %v1897, 4294901760
    %1937 = vmatpush1.msra.mxu0 %v1936
    %1938 = vmatprep.subr.mxu0 0.0
    %v1939 = vand.u32 %v1898, 4294901760
    %1940 = vmatpush1.msra.mxu0 %v1939
    %1941 = vmatprep.subr.mxu0 0.0
    %v1942 = vand.u32 %v1899, 4294901760
    %1943 = vmatpush1.msra.mxu0 %v1942
    %1944 = vmatprep.subr.mxu0 0.0
    %v1945 = vand.u32 %v1900, 4294901760
    %1946 = vmatpush1.msra.mxu0 %v1945
    %1947 = vmatprep.subr.mxu0 0.0
    %v1948 = vand.u32 %v1901, 4294901760
    %1949 = vmatpush1.msra.mxu0 %v1948
    %1950 = vmatprep.subr.mxu0 0.0
    %v1951 = vand.u32 %v1902, 4294901760
    %1952 = vmatpush1.msra.mxu0 %v1951
    %1953 = vmatprep.subr.mxu0 0.0
    %v1954 = vand.u32 %v1903, 4294901760
    %1955 = vmatpush1.msra.mxu0 %v1954
    %1956 = vmatprep.subr.mxu0 0.0
    %v1957 = vand.u32 %v1904, 4294901760
    %1958 = vmatpush1.msra.mxu0 %v1957
    %1959 = vmatprep.subr.mxu0 0.0
    %v1960 = vand.u32 %v1905, 4294901760
    %1961 = vmatpush1.msra.mxu0 %v1960
    %1962 = vmatprep.subr.mxu0 0.0
    %1963 = vmatpush1.msra.mxu0 0.0
    %1964 = vmatprep.subr.mxu0 0.0
    %1965 = vmatpush1.msra.mxu0 0.0
    %1966 = vmatprep.subr.mxu0 0.0
    %1967 = vmatpush1.msra.mxu0 0.0
    %1968 = vmatprep.subr.mxu0 0.0
    %1969 = vmatpush1.msra.mxu0 0.0
    %1970 = vmatprep.subr.mxu0 0.0
    %1971 = vmatpush1.msra.mxu0 0.0
    %1972 = vmatprep.subr.mxu0 0.0
    %1973 = vmatpush1.msra.mxu0 0.0
    %1974 = vmatprep.subr.mxu0 0.0
    %1975 = vmatpush1.msra.mxu0 0.0
    %1976 = vmatprep.subr.mxu0 0.0
    %1977 = vmatpush1.msra.mxu0 0.0
    %1978 = vmatprep.subr.mxu0 0.0
    %1979 = vmatpush1.msra.mxu0 0.0
    %1980 = vmatprep.subr.mxu0 0.0
    %1981 = vmatpush1.msra.mxu0 0.0
    %1982 = vmatprep.subr.mxu0 0.0
    %1983 = vmatpush1.msra.mxu0 0.0
    %1984 = vmatprep.subr.mxu0 0.0
    %1985 = vmatpush1.msra.mxu0 0.0
    %1986 = vmatprep.subr.mxu0 0.0
    %1987 = vmatpush1.msra.mxu0 0.0
    %1988 = vmatprep.subr.mxu0 0.0
    %1989 = vmatpush1.msra.mxu0 0.0
    %1990 = vmatprep.subr.mxu0 0.0
    %1991 = vmatpush1.msra.mxu0 0.0
    %1992 = vmatprep.subr.mxu0 0.0
    %1993 = vmatpush1.msra.mxu0 0.0
    %1994 = vmatprep.mubr.f32.mxu0 0.0
    %v1995 = vand.u32 %v1888, 4294901760
    %v1996 = vsub.f32 %v1888, %v1995
    %v1997 = vand.u32 %v1996, 4294901760
    %v1998 = vsub.f32 %v1996, %v1997
    %v1999 = vand.u32 %v1998, 4294901760
    %2000 = vmatmul.mubr.f32.gmra.mrb[0].mxu0 %v1999
    %v2001 = vpop.f32.mrb[0].mxu0
    %v2002 = vadd.f32 %v1912, %v2001
    %v2003 = vpop.f32.mrb[0].mxu0
    %2004 = vdwg.mxu0
    %2005 = vmatprep.subr.mxu0 0.0
    %v2006 = vand.u32 %v1890, 4294901760
    %v2007 = vsub.f32 %v1890, %v2006
    %v2008 = vand.u32 %v2007, 4294901760
    %v2009 = vsub.f32 %v2007, %v2008
    %v2010 = vand.u32 %v2009, 4294901760
    %2011 = vmatpush1.msra.mxu0 %v2010
    %2012 = vmatprep.subr.mxu0 0.0
    %v2013 = vand.u32 %v1891, 4294901760
    %v2014 = vsub.f32 %v1891, %v2013
    %v2015 = vand.u32 %v2014, 4294901760
    %v2016 = vsub.f32 %v2014, %v2015
    %v2017 = vand.u32 %v2016, 4294901760
    %2018 = vmatpush1.msra.mxu0 %v2017
    %2019 = vmatprep.subr.mxu0 0.0
    %v2020 = vand.u32 %v1892, 4294901760
    %v2021 = vsub.f32 %v1892, %v2020
    %v2022 = vand.u32 %v2021, 4294901760
    %v2023 = vsub.f32 %v2021, %v2022
    %v2024 = vand.u32 %v2023, 4294901760
    %2025 = vmatpush1.msra.mxu0 %v2024
    %2026 = vmatprep.subr.mxu0 0.0
    %v2027 = vand.u32 %v1893, 4294901760
    %v2028 = vsub.f32 %v1893, %v2027
    %v2029 = vand.u32 %v2028, 4294901760
    %v2030 = vsub.f32 %v2028, %v2029
    %v2031 = vand.u32 %v2030, 4294901760
    %2032 = vmatpush1.msra.mxu0 %v2031
    %2033 = vmatprep.subr.mxu0 0.0
    %v2034 = vand.u32 %v1894, 4294901760
    %v2035 = vsub.f32 %v1894, %v2034
    %v2036 = vand.u32 %v2035, 4294901760
    %v2037 = vsub.f32 %v2035, %v2036
    %v2038 = vand.u32 %v2037, 4294901760
    %2039 = vmatpush1.msra.mxu0 %v2038
    %2040 = vmatprep.subr.mxu0 0.0
    %v2041 = vand.u32 %v1895, 4294901760
    %v2042 = vsub.f32 %v1895, %v2041
    %v2043 = vand.u32 %v2042, 4294901760
    %v2044 = vsub.f32 %v2042, %v2043
    %v2045 = vand.u32 %v2044, 4294901760
    %2046 = vmatpush1.msra.mxu0 %v2045
    %2047 = vmatprep.subr.mxu0 0.0
    %v2048 = vand.u32 %v1896, 4294901760
    %v2049 = vsub.f32 %v1896, %v2048
    %v2050 = vand.u32 %v2049, 4294901760
    %v2051 = vsub.f32 %v2049, %v2050
    %v2052 = vand.u32 %v2051, 4294901760
    %2053 = vmatpush1.msra.mxu0 %v2052
    %2054 = vmatprep.subr.mxu0 0.0
    %v2055 = vand.u32 %v1897, 4294901760
    %v2056 = vsub.f32 %v1897, %v2055
    %v2057 = vand.u32 %v2056, 4294901760
    %v2058 = vsub.f32 %v2056, %v2057
    %v2059 = vand.u32 %v2058, 4294901760
    %2060 = vmatpush1.msra.mxu0 %v2059
    %2061 = vmatprep.subr.mxu0 0.0
    %v2062 = vand.u32 %v1898, 4294901760
    %v2063 = vsub.f32 %v1898, %v2062
    %v2064 = vand.u32 %v2063, 4294901760
    %v2065 = vsub.f32 %v2063, %v2064
    %v2066 = vand.u32 %v2065, 4294901760
    %2067 = vmatpush1.msra.mxu0 %v2066
    %2068 = vmatprep.subr.mxu0 0.0
    %v2069 = vand.u32 %v1899, 4294901760
    %v2070 = vsub.f32 %v1899, %v2069
    %v2071 = vand.u32 %v2070, 4294901760
    %v2072 = vsub.f32 %v2070, %v2071
    %v2073 = vand.u32 %v2072, 4294901760
    %2074 = vmatpush1.msra.mxu0 %v2073
    %2075 = vmatprep.subr.mxu0 0.0
    %v2076 = vand.u32 %v1900, 4294901760
    %v2077 = vsub.f32 %v1900, %v2076
    %v2078 = vand.u32 %v2077, 4294901760
    %v2079 = vsub.f32 %v2077, %v2078
    %v2080 = vand.u32 %v2079, 4294901760
    %2081 = vmatpush1.msra.mxu0 %v2080
    %2082 = vmatprep.subr.mxu0 0.0
    %v2083 = vand.u32 %v1901, 4294901760
    %v2084 = vsub.f32 %v1901, %v2083
    %v2085 = vand.u32 %v2084, 4294901760
    %v2086 = vsub.f32 %v2084, %v2085
    %v2087 = vand.u32 %v2086, 4294901760
    %2088 = vmatpush1.msra.mxu0 %v2087
    %2089 = vmatprep.subr.mxu0 0.0
    %v2090 = vand.u32 %v1902, 4294901760
    %v2091 = vsub.f32 %v1902, %v2090
    %v2092 = vand.u32 %v2091, 4294901760
    %v2093 = vsub.f32 %v2091, %v2092
    %v2094 = vand.u32 %v2093, 4294901760
    %2095 = vmatpush1.msra.mxu0 %v2094
    %2096 = vmatprep.subr.mxu0 0.0
    %v2097 = vand.u32 %v1903, 4294901760
    %v2098 = vsub.f32 %v1903, %v2097
    %v2099 = vand.u32 %v2098, 4294901760
    %v2100 = vsub.f32 %v2098, %v2099
    %v2101 = vand.u32 %v2100, 4294901760
    %2102 = vmatpush1.msra.mxu0 %v2101
    %2103 = vmatprep.subr.mxu0 0.0
    %v2104 = vand.u32 %v1904, 4294901760
    %v2105 = vsub.f32 %v1904, %v2104
    %v2106 = vand.u32 %v2105, 4294901760
    %v2107 = vsub.f32 %v2105, %v2106
    %v2108 = vand.u32 %v2107, 4294901760
    %2109 = vmatpush1.msra.mxu0 %v2108
    %2110 = vmatprep.subr.mxu0 0.0
    %v2111 = vand.u32 %v1905, 4294901760
    %v2112 = vsub.f32 %v1905, %v2111
    %v2113 = vand.u32 %v2112, 4294901760
    %v2114 = vsub.f32 %v2112, %v2113
    %v2115 = vand.u32 %v2114, 4294901760
    %2116 = vmatpush1.msra.mxu0 %v2115
    %2117 = vmatprep.subr.mxu0 0.0
    %2118 = vmatpush1.msra.mxu0 0.0
    %2119 = vmatprep.subr.mxu0 0.0
    %2120 = vmatpush1.msra.mxu0 0.0
    %2121 = vmatprep.subr.mxu0 0.0
    %2122 = vmatpush1.msra.mxu0 0.0
    %2123 = vmatprep.subr.mxu0 0.0
    %2124 = vmatpush1.msra.mxu0 0.0
    %2125 = vmatprep.subr.mxu0 0.0
    %2126 = vmatpush1.msra.mxu0 0.0
    %2127 = vmatprep.subr.mxu0 0.0
    %2128 = vmatpush1.msra.mxu0 0.0
    %2129 = vmatprep.subr.mxu0 0.0
    %2130 = vmatpush1.msra.mxu0 0.0
    %2131 = vmatprep.subr.mxu0 0.0
    %2132 = vmatpush1.msra.mxu0 0.0
    %2133 = vmatprep.subr.mxu0 0.0
    %2134 = vmatpush1.msra.mxu0 0.0
    %2135 = vmatprep.subr.mxu0 0.0
    %2136 = vmatpush1.msra.mxu0 0.0
    %2137 = vmatprep.subr.mxu0 0.0
    %2138 = vmatpush1.msra.mxu0 0.0
    %2139 = vmatprep.subr.mxu0 0.0
    %2140 = vmatpush1.msra.mxu0 0.0
    %2141 = vmatprep.subr.mxu0 0.0
    %2142 = vmatpush1.msra.mxu0 0.0
    %2143 = vmatprep.subr.mxu0 0.0
    %2144 = vmatpush1.msra.mxu0 0.0
    %2145 = vmatprep.subr.mxu0 0.0
    %2146 = vmatpush1.msra.mxu0 0.0
    %2147 = vmatprep.subr.mxu0 0.0
    %2148 = vmatpush1.msra.mxu0 0.0
    %2149 = vmatprep.mubr.f32.mxu0 0.0
    %v2150 = vand.u32 %v1888, 4294901760
    %2151 = vmatmul.mubr.f32.gmra.mrb[0].mxu0 %v2150
    %v2152 = vpop.f32.mrb[0].mxu0
    %v2153 = vadd.f32 %v2002, %v2152
    %v2154 = vpop.f32.mrb[0].mxu0
    %2155 = vdwg.mxu0
    %2156 = vmatprep.subr.mxu0 0.0
    %v2157 = vand.u32 %v1890, 4294901760
    %v2158 = vsub.f32 %v1890, %v2157
    %2159 = vmatpush1.msra.mxu0 %v2158
    %2160 = vmatprep.subr.mxu0 0.0
    %v2161 = vand.u32 %v1891, 4294901760
    %v2162 = vsub.f32 %v1891, %v2161
    %2163 = vmatpush1.msra.mxu0 %v2162
    %2164 = vmatprep.subr.mxu0 0.0
    %v2165 = vand.u32 %v1892, 4294901760
    %v2166 = vsub.f32 %v1892, %v2165
    %2167 = vmatpush1.msra.mxu0 %v2166
    %2168 = vmatprep.subr.mxu0 0.0
    %v2169 = vand.u32 %v1893, 4294901760
    %v2170 = vsub.f32 %v1893, %v2169
    %2171 = vmatpush1.msra.mxu0 %v2170
    %2172 = vmatprep.subr.mxu0 0.0
    %v2173 = vand.u32 %v1894, 4294901760
    %v2174 = vsub.f32 %v1894, %v2173
    %2175 = vmatpush1.msra.mxu0 %v2174
    %2176 = vmatprep.subr.mxu0 0.0
    %v2177 = vand.u32 %v1895, 4294901760
    %v2178 = vsub.f32 %v1895, %v2177
    %2179 = vmatpush1.msra.mxu0 %v2178
    %2180 = vmatprep.subr.mxu0 0.0
    %v2181 = vand.u32 %v1896, 4294901760
    %v2182 = vsub.f32 %v1896, %v2181
    %2183 = vmatpush1.msra.mxu0 %v2182
    %2184 = vmatprep.subr.mxu0 0.0
    %v2185 = vand.u32 %v1897, 4294901760
    %v2186 = vsub.f32 %v1897, %v2185
    %2187 = vmatpush1.msra.mxu0 %v2186
    %2188 = vmatprep.subr.mxu0 0.0
    %v2189 = vand.u32 %v1898, 4294901760
    %v2190 = vsub.f32 %v1898, %v2189
    %2191 = vmatpush1.msra.mxu0 %v2190
    %2192 = vmatprep.subr.mxu0 0.0
    %v2193 = vand.u32 %v1899, 4294901760
    %v2194 = vsub.f32 %v1899, %v2193
    %2195 = vmatpush1.msra.mxu0 %v2194
    %2196 = vmatprep.subr.mxu0 0.0
    %v2197 = vand.u32 %v1900, 4294901760
    %v2198 = vsub.f32 %v1900, %v2197
    %2199 = vmatpush1.msra.mxu0 %v2198
    %2200 = vmatprep.subr.mxu0 0.0
    %v2201 = vand.u32 %v1901, 4294901760
    %v2202 = vsub.f32 %v1901, %v2201
    %2203 = vmatpush1.msra.mxu0 %v2202
    %2204 = vmatprep.subr.mxu0 0.0
    %v2205 = vand.u32 %v1902, 4294901760
    %v2206 = vsub.f32 %v1902, %v2205
    %2207 = vmatpush1.msra.mxu0 %v2206
    %2208 = vmatprep.subr.mxu0 0.0
    %v2209 = vand.u32 %v1903, 4294901760
    %v2210 = vsub.f32 %v1903, %v2209
    %2211 = vmatpush1.msra.mxu0 %v2210
    %2212 = vmatprep.subr.mxu0 0.0
    %v2213 = vand.u32 %v1904, 4294901760
    %v2214 = vsub.f32 %v1904, %v2213
    %2215 = vmatpush1.msra.mxu0 %v2214
    %2216 = vmatprep.subr.mxu0 0.0
    %v2217 = vand.u32 %v1905, 4294901760
    %v2218 = vsub.f32 %v1905, %v2217
    %2219 = vmatpush1.msra.mxu0 %v2218
    %2220 = vmatprep.subr.mxu0 0.0
    %2221 = vmatpush1.msra.mxu0 0.0
    %2222 = vmatprep.subr.mxu0 0.0
    %2223 = vmatpush1.msra.mxu0 0.0
    %2224 = vmatprep.subr.mxu0 0.0
    %2225 = vmatpush1.msra.mxu0 0.0
    %2226 = vmatprep.subr.mxu0 0.0
    %2227 = vmatpush1.msra.mxu0 0.0
    %2228 = vmatprep.subr.mxu0 0.0
    %2229 = vmatpush1.msra.mxu0 0.0
    %2230 = vmatprep.subr.mxu0 0.0
    %2231 = vmatpush1.msra.mxu0 0.0
    %2232 = vmatprep.subr.mxu0 0.0
    %2233 = vmatpush1.msra.mxu0 0.0
    %2234 = vmatprep.subr.mxu0 0.0
    %2235 = vmatpush1.msra.mxu0 0.0
    %2236 = vmatprep.subr.mxu0 0.0
    %2237 = vmatpush1.msra.mxu0 0.0
    %2238 = vmatprep.subr.mxu0 0.0
    %2239 = vmatpush1.msra.mxu0 0.0
    %2240 = vmatprep.subr.mxu0 0.0
    %2241 = vmatpush1.msra.mxu0 0.0
    %2242 = vmatprep.subr.mxu0 0.0
    %2243 = vmatpush1.msra.mxu0 0.0
    %2244 = vmatprep.subr.mxu0 0.0
    %2245 = vmatpush1.msra.mxu0 0.0
    %2246 = vmatprep.subr.mxu0 0.0
    %2247 = vmatpush1.msra.mxu0 0.0
    %2248 = vmatprep.subr.mxu0 0.0
    %2249 = vmatpush1.msra.mxu0 0.0
    %2250 = vmatprep.subr.mxu0 0.0
    %2251 = vmatpush1.msra.mxu0 0.0
    %2252 = vmatprep.mubr.f32.mxu0 0.0
    %v2253 = vand.u32 %v1888, 4294901760
    %v2254 = vsub.f32 %v1888, %v2253
    %2255 = vmatmul.mubr.f32.gmra.mrb[0].mxu0 %v2254
    %v2256 = vpop.f32.mrb[0].mxu0
    %v2257 = vadd.f32 %v2153, %v2256
    %v2258 = vpop.f32.mrb[0].mxu0
    %2259 = vdwg.mxu0
    %2260 = vmatprep.subr.mxu0 0.0
    %v2261 = vand.u32 %v1890, 4294901760
    %2262 = vmatpush1.msra.mxu0 %v2261
    %2263 = vmatprep.subr.mxu0 0.0
    %v2264 = vand.u32 %v1891, 4294901760
    %2265 = vmatpush1.msra.mxu0 %v2264
    %2266 = vmatprep.subr.mxu0 0.0
    %v2267 = vand.u32 %v1892, 4294901760
    %2268 = vmatpush1.msra.mxu0 %v2267
    %2269 = vmatprep.subr.mxu0 0.0
    %v2270 = vand.u32 %v1893, 4294901760
    %2271 = vmatpush1.msra.mxu0 %v2270
    %2272 = vmatprep.subr.mxu0 0.0
    %v2273 = vand.u32 %v1894, 4294901760
    %2274 = vmatpush1.msra.mxu0 %v2273
    %2275 = vmatprep.subr.mxu0 0.0
    %v2276 = vand.u32 %v1895, 4294901760
    %2277 = vmatpush1.msra.mxu0 %v2276
    %2278 = vmatprep.subr.mxu0 0.0
    %v2279 = vand.u32 %v1896, 4294901760
    %2280 = vmatpush1.msra.mxu0 %v2279
    %2281 = vmatprep.subr.mxu0 0.0
    %v2282 = vand.u32 %v1897, 4294901760
    %2283 = vmatpush1.msra.mxu0 %v2282
    %2284 = vmatprep.subr.mxu0 0.0
    %v2285 = vand.u32 %v1898, 4294901760
    %2286 = vmatpush1.msra.mxu0 %v2285
    %2287 = vmatprep.subr.mxu0 0.0
    %v2288 = vand.u32 %v1899, 4294901760
    %2289 = vmatpush1.msra.mxu0 %v2288
    %2290 = vmatprep.subr.mxu0 0.0
    %v2291 = vand.u32 %v1900, 4294901760
    %2292 = vmatpush1.msra.mxu0 %v2291
    %2293 = vmatprep.subr.mxu0 0.0
    %v2294 = vand.u32 %v1901, 4294901760
    %2295 = vmatpush1.msra.mxu0 %v2294
    %2296 = vmatprep.subr.mxu0 0.0
    %v2297 = vand.u32 %v1902, 4294901760
    %2298 = vmatpush1.msra.mxu0 %v2297
    %2299 = vmatprep.subr.mxu0 0.0
    %v2300 = vand.u32 %v1903, 4294901760
    %2301 = vmatpush1.msra.mxu0 %v2300
    %2302 = vmatprep.subr.mxu0 0.0
    %v2303 = vand.u32 %v1904, 4294901760
    %2304 = vmatpush1.msra.mxu0 %v2303
    %2305 = vmatprep.subr.mxu0 0.0
    %v2306 = vand.u32 %v1905, 4294901760
    %2307 = vmatpush1.msra.mxu0 %v2306
    %2308 = vmatprep.subr.mxu0 0.0
    %2309 = vmatpush1.msra.mxu0 0.0
    %2310 = vmatprep.subr.mxu0 0.0
    %2311 = vmatpush1.msra.mxu0 0.0
    %2312 = vmatprep.subr.mxu0 0.0
    %2313 = vmatpush1.msra.mxu0 0.0
    %2314 = vmatprep.subr.mxu0 0.0
    %2315 = vmatpush1.msra.mxu0 0.0
    %2316 = vmatprep.subr.mxu0 0.0
    %2317 = vmatpush1.msra.mxu0 0.0
    %2318 = vmatprep.subr.mxu0 0.0
    %2319 = vmatpush1.msra.mxu0 0.0
    %2320 = vmatprep.subr.mxu0 0.0
    %2321 = vmatpush1.msra.mxu0 0.0
    %2322 = vmatprep.subr.mxu0 0.0
    %2323 = vmatpush1.msra.mxu0 0.0
    %2324 = vmatprep.subr.mxu0 0.0
    %2325 = vmatpush1.msra.mxu0 0.0
    %2326 = vmatprep.subr.mxu0 0.0
    %2327 = vmatpush1.msra.mxu0 0.0
    %2328 = vmatprep.subr.mxu0 0.0
    %2329 = vmatpush1.msra.mxu0 0.0
    %2330 = vmatprep.subr.mxu0 0.0
    %2331 = vmatpush1.msra.mxu0 0.0
    %2332 = vmatprep.subr.mxu0 0.0
    %2333 = vmatpush1.msra.mxu0 0.0
    %2334 = vmatprep.subr.mxu0 0.0
    %2335 = vmatpush1.msra.mxu0 0.0
    %2336 = vmatprep.subr.mxu0 0.0
    %2337 = vmatpush1.msra.mxu0 0.0
    %2338 = vmatprep.subr.mxu0 0.0
    %2339 = vmatpush1.msra.mxu0 0.0
    %2340 = vmatprep.mubr.f32.mxu0 0.0
    %v2341 = vand.u32 %v1888, 4294901760
    %v2342 = vsub.f32 %v1888, %v2341
    %v2343 = vand.u32 %v2342, 4294901760
    %2344 = vmatmul.mubr.f32.gmra.mrb[0].mxu0 %v2343
    %v2345 = vpop.f32.mrb[0].mxu0
    %v2346 = vadd.f32 %v2257, %v2345
    %v2347 = vpop.f32.mrb[0].mxu0
    %2348 = vdwg.mxu0
    %2349 = vmatprep.subr.mxu0 0.0
    %v2350 = vand.u32 %v1890, 4294901760
    %v2351 = vsub.f32 %v1890, %v2350
    %v2352 = vand.u32 %v2351, 4294901760
    %2353 = vmatpush1.msra.mxu0 %v2352
    %2354 = vmatprep.subr.mxu0 0.0
    %v2355 = vand.u32 %v1891, 4294901760
    %v2356 = vsub.f32 %v1891, %v2355
    %v2357 = vand.u32 %v2356, 4294901760
    %2358 = vmatpush1.msra.mxu0 %v2357
    %2359 = vmatprep.subr.mxu0 0.0
    %v2360 = vand.u32 %v1892, 4294901760
    %v2361 = vsub.f32 %v1892, %v2360
    %v2362 = vand.u32 %v2361, 4294901760
    %2363 = vmatpush1.msra.mxu0 %v2362
    %2364 = vmatprep.subr.mxu0 0.0
    %v2365 = vand.u32 %v1893, 4294901760
    %v2366 = vsub.f32 %v1893, %v2365
    %v2367 = vand.u32 %v2366, 4294901760
    %2368 = vmatpush1.msra.mxu0 %v2367
    %2369 = vmatprep.subr.mxu0 0.0
    %v2370 = vand.u32 %v1894, 4294901760
    %v2371 = vsub.f32 %v1894, %v2370
    %v2372 = vand.u32 %v2371, 4294901760
    %2373 = vmatpush1.msra.mxu0 %v2372
    %2374 = vmatprep.subr.mxu0 0.0
    %v2375 = vand.u32 %v1895, 4294901760
    %v2376 = vsub.f32 %v1895, %v2375
    %v2377 = vand.u32 %v2376, 4294901760
    %2378 = vmatpush1.msra.mxu0 %v2377
    %2379 = vmatprep.subr.mxu0 0.0
    %v2380 = vand.u32 %v1896, 4294901760
    %v2381 = vsub.f32 %v1896, %v2380
    %v2382 = vand.u32 %v2381, 4294901760
    %2383 = vmatpush1.msra.mxu0 %v2382
    %2384 = vmatprep.subr.mxu0 0.0
    %v2385 = vand.u32 %v1897, 4294901760
    %v2386 = vsub.f32 %v1897, %v2385
    %v2387 = vand.u32 %v2386, 4294901760
    %2388 = vmatpush1.msra.mxu0 %v2387
    %2389 = vmatprep.subr.mxu0 0.0
    %v2390 = vand.u32 %v1898, 4294901760
    %v2391 = vsub.f32 %v1898, %v2390
    %v2392 = vand.u32 %v2391, 4294901760
    %2393 = vmatpush1.msra.mxu0 %v2392
    %2394 = vmatprep.subr.mxu0 0.0
    %v2395 = vand.u32 %v1899, 4294901760
    %v2396 = vsub.f32 %v1899, %v2395
    %v2397 = vand.u32 %v2396, 4294901760
    %2398 = vmatpush1.msra.mxu0 %v2397
    %2399 = vmatprep.subr.mxu0 0.0
    %v2400 = vand.u32 %v1900, 4294901760
    %v2401 = vsub.f32 %v1900, %v2400
    %v2402 = vand.u32 %v2401, 4294901760
    %2403 = vmatpush1.msra.mxu0 %v2402
    %2404 = vmatprep.subr.mxu0 0.0
    %v2405 = vand.u32 %v1901, 4294901760
    %v2406 = vsub.f32 %v1901, %v2405
    %v2407 = vand.u32 %v2406, 4294901760
    %2408 = vmatpush1.msra.mxu0 %v2407
    %2409 = vmatprep.subr.mxu0 0.0
    %v2410 = vand.u32 %v1902, 4294901760
    %v2411 = vsub.f32 %v1902, %v2410
    %v2412 = vand.u32 %v2411, 4294901760
    %2413 = vmatpush1.msra.mxu0 %v2412
    %2414 = vmatprep.subr.mxu0 0.0
    %v2415 = vand.u32 %v1903, 4294901760
    %v2416 = vsub.f32 %v1903, %v2415
    %v2417 = vand.u32 %v2416, 4294901760
    %2418 = vmatpush1.msra.mxu0 %v2417
    %2419 = vmatprep.subr.mxu0 0.0
    %v2420 = vand.u32 %v1904, 4294901760
    %v2421 = vsub.f32 %v1904, %v2420
    %v2422 = vand.u32 %v2421, 4294901760
    %2423 = vmatpush1.msra.mxu0 %v2422
    %2424 = vmatprep.subr.mxu0 0.0
    %v2425 = vand.u32 %v1905, 4294901760
    %v2426 = vsub.f32 %v1905, %v2425
    %v2427 = vand.u32 %v2426, 4294901760
    %2428 = vmatpush1.msra.mxu0 %v2427
    %2429 = vmatprep.subr.mxu0 0.0
    %2430 = vmatpush1.msra.mxu0 0.0
    %2431 = vmatprep.subr.mxu0 0.0
    %2432 = vmatpush1.msra.mxu0 0.0
    %2433 = vmatprep.subr.mxu0 0.0
    %2434 = vmatpush1.msra.mxu0 0.0
    %2435 = vmatprep.subr.mxu0 0.0
    %2436 = vmatpush1.msra.mxu0 0.0
    %2437 = vmatprep.subr.mxu0 0.0
    %2438 = vmatpush1.msra.mxu0 0.0
    %2439 = vmatprep.subr.mxu0 0.0
    %2440 = vmatpush1.msra.mxu0 0.0
    %2441 = vmatprep.subr.mxu0 0.0
    %2442 = vmatpush1.msra.mxu0 0.0
    %2443 = vmatprep.subr.mxu0 0.0
    %2444 = vmatpush1.msra.mxu0 0.0
    %2445 = vmatprep.subr.mxu0 0.0
    %2446 = vmatpush1.msra.mxu0 0.0
    %2447 = vmatprep.subr.mxu0 0.0
    %2448 = vmatpush1.msra.mxu0 0.0
    %2449 = vmatprep.subr.mxu0 0.0
    %2450 = vmatpush1.msra.mxu0 0.0
    %2451 = vmatprep.subr.mxu0 0.0
    %2452 = vmatpush1.msra.mxu0 0.0
    %2453 = vmatprep.subr.mxu0 0.0
    %2454 = vmatpush1.msra.mxu0 0.0
    %2455 = vmatprep.subr.mxu0 0.0
    %2456 = vmatpush1.msra.mxu0 0.0
    %2457 = vmatprep.subr.mxu0 0.0
    %2458 = vmatpush1.msra.mxu0 0.0
    %2459 = vmatprep.subr.mxu0 0.0
    %2460 = vmatpush1.msra.mxu0 0.0
    %2461 = vmatprep.mubr.f32.mxu0 0.0
    %v2462 = vand.u32 %v1888, 4294901760
    %2463 = vmatmul.mubr.f32.gmra.mrb[0].mxu0 %v2462
    %v2464 = vpop.f32.mrb[0].mxu0
    %v2465 = vadd.f32 %v2346, %v2464
    %v2466 = vpop.f32.mrb[0].mxu0
    %2467 = vdwg.mxu0
    %2468 = vmatprep.subr.mxu0 0.0
    %v2469 = vand.u32 %v1890, 4294901760
    %2470 = vmatpush1.msra.mxu0 %v2469
    %2471 = vmatprep.subr.mxu0 0.0
    %v2472 = vand.u32 %v1891, 4294901760
    %2473 = vmatpush1.msra.mxu0 %v2472
    %2474 = vmatprep.subr.mxu0 0.0
    %v2475 = vand.u32 %v1892, 4294901760
    %2476 = vmatpush1.msra.mxu0 %v2475
    %2477 = vmatprep.subr.mxu0 0.0
    %v2478 = vand.u32 %v1893, 4294901760
    %2479 = vmatpush1.msra.mxu0 %v2478
    %2480 = vmatprep.subr.mxu0 0.0
    %v2481 = vand.u32 %v1894, 4294901760
    %2482 = vmatpush1.msra.mxu0 %v2481
    %2483 = vmatprep.subr.mxu0 0.0
    %v2484 = vand.u32 %v1895, 4294901760
    %2485 = vmatpush1.msra.mxu0 %v2484
    %2486 = vmatprep.subr.mxu0 0.0
    %v2487 = vand.u32 %v1896, 4294901760
    %2488 = vmatpush1.msra.mxu0 %v2487
    %2489 = vmatprep.subr.mxu0 0.0
    %v2490 = vand.u32 %v1897, 4294901760
    %2491 = vmatpush1.msra.mxu0 %v2490
    %2492 = vmatprep.subr.mxu0 0.0
    %v2493 = vand.u32 %v1898, 4294901760
    %2494 = vmatpush1.msra.mxu0 %v2493
    %2495 = vmatprep.subr.mxu0 0.0
    %v2496 = vand.u32 %v1899, 4294901760
    %2497 = vmatpush1.msra.mxu0 %v2496
    %2498 = vmatprep.subr.mxu0 0.0
    %v2499 = vand.u32 %v1900, 4294901760
    %2500 = vmatpush1.msra.mxu0 %v2499
    %2501 = vmatprep.subr.mxu0 0.0
    %v2502 = vand.u32 %v1901, 4294901760
    %2503 = vmatpush1.msra.mxu0 %v2502
    %2504 = vmatprep.subr.mxu0 0.0
    %v2505 = vand.u32 %v1902, 4294901760
    %2506 = vmatpush1.msra.mxu0 %v2505
    %2507 = vmatprep.subr.mxu0 0.0
    %v2508 = vand.u32 %v1903, 4294901760
    %2509 = vmatpush1.msra.mxu0 %v2508
    %2510 = vmatprep.subr.mxu0 0.0
    %v2511 = vand.u32 %v1904, 4294901760
    %2512 = vmatpush1.msra.mxu0 %v2511
    %2513 = vmatprep.subr.mxu0 0.0
    %v2514 = vand.u32 %v1905, 4294901760
    %2515 = vmatpush1.msra.mxu0 %v2514
    %2516 = vmatprep.subr.mxu0 0.0
    %2517 = vmatpush1.msra.mxu0 0.0
    %2518 = vmatprep.subr.mxu0 0.0
    %2519 = vmatpush1.msra.mxu0 0.0
    %2520 = vmatprep.subr.mxu0 0.0
    %2521 = vmatpush1.msra.mxu0 0.0
    %2522 = vmatprep.subr.mxu0 0.0
    %2523 = vmatpush1.msra.mxu0 0.0
    %2524 = vmatprep.subr.mxu0 0.0
    %2525 = vmatpush1.msra.mxu0 0.0
    %2526 = vmatprep.subr.mxu0 0.0
    %2527 = vmatpush1.msra.mxu0 0.0
    %2528 = vmatprep.subr.mxu0 0.0
    %2529 = vmatpush1.msra.mxu0 0.0
    %2530 = vmatprep.subr.mxu0 0.0
    %2531 = vmatpush1.msra.mxu0 0.0
    %2532 = vmatprep.subr.mxu0 0.0
    %2533 = vmatpush1.msra.mxu0 0.0
    %2534 = vmatprep.subr.mxu0 0.0
    %2535 = vmatpush1.msra.mxu0 0.0
    %2536 = vmatprep.subr.mxu0 0.0
    %2537 = vmatpush1.msra.mxu0 0.0
    %2538 = vmatprep.subr.mxu0 0.0
    %2539 = vmatpush1.msra.mxu0 0.0
    %2540 = vmatprep.subr.mxu0 0.0
    %2541 = vmatpush1.msra.mxu0 0.0
    %2542 = vmatprep.subr.mxu0 0.0
    %2543 = vmatpush1.msra.mxu0 0.0
    %2544 = vmatprep.subr.mxu0 0.0
    %2545 = vmatpush1.msra.mxu0 0.0
    %2546 = vmatprep.subr.mxu0 0.0
    %2547 = vmatpush1.msra.mxu0 0.0
    %2548 = vmatprep.mubr.f32.mxu0 0.0
    %v2549 = vand.u32 %v1888, 4294901760
    %2550 = vmatmul.mubr.f32.gmra.mrb[0].mxu0 %v2549
    %v2551 = vpop.f32.mrb[0].mxu0
    %v2552 = vadd.f32 %v2465, %v2551
    %v2553 = vpop.f32.mrb[0].mxu0
    %2554 = vdwg.mxu0
    %v2555 = vmax.f32 %v2552, 0.0
    %2556 = vst [vmem:[%s3] sm:$0xff] %v2555
    %s2557 = scalar_lea.vmem [#allocation4], 512
    %v2558 = vld [vmem:[%s2557] sm:$0xff]
    %v2559 = vld [vmem:[%s2557 + $0x8] sm:$0xff]
    %v2560 = vld [vmem:[%s2557 + $0x10] sm:$0xff]
    %v2561 = vld [vmem:[%s2557 + $0x18] sm:$0xff]
    %v2562 = vld [vmem:[%s2557 + $0x20] sm:$0xff]
    %v2563 = vld [vmem:[%s2557 + $0x28] sm:$0xff]
    %v2564 = vld [vmem:[%s2557 + $0x30] sm:$0xff]
    %v2565 = vld [vmem:[%s2557 + $0x38] sm:$0xff]
    %v2566 = vld [vmem:[%s2557 + $0x40] sm:$0xff]
    %v2567 = vld [vmem:[%s2557 + $0x48] sm:$0xff]
    %v2568 = vld [vmem:[%s2557 + $0x50] sm:$0xff]
    %v2569 = vld [vmem:[%s2557 + $0x58] sm:$0xff]
    %v2570 = vld [vmem:[%s2557 + $0x60] sm:$0xff]
    %v2571 = vld [vmem:[%s2557 + $0x68] sm:$0xff]
    %v2572 = vld [vmem:[%s2557 + $0x70] sm:$0xff]
    %v2573 = vld [vmem:[%s2557 + $0x78] sm:$0xff]
    %s2574 = scalar_lea.vmem [#allocation6], 4
    %v2575 = vld [vmem:[%s2574] sm:$0x1]
    %v2577 = vlaneseq
    %v2578 = vshrl.u32 %v2577, 7
    %v2579 = vsub.s32 0, %v2578
    %v2580 = vrot.slane %v2575, %v2579
    %2582 = vmatprep.subr.mxu0 0.0
    %v2583 = vand.u32 %v2558, 4294901760
    %2584 = vmatpush1.msra.mxu0 %v2583
    %2585 = vmatprep.subr.mxu0 0.0
    %v2586 = vand.u32 %v2559, 4294901760
    %2587 = vmatpush1.msra.mxu0 %v2586
    %2588 = vmatprep.subr.mxu0 0.0
    %v2589 = vand.u32 %v2560, 4294901760
    %2590 = vmatpush1.msra.mxu0 %v2589
    %2591 = vmatprep.subr.mxu0 0.0
    %v2592 = vand.u32 %v2561, 4294901760
    %2593 = vmatpush1.msra.mxu0 %v2592
    %2594 = vmatprep.subr.mxu0 0.0
    %v2595 = vand.u32 %v2562, 4294901760
    %2596 = vmatpush1.msra.mxu0 %v2595
    %2597 = vmatprep.subr.mxu0 0.0
    %v2598 = vand.u32 %v2563, 4294901760
    %2599 = vmatpush1.msra.mxu0 %v2598
    %2600 = vmatprep.subr.mxu0 0.0
    %v2601 = vand.u32 %v2564, 4294901760
    %2602 = vmatpush1.msra.mxu0 %v2601
    %2603 = vmatprep.subr.mxu0 0.0
    %v2604 = vand.u32 %v2565, 4294901760
    %2605 = vmatpush1.msra.mxu0 %v2604
    %2606 = vmatprep.subr.mxu0 0.0
    %v2607 = vand.u32 %v2566, 4294901760
    %2608 = vmatpush1.msra.mxu0 %v2607
    %2609 = vmatprep.subr.mxu0 0.0
    %v2610 = vand.u32 %v2567, 4294901760
    %2611 = vmatpush1.msra.mxu0 %v2610
    %2612 = vmatprep.subr.mxu0 0.0
    %v2613 = vand.u32 %v2568, 4294901760
    %2614 = vmatpush1.msra.mxu0 %v2613
    %2615 = vmatprep.subr.mxu0 0.0
    %v2616 = vand.u32 %v2569, 4294901760
    %2617 = vmatpush1.msra.mxu0 %v2616
    %2618 = vmatprep.subr.mxu0 0.0
    %v2619 = vand.u32 %v2570, 4294901760
    %2620 = vmatpush1.msra.mxu0 %v2619
    %2621 = vmatprep.subr.mxu0 0.0
    %v2622 = vand.u32 %v2571, 4294901760
    %2623 = vmatpush1.msra.mxu0 %v2622
    %2624 = vmatprep.subr.mxu0 0.0
    %v2625 = vand.u32 %v2572, 4294901760
    %2626 = vmatpush1.msra.mxu0 %v2625
    %2627 = vmatprep.subr.mxu0 0.0
    %v2628 = vand.u32 %v2573, 4294901760
    %2629 = vmatpush1.msra.mxu0 %v2628
    %2630 = vmatprep.subr.mxu0 0.0
    %2631 = vmatpush1.msra.mxu0 0.0
    %2632 = vmatprep.subr.mxu0 0.0
    %2633 = vmatpush1.msra.mxu0 0.0
    %2634 = vmatprep.subr.mxu0 0.0
    %2635 = vmatpush1.msra.mxu0 0.0
    %2636 = vmatprep.subr.mxu0 0.0
    %2637 = vmatpush1.msra.mxu0 0.0
    %2638 = vmatprep.subr.mxu0 0.0
    %2639 = vmatpush1.msra.mxu0 0.0
    %2640 = vmatprep.subr.mxu0 0.0
    %2641 = vmatpush1.msra.mxu0 0.0
    %2642 = vmatprep.subr.mxu0 0.0
    %2643 = vmatpush1.msra.mxu0 0.0
    %2644 = vmatprep.subr.mxu0 0.0
    %2645 = vmatpush1.msra.mxu0 0.0
    %2646 = vmatprep.subr.mxu0 0.0
    %2647 = vmatpush1.msra.mxu0 0.0
    %2648 = vmatprep.subr.mxu0 0.0
    %2649 = vmatpush1.msra.mxu0 0.0
    %2650 = vmatprep.subr.mxu0 0.0
    %2651 = vmatpush1.msra.mxu0 0.0
    %2652 = vmatprep.subr.mxu0 0.0
    %2653 = vmatpush1.msra.mxu0 0.0
    %2654 = vmatprep.subr.mxu0 0.0
    %2655 = vmatpush1.msra.mxu0 0.0
    %2656 = vmatprep.subr.mxu0 0.0
    %2657 = vmatpush1.msra.mxu0 0.0
    %2658 = vmatprep.subr.mxu0 0.0
    %2659 = vmatpush1.msra.mxu0 0.0
    %2660 = vmatprep.subr.mxu0 0.0
    %2661 = vmatpush1.msra.mxu0 0.0
    %2662 = vmatprep.mubr.f32.mxu0 0.0
    %v2663 = vand.u32 %v2555, 4294901760
    %v2664 = vsub.f32 %v2555, %v2663
    %v2665 = vand.u32 %v2664, 4294901760
    %v2666 = vsub.f32 %v2664, %v2665
    %v2667 = vand.u32 %v2666, 4294901760
    %2668 = vmatmul.mubr.f32.gmra.mrb[0].mxu0 %v2667
    %v2669 = vpop.f32.mrb[0].mxu0
    %v2670 = vadd.f32 %v2580, %v2669
    %v2671 = vpop.f32.mrb[0].mxu0
    %2672 = vdwg.mxu0
    %2673 = vmatprep.subr.mxu0 0.0
    %v2674 = vand.u32 %v2558, 4294901760
    %v2675 = vsub.f32 %v2558, %v2674
    %v2676 = vand.u32 %v2675, 4294901760
    %v2677 = vsub.f32 %v2675, %v2676
    %v2678 = vand.u32 %v2677, 4294901760
    %2679 = vmatpush1.msra.mxu0 %v2678
    %2680 = vmatprep.subr.mxu0 0.0
    %v2681 = vand.u32 %v2559, 4294901760
    %v2682 = vsub.f32 %v2559, %v2681
    %v2683 = vand.u32 %v2682, 4294901760
    %v2684 = vsub.f32 %v2682, %v2683
    %v2685 = vand.u32 %v2684, 4294901760
    %2686 = vmatpush1.msra.mxu0 %v2685
    %2687 = vmatprep.subr.mxu0 0.0
    %v2688 = vand.u32 %v2560, 4294901760
    %v2689 = vsub.f32 %v2560, %v2688
    %v2690 = vand.u32 %v2689, 4294901760
    %v2691 = vsub.f32 %v2689, %v2690
    %v2692 = vand.u32 %v2691, 4294901760
    %2693 = vmatpush1.msra.mxu0 %v2692
    %2694 = vmatprep.subr.mxu0 0.0
    %v2695 = vand.u32 %v2561, 4294901760
    %v2696 = vsub.f32 %v2561, %v2695
    %v2697 = vand.u32 %v2696, 4294901760
    %v2698 = vsub.f32 %v2696, %v2697
    %v2699 = vand.u32 %v2698, 4294901760
    %2700 = vmatpush1.msra.mxu0 %v2699
    %2701 = vmatprep.subr.mxu0 0.0
    %v2702 = vand.u32 %v2562, 4294901760
    %v2703 = vsub.f32 %v2562, %v2702
    %v2704 = vand.u32 %v2703, 4294901760
    %v2705 = vsub.f32 %v2703, %v2704
    %v2706 = vand.u32 %v2705, 4294901760
    %2707 = vmatpush1.msra.mxu0 %v2706
    %2708 = vmatprep.subr.mxu0 0.0
    %v2709 = vand.u32 %v2563, 4294901760
    %v2710 = vsub.f32 %v2563, %v2709
    %v2711 = vand.u32 %v2710, 4294901760
    %v2712 = vsub.f32 %v2710, %v2711
    %v2713 = vand.u32 %v2712, 4294901760
    %2714 = vmatpush1.msra.mxu0 %v2713
    %2715 = vmatprep.subr.mxu0 0.0
    %v2716 = vand.u32 %v2564, 4294901760
    %v2717 = vsub.f32 %v2564, %v2716
    %v2718 = vand.u32 %v2717, 4294901760
    %v2719 = vsub.f32 %v2717, %v2718
    %v2720 = vand.u32 %v2719, 4294901760
    %2721 = vmatpush1.msra.mxu0 %v2720
    %2722 = vmatprep.subr.mxu0 0.0
    %v2723 = vand.u32 %v2565, 4294901760
    %v2724 = vsub.f32 %v2565, %v2723
    %v2725 = vand.u32 %v2724, 4294901760
    %v2726 = vsub.f32 %v2724, %v2725
    %v2727 = vand.u32 %v2726, 4294901760
    %2728 = vmatpush1.msra.mxu0 %v2727
    %2729 = vmatprep.subr.mxu0 0.0
    %v2730 = vand.u32 %v2566, 4294901760
    %v2731 = vsub.f32 %v2566, %v2730
    %v2732 = vand.u32 %v2731, 4294901760
    %v2733 = vsub.f32 %v2731, %v2732
    %v2734 = vand.u32 %v2733, 4294901760
    %2735 = vmatpush1.msra.mxu0 %v2734
    %2736 = vmatprep.subr.mxu0 0.0
    %v2737 = vand.u32 %v2567, 4294901760
    %v2738 = vsub.f32 %v2567, %v2737
    %v2739 = vand.u32 %v2738, 4294901760
    %v2740 = vsub.f32 %v2738, %v2739
    %v2741 = vand.u32 %v2740, 4294901760
    %2742 = vmatpush1.msra.mxu0 %v2741
    %2743 = vmatprep.subr.mxu0 0.0
    %v2744 = vand.u32 %v2568, 4294901760
    %v2745 = vsub.f32 %v2568, %v2744
    %v2746 = vand.u32 %v2745, 4294901760
    %v2747 = vsub.f32 %v2745, %v2746
    %v2748 = vand.u32 %v2747, 4294901760
    %2749 = vmatpush1.msra.mxu0 %v2748
    %2750 = vmatprep.subr.mxu0 0.0
    %v2751 = vand.u32 %v2569, 4294901760
    %v2752 = vsub.f32 %v2569, %v2751
    %v2753 = vand.u32 %v2752, 4294901760
    %v2754 = vsub.f32 %v2752, %v2753
    %v2755 = vand.u32 %v2754, 4294901760
    %2756 = vmatpush1.msra.mxu0 %v2755
    %2757 = vmatprep.subr.mxu0 0.0
    %v2758 = vand.u32 %v2570, 4294901760
    %v2759 = vsub.f32 %v2570, %v2758
    %v2760 = vand.u32 %v2759, 4294901760
    %v2761 = vsub.f32 %v2759, %v2760
    %v2762 = vand.u32 %v2761, 4294901760
    %2763 = vmatpush1.msra.mxu0 %v2762
    %2764 = vmatprep.subr.mxu0 0.0
    %v2765 = vand.u32 %v2571, 4294901760
    %v2766 = vsub.f32 %v2571, %v2765
    %v2767 = vand.u32 %v2766, 4294901760
    %v2768 = vsub.f32 %v2766, %v2767
    %v2769 = vand.u32 %v2768, 4294901760
    %2770 = vmatpush1.msra.mxu0 %v2769
    %2771 = vmatprep.subr.mxu0 0.0
    %v2772 = vand.u32 %v2572, 4294901760
    %v2773 = vsub.f32 %v2572, %v2772
    %v2774 = vand.u32 %v2773, 4294901760
    %v2775 = vsub.f32 %v2773, %v2774
    %v2776 = vand.u32 %v2775, 4294901760
    %2777 = vmatpush1.msra.mxu0 %v2776
    %2778 = vmatprep.subr.mxu0 0.0
    %v2779 = vand.u32 %v2573, 4294901760
    %v2780 = vsub.f32 %v2573, %v2779
    %v2781 = vand.u32 %v2780, 4294901760
    %v2782 = vsub.f32 %v2780, %v2781
    %v2783 = vand.u32 %v2782, 4294901760
    %2784 = vmatpush1.msra.mxu0 %v2783
    %2785 = vmatprep.subr.mxu0 0.0
    %2786 = vmatpush1.msra.mxu0 0.0
    %2787 = vmatprep.subr.mxu0 0.0
    %2788 = vmatpush1.msra.mxu0 0.0
    %2789 = vmatprep.subr.mxu0 0.0
    %2790 = vmatpush1.msra.mxu0 0.0
    %2791 = vmatprep.subr.mxu0 0.0
    %2792 = vmatpush1.msra.mxu0 0.0
    %2793 = vmatprep.subr.mxu0 0.0
    %2794 = vmatpush1.msra.mxu0 0.0
    %2795 = vmatprep.subr.mxu0 0.0
    %2796 = vmatpush1.msra.mxu0 0.0
    %2797 = vmatprep.subr.mxu0 0.0
    %2798 = vmatpush1.msra.mxu0 0.0
    %2799 = vmatprep.subr.mxu0 0.0
    %2800 = vmatpush1.msra.mxu0 0.0
    %2801 = vmatprep.subr.mxu0 0.0
    %2802 = vmatpush1.msra.mxu0 0.0
    %2803 = vmatprep.subr.mxu0 0.0
    %2804 = vmatpush1.msra.mxu0 0.0
    %2805 = vmatprep.subr.mxu0 0.0
    %2806 = vmatpush1.msra.mxu0 0.0
    %2807 = vmatprep.subr.mxu0 0.0
    %2808 = vmatpush1.msra.mxu0 0.0
    %2809 = vmatprep.subr.mxu0 0.0
    %2810 = vmatpush1.msra.mxu0 0.0
    %2811 = vmatprep.subr.mxu0 0.0
    %2812 = vmatpush1.msra.mxu0 0.0
    %2813 = vmatprep.subr.mxu0 0.0
    %2814 = vmatpush1.msra.mxu0 0.0
    %2815 = vmatprep.subr.mxu0 0.0
    %2816 = vmatpush1.msra.mxu0 0.0
    %2817 = vmatprep.mubr.f32.mxu0 0.0
    %v2818 = vand.u32 %v2555, 4294901760
    %2819 = vmatmul.mubr.f32.gmra.mrb[0].mxu0 %v2818
    %v2820 = vpop.f32.mrb[0].mxu0
    %v2821 = vadd.f32 %v2670, %v2820
    %v2822 = vpop.f32.mrb[0].mxu0
    %2823 = vdwg.mxu0
    %2824 = vmatprep.subr.mxu0 0.0
    %v2825 = vand.u32 %v2558, 4294901760
    %v2826 = vsub.f32 %v2558, %v2825
    %2827 = vmatpush1.msra.mxu0 %v2826
    %2828 = vmatprep.subr.mxu0 0.0
    %v2829 = vand.u32 %v2559, 4294901760
    %v2830 = vsub.f32 %v2559, %v2829
    %2831 = vmatpush1.msra.mxu0 %v2830
    %2832 = vmatprep.subr.mxu0 0.0
    %v2833 = vand.u32 %v2560, 4294901760
    %v2834 = vsub.f32 %v2560, %v2833
    %2835 = vmatpush1.msra.mxu0 %v2834
    %2836 = vmatprep.subr.mxu0 0.0
    %v2837 = vand.u32 %v2561, 4294901760
    %v2838 = vsub.f32 %v2561, %v2837
    %2839 = vmatpush1.msra.mxu0 %v2838
    %2840 = vmatprep.subr.mxu0 0.0
    %v2841 = vand.u32 %v2562, 4294901760
    %v2842 = vsub.f32 %v2562, %v2841
    %2843 = vmatpush1.msra.mxu0 %v2842
    %2844 = vmatprep.subr.mxu0 0.0
    %v2845 = vand.u32 %v2563, 4294901760
    %v2846 = vsub.f32 %v2563, %v2845
    %2847 = vmatpush1.msra.mxu0 %v2846
    %2848 = vmatprep.subr.mxu0 0.0
    %v2849 = vand.u32 %v2564, 4294901760
    %v2850 = vsub.f32 %v2564, %v2849
    %2851 = vmatpush1.msra.mxu0 %v2850
    %2852 = vmatprep.subr.mxu0 0.0
    %v2853 = vand.u32 %v2565, 4294901760
    %v2854 = vsub.f32 %v2565, %v2853
    %2855 = vmatpush1.msra.mxu0 %v2854
    %2856 = vmatprep.subr.mxu0 0.0
    %v2857 = vand.u32 %v2566, 4294901760
    %v2858 = vsub.f32 %v2566, %v2857
    %2859 = vmatpush1.msra.mxu0 %v2858
    %2860 = vmatprep.subr.mxu0 0.0
    %v2861 = vand.u32 %v2567, 4294901760
    %v2862 = vsub.f32 %v2567, %v2861
    %2863 = vmatpush1.msra.mxu0 %v2862
    %2864 = vmatprep.subr.mxu0 0.0
    %v2865 = vand.u32 %v2568, 4294901760
    %v2866 = vsub.f32 %v2568, %v2865
    %2867 = vmatpush1.msra.mxu0 %v2866
    %2868 = vmatprep.subr.mxu0 0.0
    %v2869 = vand.u32 %v2569, 4294901760
    %v2870 = vsub.f32 %v2569, %v2869
    %2871 = vmatpush1.msra.mxu0 %v2870
    %2872 = vmatprep.subr.mxu0 0.0
    %v2873 = vand.u32 %v2570, 4294901760
    %v2874 = vsub.f32 %v2570, %v2873
    %2875 = vmatpush1.msra.mxu0 %v2874
    %2876 = vmatprep.subr.mxu0 0.0
    %v2877 = vand.u32 %v2571, 4294901760
    %v2878 = vsub.f32 %v2571, %v2877
    %2879 = vmatpush1.msra.mxu0 %v2878
    %2880 = vmatprep.subr.mxu0 0.0
    %v2881 = vand.u32 %v2572, 4294901760
    %v2882 = vsub.f32 %v2572, %v2881
    %2883 = vmatpush1.msra.mxu0 %v2882
    %2884 = vmatprep.subr.mxu0 0.0
    %v2885 = vand.u32 %v2573, 4294901760
    %v2886 = vsub.f32 %v2573, %v2885
    %2887 = vmatpush1.msra.mxu0 %v2886
    %2888 = vmatprep.subr.mxu0 0.0
    %2889 = vmatpush1.msra.mxu0 0.0
    %2890 = vmatprep.subr.mxu0 0.0
    %2891 = vmatpush1.msra.mxu0 0.0
    %2892 = vmatprep.subr.mxu0 0.0
    %2893 = vmatpush1.msra.mxu0 0.0
    %2894 = vmatprep.subr.mxu0 0.0
    %2895 = vmatpush1.msra.mxu0 0.0
    %2896 = vmatprep.subr.mxu0 0.0
    %2897 = vmatpush1.msra.mxu0 0.0
    %2898 = vmatprep.subr.mxu0 0.0
    %2899 = vmatpush1.msra.mxu0 0.0
    %2900 = vmatprep.subr.mxu0 0.0
    %2901 = vmatpush1.msra.mxu0 0.0
    %2902 = vmatprep.subr.mxu0 0.0
    %2903 = vmatpush1.msra.mxu0 0.0
    %2904 = vmatprep.subr.mxu0 0.0
    %2905 = vmatpush1.msra.mxu0 0.0
    %2906 = vmatprep.subr.mxu0 0.0
    %2907 = vmatpush1.msra.mxu0 0.0
    %2908 = vmatprep.subr.mxu0 0.0
    %2909 = vmatpush1.msra.mxu0 0.0
    %2910 = vmatprep.subr.mxu0 0.0
    %2911 = vmatpush1.msra.mxu0 0.0
    %2912 = vmatprep.subr.mxu0 0.0
    %2913 = vmatpush1.msra.mxu0 0.0
    %2914 = vmatprep.subr.mxu0 0.0
    %2915 = vmatpush1.msra.mxu0 0.0
    %2916 = vmatprep.subr.mxu0 0.0
    %2917 = vmatpush1.msra.mxu0 0.0
    %2918 = vmatprep.subr.mxu0 0.0
    %2919 = vmatpush1.msra.mxu0 0.0
    %2920 = vmatprep.mubr.f32.mxu0 0.0
    %v2921 = vand.u32 %v2555, 4294901760
    %v2922 = vsub.f32 %v2555, %v2921
    %2923 = vmatmul.mubr.f32.gmra.mrb[0].mxu0 %v2922
    %v2924 = vpop.f32.mrb[0].mxu0
    %v2925 = vadd.f32 %v2821, %v2924
    %v2926 = vpop.f32.mrb[0].mxu0
    %2927 = vdwg.mxu0
    %2928 = vmatprep.subr.mxu0 0.0
    %v2929 = vand.u32 %v2558, 4294901760
    %2930 = vmatpush1.msra.mxu0 %v2929
    %2931 = vmatprep.subr.mxu0 0.0
    %v2932 = vand.u32 %v2559, 4294901760
    %2933 = vmatpush1.msra.mxu0 %v2932
    %2934 = vmatprep.subr.mxu0 0.0
    %v2935 = vand.u32 %v2560, 4294901760
    %2936 = vmatpush1.msra.mxu0 %v2935
    %2937 = vmatprep.subr.mxu0 0.0
    %v2938 = vand.u32 %v2561, 4294901760
    %2939 = vmatpush1.msra.mxu0 %v2938
    %2940 = vmatprep.subr.mxu0 0.0
    %v2941 = vand.u32 %v2562, 4294901760
    %2942 = vmatpush1.msra.mxu0 %v2941
    %2943 = vmatprep.subr.mxu0 0.0
    %v2944 = vand.u32 %v2563, 4294901760
    %2945 = vmatpush1.msra.mxu0 %v2944
    %2946 = vmatprep.subr.mxu0 0.0
    %v2947 = vand.u32 %v2564, 4294901760
    %2948 = vmatpush1.msra.mxu0 %v2947
    %2949 = vmatprep.subr.mxu0 0.0
    %v2950 = vand.u32 %v2565, 4294901760
    %2951 = vmatpush1.msra.mxu0 %v2950
    %2952 = vmatprep.subr.mxu0 0.0
    %v2953 = vand.u32 %v2566, 4294901760
    %2954 = vmatpush1.msra.mxu0 %v2953
    %2955 = vmatprep.subr.mxu0 0.0
    %v2956 = vand.u32 %v2567, 4294901760
    %2957 = vmatpush1.msra.mxu0 %v2956
    %2958 = vmatprep.subr.mxu0 0.0
    %v2959 = vand.u32 %v2568, 4294901760
    %2960 = vmatpush1.msra.mxu0 %v2959
    %2961 = vmatprep.subr.mxu0 0.0
    %v2962 = vand.u32 %v2569, 4294901760
    %2963 = vmatpush1.msra.mxu0 %v2962
    %2964 = vmatprep.subr.mxu0 0.0
    %v2965 = vand.u32 %v2570, 4294901760
    %2966 = vmatpush1.msra.mxu0 %v2965
    %2967 = vmatprep.subr.mxu0 0.0
    %v2968 = vand.u32 %v2571, 4294901760
    %2969 = vmatpush1.msra.mxu0 %v2968
    %2970 = vmatprep.subr.mxu0 0.0
    %v2971 = vand.u32 %v2572, 4294901760
    %2972 = vmatpush1.msra.mxu0 %v2971
    %2973 = vmatprep.subr.mxu0 0.0
    %v2974 = vand.u32 %v2573, 4294901760
    %2975 = vmatpush1.msra.mxu0 %v2974
    %2976 = vmatprep.subr.mxu0 0.0
    %2977 = vmatpush1.msra.mxu0 0.0
    %2978 = vmatprep.subr.mxu0 0.0
    %2979 = vmatpush1.msra.mxu0 0.0
    %2980 = vmatprep.subr.mxu0 0.0
    %2981 = vmatpush1.msra.mxu0 0.0
    %2982 = vmatprep.subr.mxu0 0.0
    %2983 = vmatpush1.msra.mxu0 0.0
    %2984 = vmatprep.subr.mxu0 0.0
    %2985 = vmatpush1.msra.mxu0 0.0
    %2986 = vmatprep.subr.mxu0 0.0
    %2987 = vmatpush1.msra.mxu0 0.0
    %2988 = vmatprep.subr.mxu0 0.0
    %2989 = vmatpush1.msra.mxu0 0.0
    %2990 = vmatprep.subr.mxu0 0.0
    %2991 = vmatpush1.msra.mxu0 0.0
    %2992 = vmatprep.subr.mxu0 0.0
    %2993 = vmatpush1.msra.mxu0 0.0
    %2994 = vmatprep.subr.mxu0 0.0
    %2995 = vmatpush1.msra.mxu0 0.0
    %2996 = vmatprep.subr.mxu0 0.0
    %2997 = vmatpush1.msra.mxu0 0.0
    %2998 = vmatprep.subr.mxu0 0.0
    %2999 = vmatpush1.msra.mxu0 0.0
    %3000 = vmatprep.subr.mxu0 0.0
    %3001 = vmatpush1.msra.mxu0 0.0
    %3002 = vmatprep.subr.mxu0 0.0
    %3003 = vmatpush1.msra.mxu0 0.0
    %3004 = vmatprep.subr.mxu0 0.0
    %3005 = vmatpush1.msra.mxu0 0.0
    %3006 = vmatprep.subr.mxu0 0.0
    %3007 = vmatpush1.msra.mxu0 0.0
    %3008 = vmatprep.mubr.f32.mxu0 0.0
    %v3009 = vand.u32 %v2555, 4294901760
    %v3010 = vsub.f32 %v2555, %v3009
    %v3011 = vand.u32 %v3010, 4294901760
    %3012 = vmatmul.mubr.f32.gmra.mrb[0].mxu0 %v3011
    %v3013 = vpop.f32.mrb[0].mxu0
    %v3014 = vadd.f32 %v2925, %v3013
    %v3015 = vpop.f32.mrb[0].mxu0
    %3016 = vdwg.mxu0
    %3017 = vmatprep.subr.mxu0 0.0
    %v3018 = vand.u32 %v2558, 4294901760
    %v3019 = vsub.f32 %v2558, %v3018
    %v3020 = vand.u32 %v3019, 4294901760
    %3021 = vmatpush1.msra.mxu0 %v3020
    %3022 = vmatprep.subr.mxu0 0.0
    %v3023 = vand.u32 %v2559, 4294901760
    %v3024 = vsub.f32 %v2559, %v3023
    %v3025 = vand.u32 %v3024, 4294901760
    %3026 = vmatpush1.msra.mxu0 %v3025
    %3027 = vmatprep.subr.mxu0 0.0
    %v3028 = vand.u32 %v2560, 4294901760
    %v3029 = vsub.f32 %v2560, %v3028
    %v3030 = vand.u32 %v3029, 4294901760
    %3031 = vmatpush1.msra.mxu0 %v3030
    %3032 = vmatprep.subr.mxu0 0.0
    %v3033 = vand.u32 %v2561, 4294901760
    %v3034 = vsub.f32 %v2561, %v3033
    %v3035 = vand.u32 %v3034, 4294901760
    %3036 = vmatpush1.msra.mxu0 %v3035
    %3037 = vmatprep.subr.mxu0 0.0
    %v3038 = vand.u32 %v2562, 4294901760
    %v3039 = vsub.f32 %v2562, %v3038
    %v3040 = vand.u32 %v3039, 4294901760
    %3041 = vmatpush1.msra.mxu0 %v3040
    %3042 = vmatprep.subr.mxu0 0.0
    %v3043 = vand.u32 %v2563, 4294901760
    %v3044 = vsub.f32 %v2563, %v3043
    %v3045 = vand.u32 %v3044, 4294901760
    %3046 = vmatpush1.msra.mxu0 %v3045
    %3047 = vmatprep.subr.mxu0 0.0
    %v3048 = vand.u32 %v2564, 4294901760
    %v3049 = vsub.f32 %v2564, %v3048
    %v3050 = vand.u32 %v3049, 4294901760
    %3051 = vmatpush1.msra.mxu0 %v3050
    %3052 = vmatprep.subr.mxu0 0.0
    %v3053 = vand.u32 %v2565, 4294901760
    %v3054 = vsub.f32 %v2565, %v3053
    %v3055 = vand.u32 %v3054, 4294901760
    %3056 = vmatpush1.msra.mxu0 %v3055
    %3057 = vmatprep.subr.mxu0 0.0
    %v3058 = vand.u32 %v2566, 4294901760
    %v3059 = vsub.f32 %v2566, %v3058
    %v3060 = vand.u32 %v3059, 4294901760
    %3061 = vmatpush1.msra.mxu0 %v3060
    %3062 = vmatprep.subr.mxu0 0.0
    %v3063 = vand.u32 %v2567, 4294901760
    %v3064 = vsub.f32 %v2567, %v3063
    %v3065 = vand.u32 %v3064, 4294901760
    %3066 = vmatpush1.msra.mxu0 %v3065
    %3067 = vmatprep.subr.mxu0 0.0
    %v3068 = vand.u32 %v2568, 4294901760
    %v3069 = vsub.f32 %v2568, %v3068
    %v3070 = vand.u32 %v3069, 4294901760
    %3071 = vmatpush1.msra.mxu0 %v3070
    %3072 = vmatprep.subr.mxu0 0.0
    %v3073 = vand.u32 %v2569, 4294901760
    %v3074 = vsub.f32 %v2569, %v3073
    %v3075 = vand.u32 %v3074, 4294901760
    %3076 = vmatpush1.msra.mxu0 %v3075
    %3077 = vmatprep.subr.mxu0 0.0
    %v3078 = vand.u32 %v2570, 4294901760
    %v3079 = vsub.f32 %v2570, %v3078
    %v3080 = vand.u32 %v3079, 4294901760
    %3081 = vmatpush1.msra.mxu0 %v3080
    %3082 = vmatprep.subr.mxu0 0.0
    %v3083 = vand.u32 %v2571, 4294901760
    %v3084 = vsub.f32 %v2571, %v3083
    %v3085 = vand.u32 %v3084, 4294901760
    %3086 = vmatpush1.msra.mxu0 %v3085
    %3087 = vmatprep.subr.mxu0 0.0
    %v3088 = vand.u32 %v2572, 4294901760
    %v3089 = vsub.f32 %v2572, %v3088
    %v3090 = vand.u32 %v3089, 4294901760
    %3091 = vmatpush1.msra.mxu0 %v3090
    %3092 = vmatprep.subr.mxu0 0.0
    %v3093 = vand.u32 %v2573, 4294901760
    %v3094 = vsub.f32 %v2573, %v3093
    %v3095 = vand.u32 %v3094, 4294901760
    %3096 = vmatpush1.msra.mxu0 %v3095
    %3097 = vmatprep.subr.mxu0 0.0
    %3098 = vmatpush1.msra.mxu0 0.0
    %3099 = vmatprep.subr.mxu0 0.0
    %3100 = vmatpush1.msra.mxu0 0.0
    %3101 = vmatprep.subr.mxu0 0.0
    %3102 = vmatpush1.msra.mxu0 0.0
    %3103 = vmatprep.subr.mxu0 0.0
    %3104 = vmatpush1.msra.mxu0 0.0
    %3105 = vmatprep.subr.mxu0 0.0
    %3106 = vmatpush1.msra.mxu0 0.0
    %3107 = vmatprep.subr.mxu0 0.0
    %3108 = vmatpush1.msra.mxu0 0.0
    %3109 = vmatprep.subr.mxu0 0.0
    %3110 = vmatpush1.msra.mxu0 0.0
    %3111 = vmatprep.subr.mxu0 0.0
    %3112 = vmatpush1.msra.mxu0 0.0
    %3113 = vmatprep.subr.mxu0 0.0
    %3114 = vmatpush1.msra.mxu0 0.0
    %3115 = vmatprep.subr.mxu0 0.0
    %3116 = vmatpush1.msra.mxu0 0.0
    %3117 = vmatprep.subr.mxu0 0.0
    %3118 = vmatpush1.msra.mxu0 0.0
    %3119 = vmatprep.subr.mxu0 0.0
    %3120 = vmatpush1.msra.mxu0 0.0
    %3121 = vmatprep.subr.mxu0 0.0
    %3122 = vmatpush1.msra.mxu0 0.0
    %3123 = vmatprep.subr.mxu0 0.0
    %3124 = vmatpush1.msra.mxu0 0.0
    %3125 = vmatprep.subr.mxu0 0.0
    %3126 = vmatpush1.msra.mxu0 0.0
    %3127 = vmatprep.subr.mxu0 0.0
    %3128 = vmatpush1.msra.mxu0 0.0
    %3129 = vmatprep.mubr.f32.mxu0 0.0
    %v3130 = vand.u32 %v2555, 4294901760
    %3131 = vmatmul.mubr.f32.gmra.mrb[0].mxu0 %v3130
    %v3132 = vpop.f32.mrb[0].mxu0
    %v3133 = vadd.f32 %v3014, %v3132
    %v3134 = vpop.f32.mrb[0].mxu0
    %3135 = vdwg.mxu0
    %3136 = vmatprep.subr.mxu0 0.0
    %v3137 = vand.u32 %v2558, 4294901760
    %3138 = vmatpush1.msra.mxu0 %v3137
    %3139 = vmatprep.subr.mxu0 0.0
    %v3140 = vand.u32 %v2559, 4294901760
    %3141 = vmatpush1.msra.mxu0 %v3140
    %3142 = vmatprep.subr.mxu0 0.0
    %v3143 = vand.u32 %v2560, 4294901760
    %3144 = vmatpush1.msra.mxu0 %v3143
    %3145 = vmatprep.subr.mxu0 0.0
    %v3146 = vand.u32 %v2561, 4294901760
    %3147 = vmatpush1.msra.mxu0 %v3146
    %3148 = vmatprep.subr.mxu0 0.0
    %v3149 = vand.u32 %v2562, 4294901760
    %3150 = vmatpush1.msra.mxu0 %v3149
    %3151 = vmatprep.subr.mxu0 0.0
    %v3152 = vand.u32 %v2563, 4294901760
    %3153 = vmatpush1.msra.mxu0 %v3152
    %3154 = vmatprep.subr.mxu0 0.0
    %v3155 = vand.u32 %v2564, 4294901760
    %3156 = vmatpush1.msra.mxu0 %v3155
    %3157 = vmatprep.subr.mxu0 0.0
    %v3158 = vand.u32 %v2565, 4294901760
    %3159 = vmatpush1.msra.mxu0 %v3158
    %3160 = vmatprep.subr.mxu0 0.0
    %v3161 = vand.u32 %v2566, 4294901760
    %3162 = vmatpush1.msra.mxu0 %v3161
    %3163 = vmatprep.subr.mxu0 0.0
    %v3164 = vand.u32 %v2567, 4294901760
    %3165 = vmatpush1.msra.mxu0 %v3164
    %3166 = vmatprep.subr.mxu0 0.0
    %v3167 = vand.u32 %v2568, 4294901760
    %3168 = vmatpush1.msra.mxu0 %v3167
    %3169 = vmatprep.subr.mxu0 0.0
    %v3170 = vand.u32 %v2569, 4294901760
    %3171 = vmatpush1.msra.mxu0 %v3170
    %3172 = vmatprep.subr.mxu0 0.0
    %v3173 = vand.u32 %v2570, 4294901760
    %3174 = vmatpush1.msra.mxu0 %v3173
    %3175 = vmatprep.subr.mxu0 0.0
    %v3176 = vand.u32 %v2571, 4294901760
    %3177 = vmatpush1.msra.mxu0 %v3176
    %3178 = vmatprep.subr.mxu0 0.0
    %v3179 = vand.u32 %v2572, 4294901760
    %3180 = vmatpush1.msra.mxu0 %v3179
    %3181 = vmatprep.subr.mxu0 0.0
    %v3182 = vand.u32 %v2573, 4294901760
    %3183 = vmatpush1.msra.mxu0 %v3182
    %3184 = vmatprep.subr.mxu0 0.0
    %3185 = vmatpush1.msra.mxu0 0.0
    %3186 = vmatprep.subr.mxu0 0.0
    %3187 = vmatpush1.msra.mxu0 0.0
    %3188 = vmatprep.subr.mxu0 0.0
    %3189 = vmatpush1.msra.mxu0 0.0
    %3190 = vmatprep.subr.mxu0 0.0
    %3191 = vmatpush1.msra.mxu0 0.0
    %3192 = vmatprep.subr.mxu0 0.0
    %3193 = vmatpush1.msra.mxu0 0.0
    %3194 = vmatprep.subr.mxu0 0.0
    %3195 = vmatpush1.msra.mxu0 0.0
    %3196 = vmatprep.subr.mxu0 0.0
    %3197 = vmatpush1.msra.mxu0 0.0
    %3198 = vmatprep.subr.mxu0 0.0
    %3199 = vmatpush1.msra.mxu0 0.0
    %3200 = vmatprep.subr.mxu0 0.0
    %3201 = vmatpush1.msra.mxu0 0.0
    %3202 = vmatprep.subr.mxu0 0.0
    %3203 = vmatpush1.msra.mxu0 0.0
    %3204 = vmatprep.subr.mxu0 0.0
    %3205 = vmatpush1.msra.mxu0 0.0
    %3206 = vmatprep.subr.mxu0 0.0
    %3207 = vmatpush1.msra.mxu0 0.0
    %3208 = vmatprep.subr.mxu0 0.0
    %3209 = vmatpush1.msra.mxu0 0.0
    %3210 = vmatprep.subr.mxu0 0.0
    %3211 = vmatpush1.msra.mxu0 0.0
    %3212 = vmatprep.subr.mxu0 0.0
    %3213 = vmatpush1.msra.mxu0 0.0
    %3214 = vmatprep.subr.mxu0 0.0
    %3215 = vmatpush1.msra.mxu0 0.0
    %3216 = vmatprep.mubr.f32.mxu0 0.0
    %v3217 = vand.u32 %v2555, 4294901760
    %3218 = vmatmul.mubr.f32.gmra.mrb[0].mxu0 %v3217
    %v3219 = vpop.f32.mrb[0].mxu0
    %v3220 = vadd.f32 %v3133, %v3219
    %v3221 = vpop.f32.mrb[0].mxu0
    %3222 = vdwg.mxu0
    %v3223 = vmax.f32 %v3220, 0.0
    %s3224 = scalar_lea.vmem [#allocation4], 640
    %v3225 = vld [vmem:[%s3224] sm:$0xff]
    %v3226 = vld [vmem:[%s3224 + $0x8] sm:$0xff]
    %v3227 = vld [vmem:[%s3224 + $0x10] sm:$0xff]
    %v3228 = vld [vmem:[%s3224 + $0x18] sm:$0xff]
    %v3229 = vld [vmem:[%s3224 + $0x20] sm:$0xff]
    %v3230 = vld [vmem:[%s3224 + $0x28] sm:$0xff]
    %v3231 = vld [vmem:[%s3224 + $0x30] sm:$0xff]
    %v3232 = vld [vmem:[%s3224 + $0x38] sm:$0xff]
    %v3233 = vld [vmem:[%s3224 + $0x40] sm:$0xff]
    %v3234 = vld [vmem:[%s3224 + $0x48] sm:$0xff]
    %v3235 = vld [vmem:[%s3224 + $0x50] sm:$0xff]
    %v3236 = vld [vmem:[%s3224 + $0x58] sm:$0xff]
    %v3237 = vld [vmem:[%s3224 + $0x60] sm:$0xff]
    %v3238 = vld [vmem:[%s3224 + $0x68] sm:$0xff]
    %v3239 = vld [vmem:[%s3224 + $0x70] sm:$0xff]
    %v3240 = vld [vmem:[%s3224 + $0x78] sm:$0xff]
    %s3241 = scalar_lea.vmem [#allocation6], 5
    %v3242 = vld [vmem:[%s3241] sm:$0x1]
    %v3244 = vlaneseq
    %v3245 = vshrl.u32 %v3244, 7
    %v3246 = vsub.s32 0, %v3245
    %v3247 = vrot.slane %v3242, %v3246
    %3249 = vmatprep.subr.mxu0 0.0
    %v3250 = vand.u32 %v3225, 4294901760
    %3251 = vmatpush1.msra.mxu0 %v3250
    %3252 = vmatprep.subr.mxu0 0.0
    %v3253 = vand.u32 %v3226, 4294901760
    %3254 = vmatpush1.msra.mxu0 %v3253
    %3255 = vmatprep.subr.mxu0 0.0
    %v3256 = vand.u32 %v3227, 4294901760
    %3257 = vmatpush1.msra.mxu0 %v3256
    %3258 = vmatprep.subr.mxu0 0.0
    %v3259 = vand.u32 %v3228, 4294901760
    %3260 = vmatpush1.msra.mxu0 %v3259
    %3261 = vmatprep.subr.mxu0 0.0
    %v3262 = vand.u32 %v3229, 4294901760
    %3263 = vmatpush1.msra.mxu0 %v3262
    %3264 = vmatprep.subr.mxu0 0.0
    %v3265 = vand.u32 %v3230, 4294901760
    %3266 = vmatpush1.msra.mxu0 %v3265
    %3267 = vmatprep.subr.mxu0 0.0
    %v3268 = vand.u32 %v3231, 4294901760
    %3269 = vmatpush1.msra.mxu0 %v3268
    %3270 = vmatprep.subr.mxu0 0.0
    %v3271 = vand.u32 %v3232, 4294901760
    %3272 = vmatpush1.msra.mxu0 %v3271
    %3273 = vmatprep.subr.mxu0 0.0
    %v3274 = vand.u32 %v3233, 4294901760
    %3275 = vmatpush1.msra.mxu0 %v3274
    %3276 = vmatprep.subr.mxu0 0.0
    %v3277 = vand.u32 %v3234, 4294901760
    %3278 = vmatpush1.msra.mxu0 %v3277
    %3279 = vmatprep.subr.mxu0 0.0
    %v3280 = vand.u32 %v3235, 4294901760
    %3281 = vmatpush1.msra.mxu0 %v3280
    %3282 = vmatprep.subr.mxu0 0.0
    %v3283 = vand.u32 %v3236, 4294901760
    %3284 = vmatpush1.msra.mxu0 %v3283
    %3285 = vmatprep.subr.mxu0 0.0
    %v3286 = vand.u32 %v3237, 4294901760
    %3287 = vmatpush1.msra.mxu0 %v3286
    %3288 = vmatprep.subr.mxu0 0.0
    %v3289 = vand.u32 %v3238, 4294901760
    %3290 = vmatpush1.msra.mxu0 %v3289
    %3291 = vmatprep.subr.mxu0 0.0
    %v3292 = vand.u32 %v3239, 4294901760
    %3293 = vmatpush1.msra.mxu0 %v3292
    %3294 = vmatprep.subr.mxu0 0.0
    %v3295 = vand.u32 %v3240, 4294901760
    %3296 = vmatpush1.msra.mxu0 %v3295
    %3297 = vmatprep.subr.mxu0 0.0
    %3298 = vmatpush1.msra.mxu0 0.0
    %3299 = vmatprep.subr.mxu0 0.0
    %3300 = vmatpush1.msra.mxu0 0.0
    %3301 = vmatprep.subr.mxu0 0.0
    %3302 = vmatpush1.msra.mxu0 0.0
    %3303 = vmatprep.subr.mxu0 0.0
    %3304 = vmatpush1.msra.mxu0 0.0
    %3305 = vmatprep.subr.mxu0 0.0
    %3306 = vmatpush1.msra.mxu0 0.0
    %3307 = vmatprep.subr.mxu0 0.0
    %3308 = vmatpush1.msra.mxu0 0.0
    %3309 = vmatprep.subr.mxu0 0.0
    %3310 = vmatpush1.msra.mxu0 0.0
    %3311 = vmatprep.subr.mxu0 0.0
    %3312 = vmatpush1.msra.mxu0 0.0
    %3313 = vmatprep.subr.mxu0 0.0
    %3314 = vmatpush1.msra.mxu0 0.0
    %3315 = vmatprep.subr.mxu0 0.0
    %3316 = vmatpush1.msra.mxu0 0.0
    %3317 = vmatprep.subr.mxu0 0.0
    %3318 = vmatpush1.msra.mxu0 0.0
    %3319 = vmatprep.subr.mxu0 0.0
    %3320 = vmatpush1.msra.mxu0 0.0
    %3321 = vmatprep.subr.mxu0 0.0
    %3322 = vmatpush1.msra.mxu0 0.0
    %3323 = vmatprep.subr.mxu0 0.0
    %3324 = vmatpush1.msra.mxu0 0.0
    %3325 = vmatprep.subr.mxu0 0.0
    %3326 = vmatpush1.msra.mxu0 0.0
    %3327 = vmatprep.subr.mxu0 0.0
    %3328 = vmatpush1.msra.mxu0 0.0
    %3329 = vmatprep.mubr.f32.mxu0 0.0
    %v3330 = vand.u32 %v3223, 4294901760
    %v3331 = vsub.f32 %v3223, %v3330
    %v3332 = vand.u32 %v3331, 4294901760
    %v3333 = vsub.f32 %v3331, %v3332
    %v3334 = vand.u32 %v3333, 4294901760
    %3335 = vmatmul.mubr.f32.gmra.mrb[0].mxu0 %v3334
    %v3336 = vpop.f32.mrb[0].mxu0
    %v3337 = vadd.f32 %v3247, %v3336
    %v3338 = vpop.f32.mrb[0].mxu0
    %3339 = vdwg.mxu0
    %3340 = vmatprep.subr.mxu0 0.0
    %v3341 = vand.u32 %v3225, 4294901760
    %v3342 = vsub.f32 %v3225, %v3341
    %v3343 = vand.u32 %v3342, 4294901760
    %v3344 = vsub.f32 %v3342, %v3343
    %v3345 = vand.u32 %v3344, 4294901760
    %3346 = vmatpush1.msra.mxu0 %v3345
    %3347 = vmatprep.subr.mxu0 0.0
    %v3348 = vand.u32 %v3226, 4294901760
    %v3349 = vsub.f32 %v3226, %v3348
    %v3350 = vand.u32 %v3349, 4294901760
    %v3351 = vsub.f32 %v3349, %v3350
    %v3352 = vand.u32 %v3351, 4294901760
    %3353 = vmatpush1.msra.mxu0 %v3352
    %3354 = vmatprep.subr.mxu0 0.0
    %v3355 = vand.u32 %v3227, 4294901760
    %v3356 = vsub.f32 %v3227, %v3355
    %v3357 = vand.u32 %v3356, 4294901760
    %v3358 = vsub.f32 %v3356, %v3357
    %v3359 = vand.u32 %v3358, 4294901760
    %3360 = vmatpush1.msra.mxu0 %v3359
    %3361 = vmatprep.subr.mxu0 0.0
    %v3362 = vand.u32 %v3228, 4294901760
    %v3363 = vsub.f32 %v3228, %v3362
    %v3364 = vand.u32 %v3363, 4294901760
    %v3365 = vsub.f32 %v3363, %v3364
    %v3366 = vand.u32 %v3365, 4294901760
    %3367 = vmatpush1.msra.mxu0 %v3366
    %3368 = vmatprep.subr.mxu0 0.0
    %v3369 = vand.u32 %v3229, 4294901760
    %v3370 = vsub.f32 %v3229, %v3369
    %v3371 = vand.u32 %v3370, 4294901760
    %v3372 = vsub.f32 %v3370, %v3371
    %v3373 = vand.u32 %v3372, 4294901760
    %3374 = vmatpush1.msra.mxu0 %v3373
    %3375 = vmatprep.subr.mxu0 0.0
    %v3376 = vand.u32 %v3230, 4294901760
    %v3377 = vsub.f32 %v3230, %v3376
    %v3378 = vand.u32 %v3377, 4294901760
    %v3379 = vsub.f32 %v3377, %v3378
    %v3380 = vand.u32 %v3379, 4294901760
    %3381 = vmatpush1.msra.mxu0 %v3380
    %3382 = vmatprep.subr.mxu0 0.0
    %v3383 = vand.u32 %v3231, 4294901760
    %v3384 = vsub.f32 %v3231, %v3383
    %v3385 = vand.u32 %v3384, 4294901760
    %v3386 = vsub.f32 %v3384, %v3385
    %v3387 = vand.u32 %v3386, 4294901760
    %3388 = vmatpush1.msra.mxu0 %v3387
    %3389 = vmatprep.subr.mxu0 0.0
    %v3390 = vand.u32 %v3232, 4294901760
    %v3391 = vsub.f32 %v3232, %v3390
    %v3392 = vand.u32 %v3391, 4294901760
    %v3393 = vsub.f32 %v3391, %v3392
    %v3394 = vand.u32 %v3393, 4294901760
    %3395 = vmatpush1.msra.mxu0 %v3394
    %3396 = vmatprep.subr.mxu0 0.0
    %v3397 = vand.u32 %v3233, 4294901760
    %v3398 = vsub.f32 %v3233, %v3397
    %v3399 = vand.u32 %v3398, 4294901760
    %v3400 = vsub.f32 %v3398, %v3399
    %v3401 = vand.u32 %v3400, 4294901760
    %3402 = vmatpush1.msra.mxu0 %v3401
    %3403 = vmatprep.subr.mxu0 0.0
    %v3404 = vand.u32 %v3234, 4294901760
    %v3405 = vsub.f32 %v3234, %v3404
    %v3406 = vand.u32 %v3405, 4294901760
    %v3407 = vsub.f32 %v3405, %v3406
    %v3408 = vand.u32 %v3407, 4294901760
    %3409 = vmatpush1.msra.mxu0 %v3408
    %3410 = vmatprep.subr.mxu0 0.0
    %v3411 = vand.u32 %v3235, 4294901760
    %v3412 = vsub.f32 %v3235, %v3411
    %v3413 = vand.u32 %v3412, 4294901760
    %v3414 = vsub.f32 %v3412, %v3413
    %v3415 = vand.u32 %v3414, 4294901760
    %3416 = vmatpush1.msra.mxu0 %v3415
    %3417 = vmatprep.subr.mxu0 0.0
    %v3418 = vand.u32 %v3236, 4294901760
    %v3419 = vsub.f32 %v3236, %v3418
    %v3420 = vand.u32 %v3419, 4294901760
    %v3421 = vsub.f32 %v3419, %v3420
    %v3422 = vand.u32 %v3421, 4294901760
    %3423 = vmatpush1.msra.mxu0 %v3422
    %3424 = vmatprep.subr.mxu0 0.0
    %v3425 = vand.u32 %v3237, 4294901760
    %v3426 = vsub.f32 %v3237, %v3425
    %v3427 = vand.u32 %v3426, 4294901760
    %v3428 = vsub.f32 %v3426, %v3427
    %v3429 = vand.u32 %v3428, 4294901760
    %3430 = vmatpush1.msra.mxu0 %v3429
    %3431 = vmatprep.subr.mxu0 0.0
    %v3432 = vand.u32 %v3238, 4294901760
    %v3433 = vsub.f32 %v3238, %v3432
    %v3434 = vand.u32 %v3433, 4294901760
    %v3435 = vsub.f32 %v3433, %v3434
    %v3436 = vand.u32 %v3435, 4294901760
    %3437 = vmatpush1.msra.mxu0 %v3436
    %3438 = vmatprep.subr.mxu0 0.0
    %v3439 = vand.u32 %v3239, 4294901760
    %v3440 = vsub.f32 %v3239, %v3439
    %v3441 = vand.u32 %v3440, 4294901760
    %v3442 = vsub.f32 %v3440, %v3441
    %v3443 = vand.u32 %v3442, 4294901760
    %3444 = vmatpush1.msra.mxu0 %v3443
    %3445 = vmatprep.subr.mxu0 0.0
    %v3446 = vand.u32 %v3240, 4294901760
    %v3447 = vsub.f32 %v3240, %v3446
    %v3448 = vand.u32 %v3447, 4294901760
    %v3449 = vsub.f32 %v3447, %v3448
    %v3450 = vand.u32 %v3449, 4294901760
    %3451 = vmatpush1.msra.mxu0 %v3450
    %3452 = vmatprep.subr.mxu0 0.0
    %3453 = vmatpush1.msra.mxu0 0.0
    %3454 = vmatprep.subr.mxu0 0.0
    %3455 = vmatpush1.msra.mxu0 0.0
    %3456 = vmatprep.subr.mxu0 0.0
    %3457 = vmatpush1.msra.mxu0 0.0
    %3458 = vmatprep.subr.mxu0 0.0
    %3459 = vmatpush1.msra.mxu0 0.0
    %3460 = vmatprep.subr.mxu0 0.0
    %3461 = vmatpush1.msra.mxu0 0.0
    %3462 = vmatprep.subr.mxu0 0.0
    %3463 = vmatpush1.msra.mxu0 0.0
    %3464 = vmatprep.subr.mxu0 0.0
    %3465 = vmatpush1.msra.mxu0 0.0
    %3466 = vmatprep.subr.mxu0 0.0
    %3467 = vmatpush1.msra.mxu0 0.0
    %3468 = vmatprep.subr.mxu0 0.0
    %3469 = vmatpush1.msra.mxu0 0.0
    %3470 = vmatprep.subr.mxu0 0.0
    %3471 = vmatpush1.msra.mxu0 0.0
    %3472 = vmatprep.subr.mxu0 0.0
    %3473 = vmatpush1.msra.mxu0 0.0
    %3474 = vmatprep.subr.mxu0 0.0
    %3475 = vmatpush1.msra.mxu0 0.0
    %3476 = vmatprep.subr.mxu0 0.0
    %3477 = vmatpush1.msra.mxu0 0.0
    %3478 = vmatprep.subr.mxu0 0.0
    %3479 = vmatpush1.msra.mxu0 0.0
    %3480 = vmatprep.subr.mxu0 0.0
    %3481 = vmatpush1.msra.mxu0 0.0
    %3482 = vmatprep.subr.mxu0 0.0
    %3483 = vmatpush1.msra.mxu0 0.0
    %3484 = vmatprep.mubr.f32.mxu0 0.0
    %v3485 = vand.u32 %v3223, 4294901760
    %3486 = vmatmul.mubr.f32.gmra.mrb[0].mxu0 %v3485
    %v3487 = vpop.f32.mrb[0].mxu0
    %v3488 = vadd.f32 %v3337, %v3487
    %v3489 = vpop.f32.mrb[0].mxu0
    %3490 = vdwg.mxu0
    %3491 = vmatprep.subr.mxu0 0.0
    %v3492 = vand.u32 %v3225, 4294901760
    %v3493 = vsub.f32 %v3225, %v3492
    %3494 = vmatpush1.msra.mxu0 %v3493
    %3495 = vmatprep.subr.mxu0 0.0
    %v3496 = vand.u32 %v3226, 4294901760
    %v3497 = vsub.f32 %v3226, %v3496
    %3498 = vmatpush1.msra.mxu0 %v3497
    %3499 = vmatprep.subr.mxu0 0.0
    %v3500 = vand.u32 %v3227, 4294901760
    %v3501 = vsub.f32 %v3227, %v3500
    %3502 = vmatpush1.msra.mxu0 %v3501
    %3503 = vmatprep.subr.mxu0 0.0
    %v3504 = vand.u32 %v3228, 4294901760
    %v3505 = vsub.f32 %v3228, %v3504
    %3506 = vmatpush1.msra.mxu0 %v3505
    %3507 = vmatprep.subr.mxu0 0.0
    %v3508 = vand.u32 %v3229, 4294901760
    %v3509 = vsub.f32 %v3229, %v3508
    %3510 = vmatpush1.msra.mxu0 %v3509
    %3511 = vmatprep.subr.mxu0 0.0
    %v3512 = vand.u32 %v3230, 4294901760
    %v3513 = vsub.f32 %v3230, %v3512
    %3514 = vmatpush1.msra.mxu0 %v3513
    %3515 = vmatprep.subr.mxu0 0.0
    %v3516 = vand.u32 %v3231, 4294901760
    %v3517 = vsub.f32 %v3231, %v3516
    %3518 = vmatpush1.msra.mxu0 %v3517
    %3519 = vmatprep.subr.mxu0 0.0
    %v3520 = vand.u32 %v3232, 4294901760
    %v3521 = vsub.f32 %v3232, %v3520
    %3522 = vmatpush1.msra.mxu0 %v3521
    %3523 = vmatprep.subr.mxu0 0.0
    %v3524 = vand.u32 %v3233, 4294901760
    %v3525 = vsub.f32 %v3233, %v3524
    %3526 = vmatpush1.msra.mxu0 %v3525
    %3527 = vmatprep.subr.mxu0 0.0
    %v3528 = vand.u32 %v3234, 4294901760
    %v3529 = vsub.f32 %v3234, %v3528
    %3530 = vmatpush1.msra.mxu0 %v3529
    %3531 = vmatprep.subr.mxu0 0.0
    %v3532 = vand.u32 %v3235, 4294901760
    %v3533 = vsub.f32 %v3235, %v3532
    %3534 = vmatpush1.msra.mxu0 %v3533
    %3535 = vmatprep.subr.mxu0 0.0
    %v3536 = vand.u32 %v3236, 4294901760
    %v3537 = vsub.f32 %v3236, %v3536
    %3538 = vmatpush1.msra.mxu0 %v3537
    %3539 = vmatprep.subr.mxu0 0.0
    %v3540 = vand.u32 %v3237, 4294901760
    %v3541 = vsub.f32 %v3237, %v3540
    %3542 = vmatpush1.msra.mxu0 %v3541
    %3543 = vmatprep.subr.mxu0 0.0
    %v3544 = vand.u32 %v3238, 4294901760
    %v3545 = vsub.f32 %v3238, %v3544
    %3546 = vmatpush1.msra.mxu0 %v3545
    %3547 = vmatprep.subr.mxu0 0.0
    %v3548 = vand.u32 %v3239, 4294901760
    %v3549 = vsub.f32 %v3239, %v3548
    %3550 = vmatpush1.msra.mxu0 %v3549
    %3551 = vmatprep.subr.mxu0 0.0
    %v3552 = vand.u32 %v3240, 4294901760
    %v3553 = vsub.f32 %v3240, %v3552
    %3554 = vmatpush1.msra.mxu0 %v3553
    %3555 = vmatprep.subr.mxu0 0.0
    %3556 = vmatpush1.msra.mxu0 0.0
    %3557 = vmatprep.subr.mxu0 0.0
    %3558 = vmatpush1.msra.mxu0 0.0
    %3559 = vmatprep.subr.mxu0 0.0
    %3560 = vmatpush1.msra.mxu0 0.0
    %3561 = vmatprep.subr.mxu0 0.0
    %3562 = vmatpush1.msra.mxu0 0.0
    %3563 = vmatprep.subr.mxu0 0.0
    %3564 = vmatpush1.msra.mxu0 0.0
    %3565 = vmatprep.subr.mxu0 0.0
    %3566 = vmatpush1.msra.mxu0 0.0
    %3567 = vmatprep.subr.mxu0 0.0
    %3568 = vmatpush1.msra.mxu0 0.0
    %3569 = vmatprep.subr.mxu0 0.0
    %3570 = vmatpush1.msra.mxu0 0.0
    %3571 = vmatprep.subr.mxu0 0.0
    %3572 = vmatpush1.msra.mxu0 0.0
    %3573 = vmatprep.subr.mxu0 0.0
    %3574 = vmatpush1.msra.mxu0 0.0
    %3575 = vmatprep.subr.mxu0 0.0
    %3576 = vmatpush1.msra.mxu0 0.0
    %3577 = vmatprep.subr.mxu0 0.0
    %3578 = vmatpush1.msra.mxu0 0.0
    %3579 = vmatprep.subr.mxu0 0.0
    %3580 = vmatpush1.msra.mxu0 0.0
    %3581 = vmatprep.subr.mxu0 0.0
    %3582 = vmatpush1.msra.mxu0 0.0
    %3583 = vmatprep.subr.mxu0 0.0
    %3584 = vmatpush1.msra.mxu0 0.0
    %3585 = vmatprep.subr.mxu0 0.0
    %3586 = vmatpush1.msra.mxu0 0.0
    %3587 = vmatprep.mubr.f32.mxu0 0.0
    %v3588 = vand.u32 %v3223, 4294901760
    %v3589 = vsub.f32 %v3223, %v3588
    %3590 = vmatmul.mubr.f32.gmra.mrb[0].mxu0 %v3589
    %v3591 = vpop.f32.mrb[0].mxu0
    %v3592 = vadd.f32 %v3488, %v3591
    %v3593 = vpop.f32.mrb[0].mxu0
    %3594 = vdwg.mxu0
    %3595 = vmatprep.subr.mxu0 0.0
    %v3596 = vand.u32 %v3225, 4294901760
    %3597 = vmatpush1.msra.mxu0 %v3596
    %3598 = vmatprep.subr.mxu0 0.0
    %v3599 = vand.u32 %v3226, 4294901760
    %3600 = vmatpush1.msra.mxu0 %v3599
    %3601 = vmatprep.subr.mxu0 0.0
    %v3602 = vand.u32 %v3227, 4294901760
    %3603 = vmatpush1.msra.mxu0 %v3602
    %3604 = vmatprep.subr.mxu0 0.0
    %v3605 = vand.u32 %v3228, 4294901760
    %3606 = vmatpush1.msra.mxu0 %v3605
    %3607 = vmatprep.subr.mxu0 0.0
    %v3608 = vand.u32 %v3229, 4294901760
    %3609 = vmatpush1.msra.mxu0 %v3608
    %3610 = vmatprep.subr.mxu0 0.0
    %v3611 = vand.u32 %v3230, 4294901760
    %3612 = vmatpush1.msra.mxu0 %v3611
    %3613 = vmatprep.subr.mxu0 0.0
    %v3614 = vand.u32 %v3231, 4294901760
    %3615 = vmatpush1.msra.mxu0 %v3614
    %3616 = vmatprep.subr.mxu0 0.0
    %v3617 = vand.u32 %v3232, 4294901760
    %3618 = vmatpush1.msra.mxu0 %v3617
    %3619 = vmatprep.subr.mxu0 0.0
    %v3620 = vand.u32 %v3233, 4294901760
    %3621 = vmatpush1.msra.mxu0 %v3620
    %3622 = vmatprep.subr.mxu0 0.0
    %v3623 = vand.u32 %v3234, 4294901760
    %3624 = vmatpush1.msra.mxu0 %v3623
    %3625 = vmatprep.subr.mxu0 0.0
    %v3626 = vand.u32 %v3235, 4294901760
    %3627 = vmatpush1.msra.mxu0 %v3626
    %3628 = vmatprep.subr.mxu0 0.0
    %v3629 = vand.u32 %v3236, 4294901760
    %3630 = vmatpush1.msra.mxu0 %v3629
    %3631 = vmatprep.subr.mxu0 0.0
    %v3632 = vand.u32 %v3237, 4294901760
    %3633 = vmatpush1.msra.mxu0 %v3632
    %3634 = vmatprep.subr.mxu0 0.0
    %v3635 = vand.u32 %v3238, 4294901760
    %3636 = vmatpush1.msra.mxu0 %v3635
    %3637 = vmatprep.subr.mxu0 0.0
    %v3638 = vand.u32 %v3239, 4294901760
    %3639 = vmatpush1.msra.mxu0 %v3638
    %3640 = vmatprep.subr.mxu0 0.0
    %v3641 = vand.u32 %v3240, 4294901760
    %3642 = vmatpush1.msra.mxu0 %v3641
    %3643 = vmatprep.subr.mxu0 0.0
    %3644 = vmatpush1.msra.mxu0 0.0
    %3645 = vmatprep.subr.mxu0 0.0
    %3646 = vmatpush1.msra.mxu0 0.0
    %3647 = vmatprep.subr.mxu0 0.0
    %3648 = vmatpush1.msra.mxu0 0.0
    %3649 = vmatprep.subr.mxu0 0.0
    %3650 = vmatpush1.msra.mxu0 0.0
    %3651 = vmatprep.subr.mxu0 0.0
    %3652 = vmatpush1.msra.mxu0 0.0
    %3653 = vmatprep.subr.mxu0 0.0
    %3654 = vmatpush1.msra.mxu0 0.0
    %3655 = vmatprep.subr.mxu0 0.0
    %3656 = vmatpush1.msra.mxu0 0.0
    %3657 = vmatprep.subr.mxu0 0.0
    %3658 = vmatpush1.msra.mxu0 0.0
    %3659 = vmatprep.subr.mxu0 0.0
    %3660 = vmatpush1.msra.mxu0 0.0
    %3661 = vmatprep.subr.mxu0 0.0
    %3662 = vmatpush1.msra.mxu0 0.0
    %3663 = vmatprep.subr.mxu0 0.0
    %3664 = vmatpush1.msra.mxu0 0.0
    %3665 = vmatprep.subr.mxu0 0.0
    %3666 = vmatpush1.msra.mxu0 0.0
    %3667 = vmatprep.subr.mxu0 0.0
    %3668 = vmatpush1.msra.mxu0 0.0
    %3669 = vmatprep.subr.mxu0 0.0
    %3670 = vmatpush1.msra.mxu0 0.0
    %3671 = vmatprep.subr.mxu0 0.0
    %3672 = vmatpush1.msra.mxu0 0.0
    %3673 = vmatprep.subr.mxu0 0.0
    %3674 = vmatpush1.msra.mxu0 0.0
    %3675 = vmatprep.mubr.f32.mxu0 0.0
    %v3676 = vand.u32 %v3223, 4294901760
    %v3677 = vsub.f32 %v3223, %v3676
    %v3678 = vand.u32 %v3677, 4294901760
    %3679 = vmatmul.mubr.f32.gmra.mrb[0].mxu0 %v3678
    %v3680 = vpop.f32.mrb[0].mxu0
    %v3681 = vadd.f32 %v3592, %v3680
    %v3682 = vpop.f32.mrb[0].mxu0
    %3683 = vdwg.mxu0
    %3684 = vmatprep.subr.mxu0 0.0
    %v3685 = vand.u32 %v3225, 4294901760
    %v3686 = vsub.f32 %v3225, %v3685
    %v3687 = vand.u32 %v3686, 4294901760
    %3688 = vmatpush1.msra.mxu0 %v3687
    %3689 = vmatprep.subr.mxu0 0.0
    %v3690 = vand.u32 %v3226, 4294901760
    %v3691 = vsub.f32 %v3226, %v3690
    %v3692 = vand.u32 %v3691, 4294901760
    %3693 = vmatpush1.msra.mxu0 %v3692
    %3694 = vmatprep.subr.mxu0 0.0
    %v3695 = vand.u32 %v3227, 4294901760
    %v3696 = vsub.f32 %v3227, %v3695
    %v3697 = vand.u32 %v3696, 4294901760
    %3698 = vmatpush1.msra.mxu0 %v3697
    %3699 = vmatprep.subr.mxu0 0.0
    %v3700 = vand.u32 %v3228, 4294901760
    %v3701 = vsub.f32 %v3228, %v3700
    %v3702 = vand.u32 %v3701, 4294901760
    %3703 = vmatpush1.msra.mxu0 %v3702
    %3704 = vmatprep.subr.mxu0 0.0
    %v3705 = vand.u32 %v3229, 4294901760
    %v3706 = vsub.f32 %v3229, %v3705
    %v3707 = vand.u32 %v3706, 4294901760
    %3708 = vmatpush1.msra.mxu0 %v3707
    %3709 = vmatprep.subr.mxu0 0.0
    %v3710 = vand.u32 %v3230, 4294901760
    %v3711 = vsub.f32 %v3230, %v3710
    %v3712 = vand.u32 %v3711, 4294901760
    %3713 = vmatpush1.msra.mxu0 %v3712
    %3714 = vmatprep.subr.mxu0 0.0
    %v3715 = vand.u32 %v3231, 4294901760
    %v3716 = vsub.f32 %v3231, %v3715
    %v3717 = vand.u32 %v3716, 4294901760
    %3718 = vmatpush1.msra.mxu0 %v3717
    %3719 = vmatprep.subr.mxu0 0.0
    %v3720 = vand.u32 %v3232, 4294901760
    %v3721 = vsub.f32 %v3232, %v3720
    %v3722 = vand.u32 %v3721, 4294901760
    %3723 = vmatpush1.msra.mxu0 %v3722
    %3724 = vmatprep.subr.mxu0 0.0
    %v3725 = vand.u32 %v3233, 4294901760
    %v3726 = vsub.f32 %v3233, %v3725
    %v3727 = vand.u32 %v3726, 4294901760
    %3728 = vmatpush1.msra.mxu0 %v3727
    %3729 = vmatprep.subr.mxu0 0.0
    %v3730 = vand.u32 %v3234, 4294901760
    %v3731 = vsub.f32 %v3234, %v3730
    %v3732 = vand.u32 %v3731, 4294901760
    %3733 = vmatpush1.msra.mxu0 %v3732
    %3734 = vmatprep.subr.mxu0 0.0
    %v3735 = vand.u32 %v3235, 4294901760
    %v3736 = vsub.f32 %v3235, %v3735
    %v3737 = vand.u32 %v3736, 4294901760
    %3738 = vmatpush1.msra.mxu0 %v3737
    %3739 = vmatprep.subr.mxu0 0.0
    %v3740 = vand.u32 %v3236, 4294901760
    %v3741 = vsub.f32 %v3236, %v3740
    %v3742 = vand.u32 %v3741, 4294901760
    %3743 = vmatpush1.msra.mxu0 %v3742
    %3744 = vmatprep.subr.mxu0 0.0
    %v3745 = vand.u32 %v3237, 4294901760
    %v3746 = vsub.f32 %v3237, %v3745
    %v3747 = vand.u32 %v3746, 4294901760
    %3748 = vmatpush1.msra.mxu0 %v3747
    %3749 = vmatprep.subr.mxu0 0.0
    %v3750 = vand.u32 %v3238, 4294901760
    %v3751 = vsub.f32 %v3238, %v3750
    %v3752 = vand.u32 %v3751, 4294901760
    %3753 = vmatpush1.msra.mxu0 %v3752
    %3754 = vmatprep.subr.mxu0 0.0
    %v3755 = vand.u32 %v3239, 4294901760
    %v3756 = vsub.f32 %v3239, %v3755
    %v3757 = vand.u32 %v3756, 4294901760
    %3758 = vmatpush1.msra.mxu0 %v3757
    %3759 = vmatprep.subr.mxu0 0.0
    %v3760 = vand.u32 %v3240, 4294901760
    %v3761 = vsub.f32 %v3240, %v3760
    %v3762 = vand.u32 %v3761, 4294901760
    %3763 = vmatpush1.msra.mxu0 %v3762
    %3764 = vmatprep.subr.mxu0 0.0
    %3765 = vmatpush1.msra.mxu0 0.0
    %3766 = vmatprep.subr.mxu0 0.0
    %3767 = vmatpush1.msra.mxu0 0.0
    %3768 = vmatprep.subr.mxu0 0.0
    %3769 = vmatpush1.msra.mxu0 0.0
    %3770 = vmatprep.subr.mxu0 0.0
    %3771 = vmatpush1.msra.mxu0 0.0
    %3772 = vmatprep.subr.mxu0 0.0
    %3773 = vmatpush1.msra.mxu0 0.0
    %3774 = vmatprep.subr.mxu0 0.0
    %3775 = vmatpush1.msra.mxu0 0.0
    %3776 = vmatprep.subr.mxu0 0.0
    %3777 = vmatpush1.msra.mxu0 0.0
    %3778 = vmatprep.subr.mxu0 0.0
    %3779 = vmatpush1.msra.mxu0 0.0
    %3780 = vmatprep.subr.mxu0 0.0
    %3781 = vmatpush1.msra.mxu0 0.0
    %3782 = vmatprep.subr.mxu0 0.0
    %3783 = vmatpush1.msra.mxu0 0.0
    %3784 = vmatprep.subr.mxu0 0.0
    %3785 = vmatpush1.msra.mxu0 0.0
    %3786 = vmatprep.subr.mxu0 0.0
    %3787 = vmatpush1.msra.mxu0 0.0
    %3788 = vmatprep.subr.mxu0 0.0
    %3789 = vmatpush1.msra.mxu0 0.0
    %3790 = vmatprep.subr.mxu0 0.0
    %3791 = vmatpush1.msra.mxu0 0.0
    %3792 = vmatprep.subr.mxu0 0.0
    %3793 = vmatpush1.msra.mxu0 0.0
    %3794 = vmatprep.subr.mxu0 0.0
    %3795 = vmatpush1.msra.mxu0 0.0
    %3796 = vmatprep.mubr.f32.mxu0 0.0
    %v3797 = vand.u32 %v3223, 4294901760
    %3798 = vmatmul.mubr.f32.gmra.mrb[0].mxu0 %v3797
    %v3799 = vpop.f32.mrb[0].mxu0
    %v3800 = vadd.f32 %v3681, %v3799
    %v3801 = vpop.f32.mrb[0].mxu0
    %3802 = vdwg.mxu0
    %3803 = vmatprep.subr.mxu0 0.0
    %v3804 = vand.u32 %v3225, 4294901760
    %3805 = vmatpush1.msra.mxu0 %v3804
    %3806 = vmatprep.subr.mxu0 0.0
    %v3807 = vand.u32 %v3226, 4294901760
    %3808 = vmatpush1.msra.mxu0 %v3807
    %3809 = vmatprep.subr.mxu0 0.0
    %v3810 = vand.u32 %v3227, 4294901760
    %3811 = vmatpush1.msra.mxu0 %v3810
    %3812 = vmatprep.subr.mxu0 0.0
    %v3813 = vand.u32 %v3228, 4294901760
    %3814 = vmatpush1.msra.mxu0 %v3813
    %3815 = vmatprep.subr.mxu0 0.0
    %v3816 = vand.u32 %v3229, 4294901760
    %3817 = vmatpush1.msra.mxu0 %v3816
    %3818 = vmatprep.subr.mxu0 0.0
    %v3819 = vand.u32 %v3230, 4294901760
    %3820 = vmatpush1.msra.mxu0 %v3819
    %3821 = vmatprep.subr.mxu0 0.0
    %v3822 = vand.u32 %v3231, 4294901760
    %3823 = vmatpush1.msra.mxu0 %v3822
    %3824 = vmatprep.subr.mxu0 0.0
    %v3825 = vand.u32 %v3232, 4294901760
    %3826 = vmatpush1.msra.mxu0 %v3825
    %3827 = vmatprep.subr.mxu0 0.0
    %v3828 = vand.u32 %v3233, 4294901760
    %3829 = vmatpush1.msra.mxu0 %v3828
    %3830 = vmatprep.subr.mxu0 0.0
    %v3831 = vand.u32 %v3234, 4294901760
    %3832 = vmatpush1.msra.mxu0 %v3831
    %3833 = vmatprep.subr.mxu0 0.0
    %v3834 = vand.u32 %v3235, 4294901760
    %3835 = vmatpush1.msra.mxu0 %v3834
    %3836 = vmatprep.subr.mxu0 0.0
    %v3837 = vand.u32 %v3236, 4294901760
    %3838 = vmatpush1.msra.mxu0 %v3837
    %3839 = vmatprep.subr.mxu0 0.0
    %v3840 = vand.u32 %v3237, 4294901760
    %3841 = vmatpush1.msra.mxu0 %v3840
    %3842 = vmatprep.subr.mxu0 0.0
    %v3843 = vand.u32 %v3238, 4294901760
    %3844 = vmatpush1.msra.mxu0 %v3843
    %3845 = vmatprep.subr.mxu0 0.0
    %v3846 = vand.u32 %v3239, 4294901760
    %3847 = vmatpush1.msra.mxu0 %v3846
    %3848 = vmatprep.subr.mxu0 0.0
    %v3849 = vand.u32 %v3240, 4294901760
    %3850 = vmatpush1.msra.mxu0 %v3849
    %3851 = vmatprep.subr.mxu0 0.0
    %3852 = vmatpush1.msra.mxu0 0.0
    %3853 = vmatprep.subr.mxu0 0.0
    %3854 = vmatpush1.msra.mxu0 0.0
    %3855 = vmatprep.subr.mxu0 0.0
    %3856 = vmatpush1.msra.mxu0 0.0
    %3857 = vmatprep.subr.mxu0 0.0
    %3858 = vmatpush1.msra.mxu0 0.0
    %3859 = vmatprep.subr.mxu0 0.0
    %3860 = vmatpush1.msra.mxu0 0.0
    %3861 = vmatprep.subr.mxu0 0.0
    %3862 = vmatpush1.msra.mxu0 0.0
    %3863 = vmatprep.subr.mxu0 0.0
    %3864 = vmatpush1.msra.mxu0 0.0
    %3865 = vmatprep.subr.mxu0 0.0
    %3866 = vmatpush1.msra.mxu0 0.0
    %3867 = vmatprep.subr.mxu0 0.0
    %3868 = vmatpush1.msra.mxu0 0.0
    %3869 = vmatprep.subr.mxu0 0.0
    %3870 = vmatpush1.msra.mxu0 0.0
    %3871 = vmatprep.subr.mxu0 0.0
    %3872 = vmatpush1.msra.mxu0 0.0
    %3873 = vmatprep.subr.mxu0 0.0
    %3874 = vmatpush1.msra.mxu0 0.0
    %3875 = vmatprep.subr.mxu0 0.0
    %3876 = vmatpush1.msra.mxu0 0.0
    %3877 = vmatprep.subr.mxu0 0.0
    %3878 = vmatpush1.msra.mxu0 0.0
    %3879 = vmatprep.subr.mxu0 0.0
    %3880 = vmatpush1.msra.mxu0 0.0
    %3881 = vmatprep.subr.mxu0 0.0
    %3882 = vmatpush1.msra.mxu0 0.0
    %3883 = vmatprep.mubr.f32.mxu0 0.0
    %v3884 = vand.u32 %v3223, 4294901760
    %3885 = vmatmul.mubr.f32.gmra.mrb[0].mxu0 %v3884
    %v3886 = vpop.f32.mrb[0].mxu0
    %v3887 = vadd.f32 %v3800, %v3886
    %v3888 = vpop.f32.mrb[0].mxu0
    %3889 = vdwg.mxu0
    %v3890 = vmax.f32 %v3887, 0.0
    %s3891 = scalar_lea.vmem [#allocation4], 768
    %v3892 = vld [vmem:[%s3891] sm:$0xff]
    %v3893 = vld [vmem:[%s3891 + $0x8] sm:$0xff]
    %v3894 = vld [vmem:[%s3891 + $0x10] sm:$0xff]
    %v3895 = vld [vmem:[%s3891 + $0x18] sm:$0xff]
    %v3896 = vld [vmem:[%s3891 + $0x20] sm:$0xff]
    %v3897 = vld [vmem:[%s3891 + $0x28] sm:$0xff]
    %v3898 = vld [vmem:[%s3891 + $0x30] sm:$0xff]
    %v3899 = vld [vmem:[%s3891 + $0x38] sm:$0xff]
    %v3900 = vld [vmem:[%s3891 + $0x40] sm:$0xff]
    %v3901 = vld [vmem:[%s3891 + $0x48] sm:$0xff]
    %v3902 = vld [vmem:[%s3891 + $0x50] sm:$0xff]
    %v3903 = vld [vmem:[%s3891 + $0x58] sm:$0xff]
    %v3904 = vld [vmem:[%s3891 + $0x60] sm:$0xff]
    %v3905 = vld [vmem:[%s3891 + $0x68] sm:$0xff]
    %v3906 = vld [vmem:[%s3891 + $0x70] sm:$0xff]
    %v3907 = vld [vmem:[%s3891 + $0x78] sm:$0xff]
    %s3908 = scalar_lea.vmem [#allocation6], 6
    %v3909 = vld [vmem:[%s3908] sm:$0x1]
    %v3911 = vlaneseq
    %v3912 = vshrl.u32 %v3911, 7
    %v3913 = vsub.s32 0, %v3912
    %v3914 = vrot.slane %v3909, %v3913
    %3916 = vmatprep.subr.mxu0 0.0
    %v3917 = vand.u32 %v3892, 4294901760
    %3918 = vmatpush1.msra.mxu0 %v3917
    %3919 = vmatprep.subr.mxu0 0.0
    %v3920 = vand.u32 %v3893, 4294901760
    %3921 = vmatpush1.msra.mxu0 %v3920
    %3922 = vmatprep.subr.mxu0 0.0
    %v3923 = vand.u32 %v3894, 4294901760
    %3924 = vmatpush1.msra.mxu0 %v3923
    %3925 = vmatprep.subr.mxu0 0.0
    %v3926 = vand.u32 %v3895, 4294901760
    %3927 = vmatpush1.msra.mxu0 %v3926
    %3928 = vmatprep.subr.mxu0 0.0
    %v3929 = vand.u32 %v3896, 4294901760
    %3930 = vmatpush1.msra.mxu0 %v3929
    %3931 = vmatprep.subr.mxu0 0.0
    %v3932 = vand.u32 %v3897, 4294901760
    %3933 = vmatpush1.msra.mxu0 %v3932
    %3934 = vmatprep.subr.mxu0 0.0
    %v3935 = vand.u32 %v3898, 4294901760
    %3936 = vmatpush1.msra.mxu0 %v3935
    %3937 = vmatprep.subr.mxu0 0.0
    %v3938 = vand.u32 %v3899, 4294901760
    %3939 = vmatpush1.msra.mxu0 %v3938
    %3940 = vmatprep.subr.mxu0 0.0
    %v3941 = vand.u32 %v3900, 4294901760
    %3942 = vmatpush1.msra.mxu0 %v3941
    %3943 = vmatprep.subr.mxu0 0.0
    %v3944 = vand.u32 %v3901, 4294901760
    %3945 = vmatpush1.msra.mxu0 %v3944
    %3946 = vmatprep.subr.mxu0 0.0
    %v3947 = vand.u32 %v3902, 4294901760
    %3948 = vmatpush1.msra.mxu0 %v3947
    %3949 = vmatprep.subr.mxu0 0.0
    %v3950 = vand.u32 %v3903, 4294901760
    %3951 = vmatpush1.msra.mxu0 %v3950
    %3952 = vmatprep.subr.mxu0 0.0
    %v3953 = vand.u32 %v3904, 4294901760
    %3954 = vmatpush1.msra.mxu0 %v3953
    %3955 = vmatprep.subr.mxu0 0.0
    %v3956 = vand.u32 %v3905, 4294901760
    %3957 = vmatpush1.msra.mxu0 %v3956
    %3958 = vmatprep.subr.mxu0 0.0
    %v3959 = vand.u32 %v3906, 4294901760
    %3960 = vmatpush1.msra.mxu0 %v3959
    %3961 = vmatprep.subr.mxu0 0.0
    %v3962 = vand.u32 %v3907, 4294901760
    %3963 = vmatpush1.msra.mxu0 %v3962
    %3964 = vmatprep.subr.mxu0 0.0
    %3965 = vmatpush1.msra.mxu0 0.0
    %3966 = vmatprep.subr.mxu0 0.0
    %3967 = vmatpush1.msra.mxu0 0.0
    %3968 = vmatprep.subr.mxu0 0.0
    %3969 = vmatpush1.msra.mxu0 0.0
    %3970 = vmatprep.subr.mxu0 0.0
    %3971 = vmatpush1.msra.mxu0 0.0
    %3972 = vmatprep.subr.mxu0 0.0
    %3973 = vmatpush1.msra.mxu0 0.0
    %3974 = vmatprep.subr.mxu0 0.0
    %3975 = vmatpush1.msra.mxu0 0.0
    %3976 = vmatprep.subr.mxu0 0.0
    %3977 = vmatpush1.msra.mxu0 0.0
    %3978 = vmatprep.subr.mxu0 0.0
    %3979 = vmatpush1.msra.mxu0 0.0
    %3980 = vmatprep.subr.mxu0 0.0
    %3981 = vmatpush1.msra.mxu0 0.0
    %3982 = vmatprep.subr.mxu0 0.0
    %3983 = vmatpush1.msra.mxu0 0.0
    %3984 = vmatprep.subr.mxu0 0.0
    %3985 = vmatpush1.msra.mxu0 0.0
    %3986 = vmatprep.subr.mxu0 0.0
    %3987 = vmatpush1.msra.mxu0 0.0
    %3988 = vmatprep.subr.mxu0 0.0
    %3989 = vmatpush1.msra.mxu0 0.0
    %3990 = vmatprep.subr.mxu0 0.0
    %3991 = vmatpush1.msra.mxu0 0.0
    %3992 = vmatprep.subr.mxu0 0.0
    %3993 = vmatpush1.msra.mxu0 0.0
    %3994 = vmatprep.subr.mxu0 0.0
    %3995 = vmatpush1.msra.mxu0 0.0
    %3996 = vmatprep.mubr.f32.mxu0 0.0
    %v3997 = vand.u32 %v3890, 4294901760
    %v3998 = vsub.f32 %v3890, %v3997
    %v3999 = vand.u32 %v3998, 4294901760
    %v4000 = vsub.f32 %v3998, %v3999
    %v4001 = vand.u32 %v4000, 4294901760
    %4002 = vmatmul.mubr.f32.gmra.mrb[0].mxu0 %v4001
    %v4003 = vpop.f32.mrb[0].mxu0
    %v4004 = vadd.f32 %v3914, %v4003
    %v4005 = vpop.f32.mrb[0].mxu0
    %4006 = vdwg.mxu0
    %4007 = vmatprep.subr.mxu0 0.0
    %v4008 = vand.u32 %v3892, 4294901760
    %v4009 = vsub.f32 %v3892, %v4008
    %v4010 = vand.u32 %v4009, 4294901760
    %v4011 = vsub.f32 %v4009, %v4010
    %v4012 = vand.u32 %v4011, 4294901760
    %4013 = vmatpush1.msra.mxu0 %v4012
    %4014 = vmatprep.subr.mxu0 0.0
    %v4015 = vand.u32 %v3893, 4294901760
    %v4016 = vsub.f32 %v3893, %v4015
    %v4017 = vand.u32 %v4016, 4294901760
    %v4018 = vsub.f32 %v4016, %v4017
    %v4019 = vand.u32 %v4018, 4294901760
    %4020 = vmatpush1.msra.mxu0 %v4019
    %4021 = vmatprep.subr.mxu0 0.0
    %v4022 = vand.u32 %v3894, 4294901760
    %v4023 = vsub.f32 %v3894, %v4022
    %v4024 = vand.u32 %v4023, 4294901760
    %v4025 = vsub.f32 %v4023, %v4024
    %v4026 = vand.u32 %v4025, 4294901760
    %4027 = vmatpush1.msra.mxu0 %v4026
    %4028 = vmatprep.subr.mxu0 0.0
    %v4029 = vand.u32 %v3895, 4294901760
    %v4030 = vsub.f32 %v3895, %v4029
    %v4031 = vand.u32 %v4030, 4294901760
    %v4032 = vsub.f32 %v4030, %v4031
    %v4033 = vand.u32 %v4032, 4294901760
    %4034 = vmatpush1.msra.mxu0 %v4033
    %4035 = vmatprep.subr.mxu0 0.0
    %v4036 = vand.u32 %v3896, 4294901760
    %v4037 = vsub.f32 %v3896, %v4036
    %v4038 = vand.u32 %v4037, 4294901760
    %v4039 = vsub.f32 %v4037, %v4038
    %v4040 = vand.u32 %v4039, 4294901760
    %4041 = vmatpush1.msra.mxu0 %v4040
    %4042 = vmatprep.subr.mxu0 0.0
    %v4043 = vand.u32 %v3897, 4294901760
    %v4044 = vsub.f32 %v3897, %v4043
    %v4045 = vand.u32 %v4044, 4294901760
    %v4046 = vsub.f32 %v4044, %v4045
    %v4047 = vand.u32 %v4046, 4294901760
    %4048 = vmatpush1.msra.mxu0 %v4047
    %4049 = vmatprep.subr.mxu0 0.0
    %v4050 = vand.u32 %v3898, 4294901760
    %v4051 = vsub.f32 %v3898, %v4050
    %v4052 = vand.u32 %v4051, 4294901760
    %v4053 = vsub.f32 %v4051, %v4052
    %v4054 = vand.u32 %v4053, 4294901760
    %4055 = vmatpush1.msra.mxu0 %v4054
    %4056 = vmatprep.subr.mxu0 0.0
    %v4057 = vand.u32 %v3899, 4294901760
    %v4058 = vsub.f32 %v3899, %v4057
    %v4059 = vand.u32 %v4058, 4294901760
    %v4060 = vsub.f32 %v4058, %v4059
    %v4061 = vand.u32 %v4060, 4294901760
    %4062 = vmatpush1.msra.mxu0 %v4061
    %4063 = vmatprep.subr.mxu0 0.0
    %v4064 = vand.u32 %v3900, 4294901760
    %v4065 = vsub.f32 %v3900, %v4064
    %v4066 = vand.u32 %v4065, 4294901760
    %v4067 = vsub.f32 %v4065, %v4066
    %v4068 = vand.u32 %v4067, 4294901760
    %4069 = vmatpush1.msra.mxu0 %v4068
    %4070 = vmatprep.subr.mxu0 0.0
    %v4071 = vand.u32 %v3901, 4294901760
    %v4072 = vsub.f32 %v3901, %v4071
    %v4073 = vand.u32 %v4072, 4294901760
    %v4074 = vsub.f32 %v4072, %v4073
    %v4075 = vand.u32 %v4074, 4294901760
    %4076 = vmatpush1.msra.mxu0 %v4075
    %4077 = vmatprep.subr.mxu0 0.0
    %v4078 = vand.u32 %v3902, 4294901760
    %v4079 = vsub.f32 %v3902, %v4078
    %v4080 = vand.u32 %v4079, 4294901760
    %v4081 = vsub.f32 %v4079, %v4080
    %v4082 = vand.u32 %v4081, 4294901760
    %4083 = vmatpush1.msra.mxu0 %v4082
    %4084 = vmatprep.subr.mxu0 0.0
    %v4085 = vand.u32 %v3903, 4294901760
    %v4086 = vsub.f32 %v3903, %v4085
    %v4087 = vand.u32 %v4086, 4294901760
    %v4088 = vsub.f32 %v4086, %v4087
    %v4089 = vand.u32 %v4088, 4294901760
    %4090 = vmatpush1.msra.mxu0 %v4089
    %4091 = vmatprep.subr.mxu0 0.0
    %v4092 = vand.u32 %v3904, 4294901760
    %v4093 = vsub.f32 %v3904, %v4092
    %v4094 = vand.u32 %v4093, 4294901760
    %v4095 = vsub.f32 %v4093, %v4094
    %v4096 = vand.u32 %v4095, 4294901760
    %4097 = vmatpush1.msra.mxu0 %v4096
    %4098 = vmatprep.subr.mxu0 0.0
    %v4099 = vand.u32 %v3905, 4294901760
    %v4100 = vsub.f32 %v3905, %v4099
    %v4101 = vand.u32 %v4100, 4294901760
    %v4102 = vsub.f32 %v4100, %v4101
    %v4103 = vand.u32 %v4102, 4294901760
    %4104 = vmatpush1.msra.mxu0 %v4103
    %4105 = vmatprep.subr.mxu0 0.0
    %v4106 = vand.u32 %v3906, 4294901760
    %v4107 = vsub.f32 %v3906, %v4106
    %v4108 = vand.u32 %v4107, 4294901760
    %v4109 = vsub.f32 %v4107, %v4108
    %v4110 = vand.u32 %v4109, 4294901760
    %4111 = vmatpush1.msra.mxu0 %v4110
    %4112 = vmatprep.subr.mxu0 0.0
    %v4113 = vand.u32 %v3907, 4294901760
    %v4114 = vsub.f32 %v3907, %v4113
    %v4115 = vand.u32 %v4114, 4294901760
    %v4116 = vsub.f32 %v4114, %v4115
    %v4117 = vand.u32 %v4116, 4294901760
    %4118 = vmatpush1.msra.mxu0 %v4117
    %4119 = vmatprep.subr.mxu0 0.0
    %4120 = vmatpush1.msra.mxu0 0.0
    %4121 = vmatprep.subr.mxu0 0.0
    %4122 = vmatpush1.msra.mxu0 0.0
    %4123 = vmatprep.subr.mxu0 0.0
    %4124 = vmatpush1.msra.mxu0 0.0
    %4125 = vmatprep.subr.mxu0 0.0
    %4126 = vmatpush1.msra.mxu0 0.0
    %4127 = vmatprep.subr.mxu0 0.0
    %4128 = vmatpush1.msra.mxu0 0.0
    %4129 = vmatprep.subr.mxu0 0.0
    %4130 = vmatpush1.msra.mxu0 0.0
    %4131 = vmatprep.subr.mxu0 0.0
    %4132 = vmatpush1.msra.mxu0 0.0
    %4133 = vmatprep.subr.mxu0 0.0
    %4134 = vmatpush1.msra.mxu0 0.0
    %4135 = vmatprep.subr.mxu0 0.0
    %4136 = vmatpush1.msra.mxu0 0.0
    %4137 = vmatprep.subr.mxu0 0.0
    %4138 = vmatpush1.msra.mxu0 0.0
    %4139 = vmatprep.subr.mxu0 0.0
    %4140 = vmatpush1.msra.mxu0 0.0
    %4141 = vmatprep.subr.mxu0 0.0
    %4142 = vmatpush1.msra.mxu0 0.0
    %4143 = vmatprep.subr.mxu0 0.0
    %4144 = vmatpush1.msra.mxu0 0.0
    %4145 = vmatprep.subr.mxu0 0.0
    %4146 = vmatpush1.msra.mxu0 0.0
    %4147 = vmatprep.subr.mxu0 0.0
    %4148 = vmatpush1.msra.mxu0 0.0
    %4149 = vmatprep.subr.mxu0 0.0
    %4150 = vmatpush1.msra.mxu0 0.0
    %4151 = vmatprep.mubr.f32.mxu0 0.0
    %v4152 = vand.u32 %v3890, 4294901760
    %4153 = vmatmul.mubr.f32.gmra.mrb[0].mxu0 %v4152
    %v4154 = vpop.f32.mrb[0].mxu0
    %v4155 = vadd.f32 %v4004, %v4154
    %v4156 = vpop.f32.mrb[0].mxu0
    %4157 = vdwg.mxu0
    %4158 = vmatprep.subr.mxu0 0.0
    %v4159 = vand.u32 %v3892, 4294901760
    %v4160 = vsub.f32 %v3892, %v4159
    %4161 = vmatpush1.msra.mxu0 %v4160
    %4162 = vmatprep.subr.mxu0 0.0
    %v4163 = vand.u32 %v3893, 4294901760
    %v4164 = vsub.f32 %v3893, %v4163
    %4165 = vmatpush1.msra.mxu0 %v4164
    %4166 = vmatprep.subr.mxu0 0.0
    %v4167 = vand.u32 %v3894, 4294901760
    %v4168 = vsub.f32 %v3894, %v4167
    %4169 = vmatpush1.msra.mxu0 %v4168
    %4170 = vmatprep.subr.mxu0 0.0
    %v4171 = vand.u32 %v3895, 4294901760
    %v4172 = vsub.f32 %v3895, %v4171
    %4173 = vmatpush1.msra.mxu0 %v4172
    %4174 = vmatprep.subr.mxu0 0.0
    %v4175 = vand.u32 %v3896, 4294901760
    %v4176 = vsub.f32 %v3896, %v4175
    %4177 = vmatpush1.msra.mxu0 %v4176
    %4178 = vmatprep.subr.mxu0 0.0
    %v4179 = vand.u32 %v3897, 4294901760
    %v4180 = vsub.f32 %v3897, %v4179
    %4181 = vmatpush1.msra.mxu0 %v4180
    %4182 = vmatprep.subr.mxu0 0.0
    %v4183 = vand.u32 %v3898, 4294901760
    %v4184 = vsub.f32 %v3898, %v4183
    %4185 = vmatpush1.msra.mxu0 %v4184
    %4186 = vmatprep.subr.mxu0 0.0
    %v4187 = vand.u32 %v3899, 4294901760
    %v4188 = vsub.f32 %v3899, %v4187
    %4189 = vmatpush1.msra.mxu0 %v4188
    %4190 = vmatprep.subr.mxu0 0.0
    %v4191 = vand.u32 %v3900, 4294901760
    %v4192 = vsub.f32 %v3900, %v4191
    %4193 = vmatpush1.msra.mxu0 %v4192
    %4194 = vmatprep.subr.mxu0 0.0
    %v4195 = vand.u32 %v3901, 4294901760
    %v4196 = vsub.f32 %v3901, %v4195
    %4197 = vmatpush1.msra.mxu0 %v4196
    %4198 = vmatprep.subr.mxu0 0.0
    %v4199 = vand.u32 %v3902, 4294901760
    %v4200 = vsub.f32 %v3902, %v4199
    %4201 = vmatpush1.msra.mxu0 %v4200
    %4202 = vmatprep.subr.mxu0 0.0
    %v4203 = vand.u32 %v3903, 4294901760
    %v4204 = vsub.f32 %v3903, %v4203
    %4205 = vmatpush1.msra.mxu0 %v4204
    %4206 = vmatprep.subr.mxu0 0.0
    %v4207 = vand.u32 %v3904, 4294901760
    %v4208 = vsub.f32 %v3904, %v4207
    %4209 = vmatpush1.msra.mxu0 %v4208
    %4210 = vmatprep.subr.mxu0 0.0
    %v4211 = vand.u32 %v3905, 4294901760
    %v4212 = vsub.f32 %v3905, %v4211
    %4213 = vmatpush1.msra.mxu0 %v4212
    %4214 = vmatprep.subr.mxu0 0.0
    %v4215 = vand.u32 %v3906, 4294901760
    %v4216 = vsub.f32 %v3906, %v4215
    %4217 = vmatpush1.msra.mxu0 %v4216
    %4218 = vmatprep.subr.mxu0 0.0
    %v4219 = vand.u32 %v3907, 4294901760
    %v4220 = vsub.f32 %v3907, %v4219
    %4221 = vmatpush1.msra.mxu0 %v4220
    %4222 = vmatprep.subr.mxu0 0.0
    %4223 = vmatpush1.msra.mxu0 0.0
    %4224 = vmatprep.subr.mxu0 0.0
    %4225 = vmatpush1.msra.mxu0 0.0
    %4226 = vmatprep.subr.mxu0 0.0
    %4227 = vmatpush1.msra.mxu0 0.0
    %4228 = vmatprep.subr.mxu0 0.0
    %4229 = vmatpush1.msra.mxu0 0.0
    %4230 = vmatprep.subr.mxu0 0.0
    %4231 = vmatpush1.msra.mxu0 0.0
    %4232 = vmatprep.subr.mxu0 0.0
    %4233 = vmatpush1.msra.mxu0 0.0
    %4234 = vmatprep.subr.mxu0 0.0
    %4235 = vmatpush1.msra.mxu0 0.0
    %4236 = vmatprep.subr.mxu0 0.0
    %4237 = vmatpush1.msra.mxu0 0.0
    %4238 = vmatprep.subr.mxu0 0.0
    %4239 = vmatpush1.msra.mxu0 0.0
    %4240 = vmatprep.subr.mxu0 0.0
    %4241 = vmatpush1.msra.mxu0 0.0
    %4242 = vmatprep.subr.mxu0 0.0
    %4243 = vmatpush1.msra.mxu0 0.0
    %4244 = vmatprep.subr.mxu0 0.0
    %4245 = vmatpush1.msra.mxu0 0.0
    %4246 = vmatprep.subr.mxu0 0.0
    %4247 = vmatpush1.msra.mxu0 0.0
    %4248 = vmatprep.subr.mxu0 0.0
    %4249 = vmatpush1.msra.mxu0 0.0
    %4250 = vmatprep.subr.mxu0 0.0
    %4251 = vmatpush1.msra.mxu0 0.0
    %4252 = vmatprep.subr.mxu0 0.0
    %4253 = vmatpush1.msra.mxu0 0.0
    %4254 = vmatprep.mubr.f32.mxu0 0.0
    %v4255 = vand.u32 %v3890, 4294901760
    %v4256 = vsub.f32 %v3890, %v4255
    %4257 = vmatmul.mubr.f32.gmra.mrb[0].mxu0 %v4256
    %v4258 = vpop.f32.mrb[0].mxu0
    %v4259 = vadd.f32 %v4155, %v4258
    %v4260 = vpop.f32.mrb[0].mxu0
    %4261 = vdwg.mxu0
    %4262 = vmatprep.subr.mxu0 0.0
    %v4263 = vand.u32 %v3892, 4294901760
    %4264 = vmatpush1.msra.mxu0 %v4263
    %4265 = vmatprep.subr.mxu0 0.0
    %v4266 = vand.u32 %v3893, 4294901760
    %4267 = vmatpush1.msra.mxu0 %v4266
    %4268 = vmatprep.subr.mxu0 0.0
    %v4269 = vand.u32 %v3894, 4294901760
    %4270 = vmatpush1.msra.mxu0 %v4269
    %4271 = vmatprep.subr.mxu0 0.0
    %v4272 = vand.u32 %v3895, 4294901760
    %4273 = vmatpush1.msra.mxu0 %v4272
    %4274 = vmatprep.subr.mxu0 0.0
    %v4275 = vand.u32 %v3896, 4294901760
    %4276 = vmatpush1.msra.mxu0 %v4275
    %4277 = vmatprep.subr.mxu0 0.0
    %v4278 = vand.u32 %v3897, 4294901760
    %4279 = vmatpush1.msra.mxu0 %v4278
    %4280 = vmatprep.subr.mxu0 0.0
    %v4281 = vand.u32 %v3898, 4294901760
    %4282 = vmatpush1.msra.mxu0 %v4281
    %4283 = vmatprep.subr.mxu0 0.0
    %v4284 = vand.u32 %v3899, 4294901760
    %4285 = vmatpush1.msra.mxu0 %v4284
    %4286 = vmatprep.subr.mxu0 0.0
    %v4287 = vand.u32 %v3900, 4294901760
    %4288 = vmatpush1.msra.mxu0 %v4287
    %4289 = vmatprep.subr.mxu0 0.0
    %v4290 = vand.u32 %v3901, 4294901760
    %4291 = vmatpush1.msra.mxu0 %v4290
    %4292 = vmatprep.subr.mxu0 0.0
    %v4293 = vand.u32 %v3902, 4294901760
    %4294 = vmatpush1.msra.mxu0 %v4293
    %4295 = vmatprep.subr.mxu0 0.0
    %v4296 = vand.u32 %v3903, 4294901760
    %4297 = vmatpush1.msra.mxu0 %v4296
    %4298 = vmatprep.subr.mxu0 0.0
    %v4299 = vand.u32 %v3904, 4294901760
    %4300 = vmatpush1.msra.mxu0 %v4299
    %4301 = vmatprep.subr.mxu0 0.0
    %v4302 = vand.u32 %v3905, 4294901760
    %4303 = vmatpush1.msra.mxu0 %v4302
    %4304 = vmatprep.subr.mxu0 0.0
    %v4305 = vand.u32 %v3906, 4294901760
    %4306 = vmatpush1.msra.mxu0 %v4305
    %4307 = vmatprep.subr.mxu0 0.0
    %v4308 = vand.u32 %v3907, 4294901760
    %4309 = vmatpush1.msra.mxu0 %v4308
    %4310 = vmatprep.subr.mxu0 0.0
    %4311 = vmatpush1.msra.mxu0 0.0
    %4312 = vmatprep.subr.mxu0 0.0
    %4313 = vmatpush1.msra.mxu0 0.0
    %4314 = vmatprep.subr.mxu0 0.0
    %4315 = vmatpush1.msra.mxu0 0.0
    %4316 = vmatprep.subr.mxu0 0.0
    %4317 = vmatpush1.msra.mxu0 0.0
    %4318 = vmatprep.subr.mxu0 0.0
    %4319 = vmatpush1.msra.mxu0 0.0
    %4320 = vmatprep.subr.mxu0 0.0
    %4321 = vmatpush1.msra.mxu0 0.0
    %4322 = vmatprep.subr.mxu0 0.0
    %4323 = vmatpush1.msra.mxu0 0.0
    %4324 = vmatprep.subr.mxu0 0.0
    %4325 = vmatpush1.msra.mxu0 0.0
    %4326 = vmatprep.subr.mxu0 0.0
    %4327 = vmatpush1.msra.mxu0 0.0
    %4328 = vmatprep.subr.mxu0 0.0
    %4329 = vmatpush1.msra.mxu0 0.0
    %4330 = vmatprep.subr.mxu0 0.0
    %4331 = vmatpush1.msra.mxu0 0.0
    %4332 = vmatprep.subr.mxu0 0.0
    %4333 = vmatpush1.msra.mxu0 0.0
    %4334 = vmatprep.subr.mxu0 0.0
    %4335 = vmatpush1.msra.mxu0 0.0
    %4336 = vmatprep.subr.mxu0 0.0
    %4337 = vmatpush1.msra.mxu0 0.0
    %4338 = vmatprep.subr.mxu0 0.0
    %4339 = vmatpush1.msra.mxu0 0.0
    %4340 = vmatprep.subr.mxu0 0.0
    %4341 = vmatpush1.msra.mxu0 0.0
    %4342 = vmatprep.mubr.f32.mxu0 0.0
    %v4343 = vand.u32 %v3890, 4294901760
    %v4344 = vsub.f32 %v3890, %v4343
    %v4345 = vand.u32 %v4344, 4294901760
    %4346 = vmatmul.mubr.f32.gmra.mrb[0].mxu0 %v4345
    %v4347 = vpop.f32.mrb[0].mxu0
    %v4348 = vadd.f32 %v4259, %v4347
    %v4349 = vpop.f32.mrb[0].mxu0
    %4350 = vdwg.mxu0
    %4351 = vmatprep.subr.mxu0 0.0
    %v4352 = vand.u32 %v3892, 4294901760
    %v4353 = vsub.f32 %v3892, %v4352
    %v4354 = vand.u32 %v4353, 4294901760
    %4355 = vmatpush1.msra.mxu0 %v4354
    %4356 = vmatprep.subr.mxu0 0.0
    %v4357 = vand.u32 %v3893, 4294901760
    %v4358 = vsub.f32 %v3893, %v4357
    %v4359 = vand.u32 %v4358, 4294901760
    %4360 = vmatpush1.msra.mxu0 %v4359
    %4361 = vmatprep.subr.mxu0 0.0
    %v4362 = vand.u32 %v3894, 4294901760
    %v4363 = vsub.f32 %v3894, %v4362
    %v4364 = vand.u32 %v4363, 4294901760
    %4365 = vmatpush1.msra.mxu0 %v4364
    %4366 = vmatprep.subr.mxu0 0.0
    %v4367 = vand.u32 %v3895, 4294901760
    %v4368 = vsub.f32 %v3895, %v4367
    %v4369 = vand.u32 %v4368, 4294901760
    %4370 = vmatpush1.msra.mxu0 %v4369
    %4371 = vmatprep.subr.mxu0 0.0
    %v4372 = vand.u32 %v3896, 4294901760
    %v4373 = vsub.f32 %v3896, %v4372
    %v4374 = vand.u32 %v4373, 4294901760
    %4375 = vmatpush1.msra.mxu0 %v4374
    %4376 = vmatprep.subr.mxu0 0.0
    %v4377 = vand.u32 %v3897, 4294901760
    %v4378 = vsub.f32 %v3897, %v4377
    %v4379 = vand.u32 %v4378, 4294901760
    %4380 = vmatpush1.msra.mxu0 %v4379
    %4381 = vmatprep.subr.mxu0 0.0
    %v4382 = vand.u32 %v3898, 4294901760
    %v4383 = vsub.f32 %v3898, %v4382
    %v4384 = vand.u32 %v4383, 4294901760
    %4385 = vmatpush1.msra.mxu0 %v4384
    %4386 = vmatprep.subr.mxu0 0.0
    %v4387 = vand.u32 %v3899, 4294901760
    %v4388 = vsub.f32 %v3899, %v4387
    %v4389 = vand.u32 %v4388, 4294901760
    %4390 = vmatpush1.msra.mxu0 %v4389
    %4391 = vmatprep.subr.mxu0 0.0
    %v4392 = vand.u32 %v3900, 4294901760
    %v4393 = vsub.f32 %v3900, %v4392
    %v4394 = vand.u32 %v4393, 4294901760
    %4395 = vmatpush1.msra.mxu0 %v4394
    %4396 = vmatprep.subr.mxu0 0.0
    %v4397 = vand.u32 %v3901, 4294901760
    %v4398 = vsub.f32 %v3901, %v4397
    %v4399 = vand.u32 %v4398, 4294901760
    %4400 = vmatpush1.msra.mxu0 %v4399
    %4401 = vmatprep.subr.mxu0 0.0
    %v4402 = vand.u32 %v3902, 4294901760
    %v4403 = vsub.f32 %v3902, %v4402
    %v4404 = vand.u32 %v4403, 4294901760
    %4405 = vmatpush1.msra.mxu0 %v4404
    %4406 = vmatprep.subr.mxu0 0.0
    %v4407 = vand.u32 %v3903, 4294901760
    %v4408 = vsub.f32 %v3903, %v4407
    %v4409 = vand.u32 %v4408, 4294901760
    %4410 = vmatpush1.msra.mxu0 %v4409
    %4411 = vmatprep.subr.mxu0 0.0
    %v4412 = vand.u32 %v3904, 4294901760
    %v4413 = vsub.f32 %v3904, %v4412
    %v4414 = vand.u32 %v4413, 4294901760
    %4415 = vmatpush1.msra.mxu0 %v4414
    %4416 = vmatprep.subr.mxu0 0.0
    %v4417 = vand.u32 %v3905, 4294901760
    %v4418 = vsub.f32 %v3905, %v4417
    %v4419 = vand.u32 %v4418, 4294901760
    %4420 = vmatpush1.msra.mxu0 %v4419
    %4421 = vmatprep.subr.mxu0 0.0
    %v4422 = vand.u32 %v3906, 4294901760
    %v4423 = vsub.f32 %v3906, %v4422
    %v4424 = vand.u32 %v4423, 4294901760
    %4425 = vmatpush1.msra.mxu0 %v4424
    %4426 = vmatprep.subr.mxu0 0.0
    %v4427 = vand.u32 %v3907, 4294901760
    %v4428 = vsub.f32 %v3907, %v4427
    %v4429 = vand.u32 %v4428, 4294901760
    %4430 = vmatpush1.msra.mxu0 %v4429
    %4431 = vmatprep.subr.mxu0 0.0
    %4432 = vmatpush1.msra.mxu0 0.0
    %4433 = vmatprep.subr.mxu0 0.0
    %4434 = vmatpush1.msra.mxu0 0.0
    %4435 = vmatprep.subr.mxu0 0.0
    %4436 = vmatpush1.msra.mxu0 0.0
    %4437 = vmatprep.subr.mxu0 0.0
    %4438 = vmatpush1.msra.mxu0 0.0
    %4439 = vmatprep.subr.mxu0 0.0
    %4440 = vmatpush1.msra.mxu0 0.0
    %4441 = vmatprep.subr.mxu0 0.0
    %4442 = vmatpush1.msra.mxu0 0.0
    %4443 = vmatprep.subr.mxu0 0.0
    %4444 = vmatpush1.msra.mxu0 0.0
    %4445 = vmatprep.subr.mxu0 0.0
    %4446 = vmatpush1.msra.mxu0 0.0
    %4447 = vmatprep.subr.mxu0 0.0
    %4448 = vmatpush1.msra.mxu0 0.0
    %4449 = vmatprep.subr.mxu0 0.0
    %4450 = vmatpush1.msra.mxu0 0.0
    %4451 = vmatprep.subr.mxu0 0.0
    %4452 = vmatpush1.msra.mxu0 0.0
    %4453 = vmatprep.subr.mxu0 0.0
    %4454 = vmatpush1.msra.mxu0 0.0
    %4455 = vmatprep.subr.mxu0 0.0
    %4456 = vmatpush1.msra.mxu0 0.0
    %4457 = vmatprep.subr.mxu0 0.0
    %4458 = vmatpush1.msra.mxu0 0.0
    %4459 = vmatprep.subr.mxu0 0.0
    %4460 = vmatpush1.msra.mxu0 0.0
    %4461 = vmatprep.subr.mxu0 0.0
    %4462 = vmatpush1.msra.mxu0 0.0
    %4463 = vmatprep.mubr.f32.mxu0 0.0
    %v4464 = vand.u32 %v3890, 4294901760
    %4465 = vmatmul.mubr.f32.gmra.mrb[0].mxu0 %v4464
    %v4466 = vpop.f32.mrb[0].mxu0
    %v4467 = vadd.f32 %v4348, %v4466
    %v4468 = vpop.f32.mrb[0].mxu0
    %4469 = vdwg.mxu0
    %4470 = vmatprep.subr.mxu0 0.0
    %v4471 = vand.u32 %v3892, 4294901760
    %4472 = vmatpush1.msra.mxu0 %v4471
    %4473 = vmatprep.subr.mxu0 0.0
    %v4474 = vand.u32 %v3893, 4294901760
    %4475 = vmatpush1.msra.mxu0 %v4474
    %4476 = vmatprep.subr.mxu0 0.0
    %v4477 = vand.u32 %v3894, 4294901760
    %4478 = vmatpush1.msra.mxu0 %v4477
    %4479 = vmatprep.subr.mxu0 0.0
    %v4480 = vand.u32 %v3895, 4294901760
    %4481 = vmatpush1.msra.mxu0 %v4480
    %4482 = vmatprep.subr.mxu0 0.0
    %v4483 = vand.u32 %v3896, 4294901760
    %4484 = vmatpush1.msra.mxu0 %v4483
    %4485 = vmatprep.subr.mxu0 0.0
    %v4486 = vand.u32 %v3897, 4294901760
    %4487 = vmatpush1.msra.mxu0 %v4486
    %4488 = vmatprep.subr.mxu0 0.0
    %v4489 = vand.u32 %v3898, 4294901760
    %4490 = vmatpush1.msra.mxu0 %v4489
    %4491 = vmatprep.subr.mxu0 0.0
    %v4492 = vand.u32 %v3899, 4294901760
    %4493 = vmatpush1.msra.mxu0 %v4492
    %4494 = vmatprep.subr.mxu0 0.0
    %v4495 = vand.u32 %v3900, 4294901760
    %4496 = vmatpush1.msra.mxu0 %v4495
    %4497 = vmatprep.subr.mxu0 0.0
    %v4498 = vand.u32 %v3901, 4294901760
    %4499 = vmatpush1.msra.mxu0 %v4498
    %4500 = vmatprep.subr.mxu0 0.0
    %v4501 = vand.u32 %v3902, 4294901760
    %4502 = vmatpush1.msra.mxu0 %v4501
    %4503 = vmatprep.subr.mxu0 0.0
    %v4504 = vand.u32 %v3903, 4294901760
    %4505 = vmatpush1.msra.mxu0 %v4504
    %4506 = vmatprep.subr.mxu0 0.0
    %v4507 = vand.u32 %v3904, 4294901760
    %4508 = vmatpush1.msra.mxu0 %v4507
    %4509 = vmatprep.subr.mxu0 0.0
    %v4510 = vand.u32 %v3905, 4294901760
    %4511 = vmatpush1.msra.mxu0 %v4510
    %4512 = vmatprep.subr.mxu0 0.0
    %v4513 = vand.u32 %v3906, 4294901760
    %4514 = vmatpush1.msra.mxu0 %v4513
    %4515 = vmatprep.subr.mxu0 0.0
    %v4516 = vand.u32 %v3907, 4294901760
    %4517 = vmatpush1.msra.mxu0 %v4516
    %4518 = vmatprep.subr.mxu0 0.0
    %4519 = vmatpush1.msra.mxu0 0.0
    %4520 = vmatprep.subr.mxu0 0.0
    %4521 = vmatpush1.msra.mxu0 0.0
    %4522 = vmatprep.subr.mxu0 0.0
    %4523 = vmatpush1.msra.mxu0 0.0
    %4524 = vmatprep.subr.mxu0 0.0
    %4525 = vmatpush1.msra.mxu0 0.0
    %4526 = vmatprep.subr.mxu0 0.0
    %4527 = vmatpush1.msra.mxu0 0.0
    %4528 = vmatprep.subr.mxu0 0.0
    %4529 = vmatpush1.msra.mxu0 0.0
    %4530 = vmatprep.subr.mxu0 0.0
    %4531 = vmatpush1.msra.mxu0 0.0
    %4532 = vmatprep.subr.mxu0 0.0
    %4533 = vmatpush1.msra.mxu0 0.0
    %4534 = vmatprep.subr.mxu0 0.0
    %4535 = vmatpush1.msra.mxu0 0.0
    %4536 = vmatprep.subr.mxu0 0.0
    %4537 = vmatpush1.msra.mxu0 0.0
    %4538 = vmatprep.subr.mxu0 0.0
    %4539 = vmatpush1.msra.mxu0 0.0
    %4540 = vmatprep.subr.mxu0 0.0
    %4541 = vmatpush1.msra.mxu0 0.0
    %4542 = vmatprep.subr.mxu0 0.0
    %4543 = vmatpush1.msra.mxu0 0.0
    %4544 = vmatprep.subr.mxu0 0.0
    %4545 = vmatpush1.msra.mxu0 0.0
    %4546 = vmatprep.subr.mxu0 0.0
    %4547 = vmatpush1.msra.mxu0 0.0
    %4548 = vmatprep.subr.mxu0 0.0
    %4549 = vmatpush1.msra.mxu0 0.0
    %4550 = vmatprep.mubr.f32.mxu0 0.0
    %v4551 = vand.u32 %v3890, 4294901760
    %4552 = vmatmul.mubr.f32.gmra.mrb[0].mxu0 %v4551
    %v4553 = vpop.f32.mrb[0].mxu0
    %v4554 = vadd.f32 %v4467, %v4553
    %v4555 = vpop.f32.mrb[0].mxu0
    %4556 = vdwg.mxu0
    %v4557 = vmax.f32 %v4554, 0.0
    %s4558 = scalar_lea.vmem [#allocation4], 896
    %v4559 = vld [vmem:[%s4558] sm:$0xff]
    %v4560 = vld [vmem:[%s4558 + $0x8] sm:$0xff]
    %v4561 = vld [vmem:[%s4558 + $0x10] sm:$0xff]
    %v4562 = vld [vmem:[%s4558 + $0x18] sm:$0xff]
    %v4563 = vld [vmem:[%s4558 + $0x20] sm:$0xff]
    %v4564 = vld [vmem:[%s4558 + $0x28] sm:$0xff]
    %v4565 = vld [vmem:[%s4558 + $0x30] sm:$0xff]
    %v4566 = vld [vmem:[%s4558 + $0x38] sm:$0xff]
    %v4567 = vld [vmem:[%s4558 + $0x40] sm:$0xff]
    %v4568 = vld [vmem:[%s4558 + $0x48] sm:$0xff]
    %v4569 = vld [vmem:[%s4558 + $0x50] sm:$0xff]
    %v4570 = vld [vmem:[%s4558 + $0x58] sm:$0xff]
    %v4571 = vld [vmem:[%s4558 + $0x60] sm:$0xff]
    %v4572 = vld [vmem:[%s4558 + $0x68] sm:$0xff]
    %v4573 = vld [vmem:[%s4558 + $0x70] sm:$0xff]
    %v4574 = vld [vmem:[%s4558 + $0x78] sm:$0xff]
    %s4575 = scalar_lea.vmem [#allocation6], 7
    %v4576 = vld [vmem:[%s4575] sm:$0x1]
    %v4578 = vlaneseq
    %v4579 = vshrl.u32 %v4578, 7
    %v4580 = vsub.s32 0, %v4579
    %v4581 = vrot.slane %v4576, %v4580
    %4583 = vmatprep.subr.mxu0 0.0
    %v4584 = vand.u32 %v4559, 4294901760
    %4585 = vmatpush1.msra.mxu0 %v4584
    %4586 = vmatprep.subr.mxu0 0.0
    %v4587 = vand.u32 %v4560, 4294901760
    %4588 = vmatpush1.msra.mxu0 %v4587
    %4589 = vmatprep.subr.mxu0 0.0
    %v4590 = vand.u32 %v4561, 4294901760
    %4591 = vmatpush1.msra.mxu0 %v4590
    %4592 = vmatprep.subr.mxu0 0.0
    %v4593 = vand.u32 %v4562, 4294901760
    %4594 = vmatpush1.msra.mxu0 %v4593
    %4595 = vmatprep.subr.mxu0 0.0
    %v4596 = vand.u32 %v4563, 4294901760
    %4597 = vmatpush1.msra.mxu0 %v4596
    %4598 = vmatprep.subr.mxu0 0.0
    %v4599 = vand.u32 %v4564, 4294901760
    %4600 = vmatpush1.msra.mxu0 %v4599
    %4601 = vmatprep.subr.mxu0 0.0
    %v4602 = vand.u32 %v4565, 4294901760
    %4603 = vmatpush1.msra.mxu0 %v4602
    %4604 = vmatprep.subr.mxu0 0.0
    %v4605 = vand.u32 %v4566, 4294901760
    %4606 = vmatpush1.msra.mxu0 %v4605
    %4607 = vmatprep.subr.mxu0 0.0
    %v4608 = vand.u32 %v4567, 4294901760
    %4609 = vmatpush1.msra.mxu0 %v4608
    %4610 = vmatprep.subr.mxu0 0.0
    %v4611 = vand.u32 %v4568, 4294901760
    %4612 = vmatpush1.msra.mxu0 %v4611
    %4613 = vmatprep.subr.mxu0 0.0
    %v4614 = vand.u32 %v4569, 4294901760
    %4615 = vmatpush1.msra.mxu0 %v4614
    %4616 = vmatprep.subr.mxu0 0.0
    %v4617 = vand.u32 %v4570, 4294901760
    %4618 = vmatpush1.msra.mxu0 %v4617
    %4619 = vmatprep.subr.mxu0 0.0
    %v4620 = vand.u32 %v4571, 4294901760
    %4621 = vmatpush1.msra.mxu0 %v4620
    %4622 = vmatprep.subr.mxu0 0.0
    %v4623 = vand.u32 %v4572, 4294901760
    %4624 = vmatpush1.msra.mxu0 %v4623
    %4625 = vmatprep.subr.mxu0 0.0
    %v4626 = vand.u32 %v4573, 4294901760
    %4627 = vmatpush1.msra.mxu0 %v4626
    %4628 = vmatprep.subr.mxu0 0.0
    %v4629 = vand.u32 %v4574, 4294901760
    %4630 = vmatpush1.msra.mxu0 %v4629
    %4631 = vmatprep.subr.mxu0 0.0
    %4632 = vmatpush1.msra.mxu0 0.0
    %4633 = vmatprep.subr.mxu0 0.0
    %4634 = vmatpush1.msra.mxu0 0.0
    %4635 = vmatprep.subr.mxu0 0.0
    %4636 = vmatpush1.msra.mxu0 0.0
    %4637 = vmatprep.subr.mxu0 0.0
    %4638 = vmatpush1.msra.mxu0 0.0
    %4639 = vmatprep.subr.mxu0 0.0
    %4640 = vmatpush1.msra.mxu0 0.0
    %4641 = vmatprep.subr.mxu0 0.0
    %4642 = vmatpush1.msra.mxu0 0.0
    %4643 = vmatprep.subr.mxu0 0.0
    %4644 = vmatpush1.msra.mxu0 0.0
    %4645 = vmatprep.subr.mxu0 0.0
    %4646 = vmatpush1.msra.mxu0 0.0
    %4647 = vmatprep.subr.mxu0 0.0
    %4648 = vmatpush1.msra.mxu0 0.0
    %4649 = vmatprep.subr.mxu0 0.0
    %4650 = vmatpush1.msra.mxu0 0.0
    %4651 = vmatprep.subr.mxu0 0.0
    %4652 = vmatpush1.msra.mxu0 0.0
    %4653 = vmatprep.subr.mxu0 0.0
    %4654 = vmatpush1.msra.mxu0 0.0
    %4655 = vmatprep.subr.mxu0 0.0
    %4656 = vmatpush1.msra.mxu0 0.0
    %4657 = vmatprep.subr.mxu0 0.0
    %4658 = vmatpush1.msra.mxu0 0.0
    %4659 = vmatprep.subr.mxu0 0.0
    %4660 = vmatpush1.msra.mxu0 0.0
    %4661 = vmatprep.subr.mxu0 0.0
    %4662 = vmatpush1.msra.mxu0 0.0
    %4663 = vmatprep.mubr.f32.mxu0 0.0
    %v4664 = vand.u32 %v4557, 4294901760
    %v4665 = vsub.f32 %v4557, %v4664
    %v4666 = vand.u32 %v4665, 4294901760
    %v4667 = vsub.f32 %v4665, %v4666
    %v4668 = vand.u32 %v4667, 4294901760
    %4669 = vmatmul.mubr.f32.gmra.mrb[0].mxu0 %v4668
    %v4670 = vpop.f32.mrb[0].mxu0
    %v4671 = vadd.f32 %v4581, %v4670
    %v4672 = vpop.f32.mrb[0].mxu0
    %4673 = vdwg.mxu0
    %4674 = vmatprep.subr.mxu0 0.0
    %v4675 = vand.u32 %v4559, 4294901760
    %v4676 = vsub.f32 %v4559, %v4675
    %v4677 = vand.u32 %v4676, 4294901760
    %v4678 = vsub.f32 %v4676, %v4677
    %v4679 = vand.u32 %v4678, 4294901760
    %4680 = vmatpush1.msra.mxu0 %v4679
    %4681 = vmatprep.subr.mxu0 0.0
    %v4682 = vand.u32 %v4560, 4294901760
    %v4683 = vsub.f32 %v4560, %v4682
    %v4684 = vand.u32 %v4683, 4294901760
    %v4685 = vsub.f32 %v4683, %v4684
    %v4686 = vand.u32 %v4685, 4294901760
    %4687 = vmatpush1.msra.mxu0 %v4686
    %4688 = vmatprep.subr.mxu0 0.0
    %v4689 = vand.u32 %v4561, 4294901760
    %v4690 = vsub.f32 %v4561, %v4689
    %v4691 = vand.u32 %v4690, 4294901760
    %v4692 = vsub.f32 %v4690, %v4691
    %v4693 = vand.u32 %v4692, 4294901760
    %4694 = vmatpush1.msra.mxu0 %v4693
    %4695 = vmatprep.subr.mxu0 0.0
    %v4696 = vand.u32 %v4562, 4294901760
    %v4697 = vsub.f32 %v4562, %v4696
    %v4698 = vand.u32 %v4697, 4294901760
    %v4699 = vsub.f32 %v4697, %v4698
    %v4700 = vand.u32 %v4699, 4294901760
    %4701 = vmatpush1.msra.mxu0 %v4700
    %4702 = vmatprep.subr.mxu0 0.0
    %v4703 = vand.u32 %v4563, 4294901760
    %v4704 = vsub.f32 %v4563, %v4703
    %v4705 = vand.u32 %v4704, 4294901760
    %v4706 = vsub.f32 %v4704, %v4705
    %v4707 = vand.u32 %v4706, 4294901760
    %4708 = vmatpush1.msra.mxu0 %v4707
    %4709 = vmatprep.subr.mxu0 0.0
    %v4710 = vand.u32 %v4564, 4294901760
    %v4711 = vsub.f32 %v4564, %v4710
    %v4712 = vand.u32 %v4711, 4294901760
    %v4713 = vsub.f32 %v4711, %v4712
    %v4714 = vand.u32 %v4713, 4294901760
    %4715 = vmatpush1.msra.mxu0 %v4714
    %4716 = vmatprep.subr.mxu0 0.0
    %v4717 = vand.u32 %v4565, 4294901760
    %v4718 = vsub.f32 %v4565, %v4717
    %v4719 = vand.u32 %v4718, 4294901760
    %v4720 = vsub.f32 %v4718, %v4719
    %v4721 = vand.u32 %v4720, 4294901760
    %4722 = vmatpush1.msra.mxu0 %v4721
    %4723 = vmatprep.subr.mxu0 0.0
    %v4724 = vand.u32 %v4566, 4294901760
    %v4725 = vsub.f32 %v4566, %v4724
    %v4726 = vand.u32 %v4725, 4294901760
    %v4727 = vsub.f32 %v4725, %v4726
    %v4728 = vand.u32 %v4727, 4294901760
    %4729 = vmatpush1.msra.mxu0 %v4728
    %4730 = vmatprep.subr.mxu0 0.0
    %v4731 = vand.u32 %v4567, 4294901760
    %v4732 = vsub.f32 %v4567, %v4731
    %v4733 = vand.u32 %v4732, 4294901760
    %v4734 = vsub.f32 %v4732, %v4733
    %v4735 = vand.u32 %v4734, 4294901760
    %4736 = vmatpush1.msra.mxu0 %v4735
    %4737 = vmatprep.subr.mxu0 0.0
    %v4738 = vand.u32 %v4568, 4294901760
    %v4739 = vsub.f32 %v4568, %v4738
    %v4740 = vand.u32 %v4739, 4294901760
    %v4741 = vsub.f32 %v4739, %v4740
    %v4742 = vand.u32 %v4741, 4294901760
    %4743 = vmatpush1.msra.mxu0 %v4742
    %4744 = vmatprep.subr.mxu0 0.0
    %v4745 = vand.u32 %v4569, 4294901760
    %v4746 = vsub.f32 %v4569, %v4745
    %v4747 = vand.u32 %v4746, 4294901760
    %v4748 = vsub.f32 %v4746, %v4747
    %v4749 = vand.u32 %v4748, 4294901760
    %4750 = vmatpush1.msra.mxu0 %v4749
    %4751 = vmatprep.subr.mxu0 0.0
    %v4752 = vand.u32 %v4570, 4294901760
    %v4753 = vsub.f32 %v4570, %v4752
    %v4754 = vand.u32 %v4753, 4294901760
    %v4755 = vsub.f32 %v4753, %v4754
    %v4756 = vand.u32 %v4755, 4294901760
    %4757 = vmatpush1.msra.mxu0 %v4756
    %4758 = vmatprep.subr.mxu0 0.0
    %v4759 = vand.u32 %v4571, 4294901760
    %v4760 = vsub.f32 %v4571, %v4759
    %v4761 = vand.u32 %v4760, 4294901760
    %v4762 = vsub.f32 %v4760, %v4761
    %v4763 = vand.u32 %v4762, 4294901760
    %4764 = vmatpush1.msra.mxu0 %v4763
    %4765 = vmatprep.subr.mxu0 0.0
    %v4766 = vand.u32 %v4572, 4294901760
    %v4767 = vsub.f32 %v4572, %v4766
    %v4768 = vand.u32 %v4767, 4294901760
    %v4769 = vsub.f32 %v4767, %v4768
    %v4770 = vand.u32 %v4769, 4294901760
    %4771 = vmatpush1.msra.mxu0 %v4770
    %4772 = vmatprep.subr.mxu0 0.0
    %v4773 = vand.u32 %v4573, 4294901760
    %v4774 = vsub.f32 %v4573, %v4773
    %v4775 = vand.u32 %v4774, 4294901760
    %v4776 = vsub.f32 %v4774, %v4775
    %v4777 = vand.u32 %v4776, 4294901760
    %4778 = vmatpush1.msra.mxu0 %v4777
    %4779 = vmatprep.subr.mxu0 0.0
    %v4780 = vand.u32 %v4574, 4294901760
    %v4781 = vsub.f32 %v4574, %v4780
    %v4782 = vand.u32 %v4781, 4294901760
    %v4783 = vsub.f32 %v4781, %v4782
    %v4784 = vand.u32 %v4783, 4294901760
    %4785 = vmatpush1.msra.mxu0 %v4784
    %4786 = vmatprep.subr.mxu0 0.0
    %4787 = vmatpush1.msra.mxu0 0.0
    %4788 = vmatprep.subr.mxu0 0.0
    %4789 = vmatpush1.msra.mxu0 0.0
    %4790 = vmatprep.subr.mxu0 0.0
    %4791 = vmatpush1.msra.mxu0 0.0
    %4792 = vmatprep.subr.mxu0 0.0
    %4793 = vmatpush1.msra.mxu0 0.0
    %4794 = vmatprep.subr.mxu0 0.0
    %4795 = vmatpush1.msra.mxu0 0.0
    %4796 = vmatprep.subr.mxu0 0.0
    %4797 = vmatpush1.msra.mxu0 0.0
    %4798 = vmatprep.subr.mxu0 0.0
    %4799 = vmatpush1.msra.mxu0 0.0
    %4800 = vmatprep.subr.mxu0 0.0
    %4801 = vmatpush1.msra.mxu0 0.0
    %4802 = vmatprep.subr.mxu0 0.0
    %4803 = vmatpush1.msra.mxu0 0.0
    %4804 = vmatprep.subr.mxu0 0.0
    %4805 = vmatpush1.msra.mxu0 0.0
    %4806 = vmatprep.subr.mxu0 0.0
    %4807 = vmatpush1.msra.mxu0 0.0
    %4808 = vmatprep.subr.mxu0 0.0
    %4809 = vmatpush1.msra.mxu0 0.0
    %4810 = vmatprep.subr.mxu0 0.0
    %4811 = vmatpush1.msra.mxu0 0.0
    %4812 = vmatprep.subr.mxu0 0.0
    %4813 = vmatpush1.msra.mxu0 0.0
    %4814 = vmatprep.subr.mxu0 0.0
    %4815 = vmatpush1.msra.mxu0 0.0
    %4816 = vmatprep.subr.mxu0 0.0
    %4817 = vmatpush1.msra.mxu0 0.0
    %4818 = vmatprep.mubr.f32.mxu0 0.0
    %v4819 = vand.u32 %v4557, 4294901760
    %4820 = vmatmul.mubr.f32.gmra.mrb[0].mxu0 %v4819
    %v4821 = vpop.f32.mrb[0].mxu0
    %v4822 = vadd.f32 %v4671, %v4821
    %v4823 = vpop.f32.mrb[0].mxu0
    %4824 = vdwg.mxu0
    %4825 = vmatprep.subr.mxu0 0.0
    %v4826 = vand.u32 %v4559, 4294901760
    %v4827 = vsub.f32 %v4559, %v4826
    %4828 = vmatpush1.msra.mxu0 %v4827
    %4829 = vmatprep.subr.mxu0 0.0
    %v4830 = vand.u32 %v4560, 4294901760
    %v4831 = vsub.f32 %v4560, %v4830
    %4832 = vmatpush1.msra.mxu0 %v4831
    %4833 = vmatprep.subr.mxu0 0.0
    %v4834 = vand.u32 %v4561, 4294901760
    %v4835 = vsub.f32 %v4561, %v4834
    %4836 = vmatpush1.msra.mxu0 %v4835
    %4837 = vmatprep.subr.mxu0 0.0
    %v4838 = vand.u32 %v4562, 4294901760
    %v4839 = vsub.f32 %v4562, %v4838
    %4840 = vmatpush1.msra.mxu0 %v4839
    %4841 = vmatprep.subr.mxu0 0.0
    %v4842 = vand.u32 %v4563, 4294901760
    %v4843 = vsub.f32 %v4563, %v4842
    %4844 = vmatpush1.msra.mxu0 %v4843
    %4845 = vmatprep.subr.mxu0 0.0
    %v4846 = vand.u32 %v4564, 4294901760
    %v4847 = vsub.f32 %v4564, %v4846
    %4848 = vmatpush1.msra.mxu0 %v4847
    %4849 = vmatprep.subr.mxu0 0.0
    %v4850 = vand.u32 %v4565, 4294901760
    %v4851 = vsub.f32 %v4565, %v4850
    %4852 = vmatpush1.msra.mxu0 %v4851
    %4853 = vmatprep.subr.mxu0 0.0
    %v4854 = vand.u32 %v4566, 4294901760
    %v4855 = vsub.f32 %v4566, %v4854
    %4856 = vmatpush1.msra.mxu0 %v4855
    %4857 = vmatprep.subr.mxu0 0.0
    %v4858 = vand.u32 %v4567, 4294901760
    %v4859 = vsub.f32 %v4567, %v4858
    %4860 = vmatpush1.msra.mxu0 %v4859
    %4861 = vmatprep.subr.mxu0 0.0
    %v4862 = vand.u32 %v4568, 4294901760
    %v4863 = vsub.f32 %v4568, %v4862
    %4864 = vmatpush1.msra.mxu0 %v4863
    %4865 = vmatprep.subr.mxu0 0.0
    %v4866 = vand.u32 %v4569, 4294901760
    %v4867 = vsub.f32 %v4569, %v4866
    %4868 = vmatpush1.msra.mxu0 %v4867
    %4869 = vmatprep.subr.mxu0 0.0
    %v4870 = vand.u32 %v4570, 4294901760
    %v4871 = vsub.f32 %v4570, %v4870
    %4872 = vmatpush1.msra.mxu0 %v4871
    %4873 = vmatprep.subr.mxu0 0.0
    %v4874 = vand.u32 %v4571, 4294901760
    %v4875 = vsub.f32 %v4571, %v4874
    %4876 = vmatpush1.msra.mxu0 %v4875
    %4877 = vmatprep.subr.mxu0 0.0
    %v4878 = vand.u32 %v4572, 4294901760
    %v4879 = vsub.f32 %v4572, %v4878
    %4880 = vmatpush1.msra.mxu0 %v4879
    %4881 = vmatprep.subr.mxu0 0.0
    %v4882 = vand.u32 %v4573, 4294901760
    %v4883 = vsub.f32 %v4573, %v4882
    %4884 = vmatpush1.msra.mxu0 %v4883
    %4885 = vmatprep.subr.mxu0 0.0
    %v4886 = vand.u32 %v4574, 4294901760
    %v4887 = vsub.f32 %v4574, %v4886
    %4888 = vmatpush1.msra.mxu0 %v4887
    %4889 = vmatprep.subr.mxu0 0.0
    %4890 = vmatpush1.msra.mxu0 0.0
    %4891 = vmatprep.subr.mxu0 0.0
    %4892 = vmatpush1.msra.mxu0 0.0
    %4893 = vmatprep.subr.mxu0 0.0
    %4894 = vmatpush1.msra.mxu0 0.0
    %4895 = vmatprep.subr.mxu0 0.0
    %4896 = vmatpush1.msra.mxu0 0.0
    %4897 = vmatprep.subr.mxu0 0.0
    %4898 = vmatpush1.msra.mxu0 0.0
    %4899 = vmatprep.subr.mxu0 0.0
    %4900 = vmatpush1.msra.mxu0 0.0
    %4901 = vmatprep.subr.mxu0 0.0
    %4902 = vmatpush1.msra.mxu0 0.0
    %4903 = vmatprep.subr.mxu0 0.0
    %4904 = vmatpush1.msra.mxu0 0.0
    %4905 = vmatprep.subr.mxu0 0.0
    %4906 = vmatpush1.msra.mxu0 0.0
    %4907 = vmatprep.subr.mxu0 0.0
    %4908 = vmatpush1.msra.mxu0 0.0
    %4909 = vmatprep.subr.mxu0 0.0
    %4910 = vmatpush1.msra.mxu0 0.0
    %4911 = vmatprep.subr.mxu0 0.0
    %4912 = vmatpush1.msra.mxu0 0.0
    %4913 = vmatprep.subr.mxu0 0.0
    %4914 = vmatpush1.msra.mxu0 0.0
    %4915 = vmatprep.subr.mxu0 0.0
    %4916 = vmatpush1.msra.mxu0 0.0
    %4917 = vmatprep.subr.mxu0 0.0
    %4918 = vmatpush1.msra.mxu0 0.0
    %4919 = vmatprep.subr.mxu0 0.0
    %4920 = vmatpush1.msra.mxu0 0.0
    %4921 = vmatprep.mubr.f32.mxu0 0.0
    %v4922 = vand.u32 %v4557, 4294901760
    %v4923 = vsub.f32 %v4557, %v4922
    %4924 = vmatmul.mubr.f32.gmra.mrb[0].mxu0 %v4923
    %v4925 = vpop.f32.mrb[0].mxu0
    %v4926 = vadd.f32 %v4822, %v4925
    %v4927 = vpop.f32.mrb[0].mxu0
    %4928 = vdwg.mxu0
    %4929 = vmatprep.subr.mxu0 0.0
    %v4930 = vand.u32 %v4559, 4294901760
    %4931 = vmatpush1.msra.mxu0 %v4930
    %4932 = vmatprep.subr.mxu0 0.0
    %v4933 = vand.u32 %v4560, 4294901760
    %4934 = vmatpush1.msra.mxu0 %v4933
    %4935 = vmatprep.subr.mxu0 0.0
    %v4936 = vand.u32 %v4561, 4294901760
    %4937 = vmatpush1.msra.mxu0 %v4936
    %4938 = vmatprep.subr.mxu0 0.0
    %v4939 = vand.u32 %v4562, 4294901760
    %4940 = vmatpush1.msra.mxu0 %v4939
    %4941 = vmatprep.subr.mxu0 0.0
    %v4942 = vand.u32 %v4563, 4294901760
    %4943 = vmatpush1.msra.mxu0 %v4942
    %4944 = vmatprep.subr.mxu0 0.0
    %v4945 = vand.u32 %v4564, 4294901760
    %4946 = vmatpush1.msra.mxu0 %v4945
    %4947 = vmatprep.subr.mxu0 0.0
    %v4948 = vand.u32 %v4565, 4294901760
    %4949 = vmatpush1.msra.mxu0 %v4948
    %4950 = vmatprep.subr.mxu0 0.0
    %v4951 = vand.u32 %v4566, 4294901760
    %4952 = vmatpush1.msra.mxu0 %v4951
    %4953 = vmatprep.subr.mxu0 0.0
    %v4954 = vand.u32 %v4567, 4294901760
    %4955 = vmatpush1.msra.mxu0 %v4954
    %4956 = vmatprep.subr.mxu0 0.0
    %v4957 = vand.u32 %v4568, 4294901760
    %4958 = vmatpush1.msra.mxu0 %v4957
    %4959 = vmatprep.subr.mxu0 0.0
    %v4960 = vand.u32 %v4569, 4294901760
    %4961 = vmatpush1.msra.mxu0 %v4960
    %4962 = vmatprep.subr.mxu0 0.0
    %v4963 = vand.u32 %v4570, 4294901760
    %4964 = vmatpush1.msra.mxu0 %v4963
    %4965 = vmatprep.subr.mxu0 0.0
    %v4966 = vand.u32 %v4571, 4294901760
    %4967 = vmatpush1.msra.mxu0 %v4966
    %4968 = vmatprep.subr.mxu0 0.0
    %v4969 = vand.u32 %v4572, 4294901760
    %4970 = vmatpush1.msra.mxu0 %v4969
    %4971 = vmatprep.subr.mxu0 0.0
    %v4972 = vand.u32 %v4573, 4294901760
    %4973 = vmatpush1.msra.mxu0 %v4972
    %4974 = vmatprep.subr.mxu0 0.0
    %v4975 = vand.u32 %v4574, 4294901760
    %4976 = vmatpush1.msra.mxu0 %v4975
    %4977 = vmatprep.subr.mxu0 0.0
    %4978 = vmatpush1.msra.mxu0 0.0
    %4979 = vmatprep.subr.mxu0 0.0
    %4980 = vmatpush1.msra.mxu0 0.0
    %4981 = vmatprep.subr.mxu0 0.0
    %4982 = vmatpush1.msra.mxu0 0.0
    %4983 = vmatprep.subr.mxu0 0.0
    %4984 = vmatpush1.msra.mxu0 0.0
    %4985 = vmatprep.subr.mxu0 0.0
    %4986 = vmatpush1.msra.mxu0 0.0
    %4987 = vmatprep.subr.mxu0 0.0
    %4988 = vmatpush1.msra.mxu0 0.0
    %4989 = vmatprep.subr.mxu0 0.0
    %4990 = vmatpush1.msra.mxu0 0.0
    %4991 = vmatprep.subr.mxu0 0.0
    %4992 = vmatpush1.msra.mxu0 0.0
    %4993 = vmatprep.subr.mxu0 0.0
    %4994 = vmatpush1.msra.mxu0 0.0
    %4995 = vmatprep.subr.mxu0 0.0
    %4996 = vmatpush1.msra.mxu0 0.0
    %4997 = vmatprep.subr.mxu0 0.0
    %4998 = vmatpush1.msra.mxu0 0.0
    %4999 = vmatprep.subr.mxu0 0.0
    %5000 = vmatpush1.msra.mxu0 0.0
    %5001 = vmatprep.subr.mxu0 0.0
    %5002 = vmatpush1.msra.mxu0 0.0
    %5003 = vmatprep.subr.mxu0 0.0
    %5004 = vmatpush1.msra.mxu0 0.0
    %5005 = vmatprep.subr.mxu0 0.0
    %5006 = vmatpush1.msra.mxu0 0.0
    %5007 = vmatprep.subr.mxu0 0.0
    %5008 = vmatpush1.msra.mxu0 0.0
    %5009 = vmatprep.mubr.f32.mxu0 0.0
    %v5010 = vand.u32 %v4557, 4294901760
    %v5011 = vsub.f32 %v4557, %v5010
    %v5012 = vand.u32 %v5011, 4294901760
    %5013 = vmatmul.mubr.f32.gmra.mrb[0].mxu0 %v5012
    %v5014 = vpop.f32.mrb[0].mxu0
    %v5015 = vadd.f32 %v4926, %v5014
    %v5016 = vpop.f32.mrb[0].mxu0
    %5017 = vdwg.mxu0
    %5018 = vmatprep.subr.mxu0 0.0
    %v5019 = vand.u32 %v4559, 4294901760
    %v5020 = vsub.f32 %v4559, %v5019
    %v5021 = vand.u32 %v5020, 4294901760
    %5022 = vmatpush1.msra.mxu0 %v5021
    %5023 = vmatprep.subr.mxu0 0.0
    %v5024 = vand.u32 %v4560, 4294901760
    %v5025 = vsub.f32 %v4560, %v5024
    %v5026 = vand.u32 %v5025, 4294901760
    %5027 = vmatpush1.msra.mxu0 %v5026
    %5028 = vmatprep.subr.mxu0 0.0
    %v5029 = vand.u32 %v4561, 4294901760
    %v5030 = vsub.f32 %v4561, %v5029
    %v5031 = vand.u32 %v5030, 4294901760
    %5032 = vmatpush1.msra.mxu0 %v5031
    %5033 = vmatprep.subr.mxu0 0.0
    %v5034 = vand.u32 %v4562, 4294901760
    %v5035 = vsub.f32 %v4562, %v5034
    %v5036 = vand.u32 %v5035, 4294901760
    %5037 = vmatpush1.msra.mxu0 %v5036
    %5038 = vmatprep.subr.mxu0 0.0
    %v5039 = vand.u32 %v4563, 4294901760
    %v5040 = vsub.f32 %v4563, %v5039
    %v5041 = vand.u32 %v5040, 4294901760
    %5042 = vmatpush1.msra.mxu0 %v5041
    %5043 = vmatprep.subr.mxu0 0.0
    %v5044 = vand.u32 %v4564, 4294901760
    %v5045 = vsub.f32 %v4564, %v5044
    %v5046 = vand.u32 %v5045, 4294901760
    %5047 = vmatpush1.msra.mxu0 %v5046
    %5048 = vmatprep.subr.mxu0 0.0
    %v5049 = vand.u32 %v4565, 4294901760
    %v5050 = vsub.f32 %v4565, %v5049
    %v5051 = vand.u32 %v5050, 4294901760
    %5052 = vmatpush1.msra.mxu0 %v5051
    %5053 = vmatprep.subr.mxu0 0.0
    %v5054 = vand.u32 %v4566, 4294901760
    %v5055 = vsub.f32 %v4566, %v5054
    %v5056 = vand.u32 %v5055, 4294901760
    %5057 = vmatpush1.msra.mxu0 %v5056
    %5058 = vmatprep.subr.mxu0 0.0
    %v5059 = vand.u32 %v4567, 4294901760
    %v5060 = vsub.f32 %v4567, %v5059
    %v5061 = vand.u32 %v5060, 4294901760
    %5062 = vmatpush1.msra.mxu0 %v5061
    %5063 = vmatprep.subr.mxu0 0.0
    %v5064 = vand.u32 %v4568, 4294901760
    %v5065 = vsub.f32 %v4568, %v5064
    %v5066 = vand.u32 %v5065, 4294901760
    %5067 = vmatpush1.msra.mxu0 %v5066
    %5068 = vmatprep.subr.mxu0 0.0
    %v5069 = vand.u32 %v4569, 4294901760
    %v5070 = vsub.f32 %v4569, %v5069
    %v5071 = vand.u32 %v5070, 4294901760
    %5072 = vmatpush1.msra.mxu0 %v5071
    %5073 = vmatprep.subr.mxu0 0.0
    %v5074 = vand.u32 %v4570, 4294901760
    %v5075 = vsub.f32 %v4570, %v5074
    %v5076 = vand.u32 %v5075, 4294901760
    %5077 = vmatpush1.msra.mxu0 %v5076
    %5078 = vmatprep.subr.mxu0 0.0
    %v5079 = vand.u32 %v4571, 4294901760
    %v5080 = vsub.f32 %v4571, %v5079
    %v5081 = vand.u32 %v5080, 4294901760
    %5082 = vmatpush1.msra.mxu0 %v5081
    %5083 = vmatprep.subr.mxu0 0.0
    %v5084 = vand.u32 %v4572, 4294901760
    %v5085 = vsub.f32 %v4572, %v5084
    %v5086 = vand.u32 %v5085, 4294901760
    %5087 = vmatpush1.msra.mxu0 %v5086
    %5088 = vmatprep.subr.mxu0 0.0
    %v5089 = vand.u32 %v4573, 4294901760
    %v5090 = vsub.f32 %v4573, %v5089
    %v5091 = vand.u32 %v5090, 4294901760
    %5092 = vmatpush1.msra.mxu0 %v5091
    %5093 = vmatprep.subr.mxu0 0.0
    %v5094 = vand.u32 %v4574, 4294901760
    %v5095 = vsub.f32 %v4574, %v5094
    %v5096 = vand.u32 %v5095, 4294901760
    %5097 = vmatpush1.msra.mxu0 %v5096
    %5098 = vmatprep.subr.mxu0 0.0
    %5099 = vmatpush1.msra.mxu0 0.0
    %5100 = vmatprep.subr.mxu0 0.0
    %5101 = vmatpush1.msra.mxu0 0.0
    %5102 = vmatprep.subr.mxu0 0.0
    %5103 = vmatpush1.msra.mxu0 0.0
    %5104 = vmatprep.subr.mxu0 0.0
    %5105 = vmatpush1.msra.mxu0 0.0
    %5106 = vmatprep.subr.mxu0 0.0
    %5107 = vmatpush1.msra.mxu0 0.0
    %5108 = vmatprep.subr.mxu0 0.0
    %5109 = vmatpush1.msra.mxu0 0.0
    %5110 = vmatprep.subr.mxu0 0.0
    %5111 = vmatpush1.msra.mxu0 0.0
    %5112 = vmatprep.subr.mxu0 0.0
    %5113 = vmatpush1.msra.mxu0 0.0
    %5114 = vmatprep.subr.mxu0 0.0
    %5115 = vmatpush1.msra.mxu0 0.0
    %5116 = vmatprep.subr.mxu0 0.0
    %5117 = vmatpush1.msra.mxu0 0.0
    %5118 = vmatprep.subr.mxu0 0.0
    %5119 = vmatpush1.msra.mxu0 0.0
    %5120 = vmatprep.subr.mxu0 0.0
    %5121 = vmatpush1.msra.mxu0 0.0
    %5122 = vmatprep.subr.mxu0 0.0
    %5123 = vmatpush1.msra.mxu0 0.0
    %5124 = vmatprep.subr.mxu0 0.0
    %5125 = vmatpush1.msra.mxu0 0.0
    %5126 = vmatprep.subr.mxu0 0.0
    %5127 = vmatpush1.msra.mxu0 0.0
    %5128 = vmatprep.subr.mxu0 0.0
    %5129 = vmatpush1.msra.mxu0 0.0
    %5130 = vmatprep.mubr.f32.mxu0 0.0
    %v5131 = vand.u32 %v4557, 4294901760
    %5132 = vmatmul.mubr.f32.gmra.mrb[0].mxu0 %v5131
    %v5133 = vpop.f32.mrb[0].mxu0
    %v5134 = vadd.f32 %v5015, %v5133
    %v5135 = vpop.f32.mrb[0].mxu0
    %5136 = vdwg.mxu0
    %5137 = vmatprep.subr.mxu0 0.0
    %v5138 = vand.u32 %v4559, 4294901760
    %5139 = vmatpush1.msra.mxu0 %v5138
    %5140 = vmatprep.subr.mxu0 0.0
    %v5141 = vand.u32 %v4560, 4294901760
    %5142 = vmatpush1.msra.mxu0 %v5141
    %5143 = vmatprep.subr.mxu0 0.0
    %v5144 = vand.u32 %v4561, 4294901760
    %5145 = vmatpush1.msra.mxu0 %v5144
    %5146 = vmatprep.subr.mxu0 0.0
    %v5147 = vand.u32 %v4562, 4294901760
    %5148 = vmatpush1.msra.mxu0 %v5147
    %5149 = vmatprep.subr.mxu0 0.0
    %v5150 = vand.u32 %v4563, 4294901760
    %5151 = vmatpush1.msra.mxu0 %v5150
    %5152 = vmatprep.subr.mxu0 0.0
    %v5153 = vand.u32 %v4564, 4294901760
    %5154 = vmatpush1.msra.mxu0 %v5153
    %5155 = vmatprep.subr.mxu0 0.0
    %v5156 = vand.u32 %v4565, 4294901760
    %5157 = vmatpush1.msra.mxu0 %v5156
    %5158 = vmatprep.subr.mxu0 0.0
    %v5159 = vand.u32 %v4566, 4294901760
    %5160 = vmatpush1.msra.mxu0 %v5159
    %5161 = vmatprep.subr.mxu0 0.0
    %v5162 = vand.u32 %v4567, 4294901760
    %5163 = vmatpush1.msra.mxu0 %v5162
    %5164 = vmatprep.subr.mxu0 0.0
    %v5165 = vand.u32 %v4568, 4294901760
    %5166 = vmatpush1.msra.mxu0 %v5165
    %5167 = vmatprep.subr.mxu0 0.0
    %v5168 = vand.u32 %v4569, 4294901760
    %5169 = vmatpush1.msra.mxu0 %v5168
    %5170 = vmatprep.subr.mxu0 0.0
    %v5171 = vand.u32 %v4570, 4294901760
    %5172 = vmatpush1.msra.mxu0 %v5171
    %5173 = vmatprep.subr.mxu0 0.0
    %v5174 = vand.u32 %v4571, 4294901760
    %5175 = vmatpush1.msra.mxu0 %v5174
    %5176 = vmatprep.subr.mxu0 0.0
    %v5177 = vand.u32 %v4572, 4294901760
    %5178 = vmatpush1.msra.mxu0 %v5177
    %5179 = vmatprep.subr.mxu0 0.0
    %v5180 = vand.u32 %v4573, 4294901760
    %5181 = vmatpush1.msra.mxu0 %v5180
    %5182 = vmatprep.subr.mxu0 0.0
    %v5183 = vand.u32 %v4574, 4294901760
    %5184 = vmatpush1.msra.mxu0 %v5183
    %5185 = vmatprep.subr.mxu0 0.0
    %5186 = vmatpush1.msra.mxu0 0.0
    %5187 = vmatprep.subr.mxu0 0.0
    %5188 = vmatpush1.msra.mxu0 0.0
    %5189 = vmatprep.subr.mxu0 0.0
    %5190 = vmatpush1.msra.mxu0 0.0
    %5191 = vmatprep.subr.mxu0 0.0
    %5192 = vmatpush1.msra.mxu0 0.0
    %5193 = vmatprep.subr.mxu0 0.0
    %5194 = vmatpush1.msra.mxu0 0.0
    %5195 = vmatprep.subr.mxu0 0.0
    %5196 = vmatpush1.msra.mxu0 0.0
    %5197 = vmatprep.subr.mxu0 0.0
    %5198 = vmatpush1.msra.mxu0 0.0
    %5199 = vmatprep.subr.mxu0 0.0
    %5200 = vmatpush1.msra.mxu0 0.0
    %5201 = vmatprep.subr.mxu0 0.0
    %5202 = vmatpush1.msra.mxu0 0.0
    %5203 = vmatprep.subr.mxu0 0.0
    %5204 = vmatpush1.msra.mxu0 0.0
    %5205 = vmatprep.subr.mxu0 0.0
    %5206 = vmatpush1.msra.mxu0 0.0
    %5207 = vmatprep.subr.mxu0 0.0
    %5208 = vmatpush1.msra.mxu0 0.0
    %5209 = vmatprep.subr.mxu0 0.0
    %5210 = vmatpush1.msra.mxu0 0.0
    %5211 = vmatprep.subr.mxu0 0.0
    %5212 = vmatpush1.msra.mxu0 0.0
    %5213 = vmatprep.subr.mxu0 0.0
    %5214 = vmatpush1.msra.mxu0 0.0
    %5215 = vmatprep.subr.mxu0 0.0
    %5216 = vmatpush1.msra.mxu0 0.0
    %5217 = vmatprep.mubr.f32.mxu0 0.0
    %v5218 = vand.u32 %v4557, 4294901760
    %5219 = vmatmul.mubr.f32.gmra.mrb[0].mxu0 %v5218
    %v5220 = vpop.f32.mrb[0].mxu0
    %v5221 = vadd.f32 %v5134, %v5220
    %v5222 = vpop.f32.mrb[0].mxu0
    %5223 = vdwg.mxu0
    %v5224 = vmax.f32 %v5221, 0.0
    %5225 = vst [vmem:[%s3 + $0x8] sm:$0xff] %v5224
    // Predicated region
    $region26: #{forward.1} parent=1 // pred_check
      _
    $region27: #{forward.1} parent=1 // pred_check_branch
      %5227 = sbr.rel (0) target = $region29
    $region28: #{forward.1} parent=1 // pred_region
      _
    $region29: #{forward.1} parent=1 // pred_fallthru
      _
    // Predicated region
    $region30: #{forward.1} parent=1 // pred_check
      _
    $region31: #{forward.1} parent=1 // pred_check_branch
      %5229 = sbr.rel (0) target = $region33
    $region32: #{forward.1} parent=1 // pred_region
      _
    $region33: #{forward.1} parent=1 // pred_fallthru
      _
    %5230 = vsyncpa [#allocation3], 1
    %5231 = vsyncpa [#allocation5], 1

</llo_original>
